<compile_context>
chip_gen: v5e
topology: v5e:2x2
jax: 0.10.0
libtpu: 0.0.40
codegen_flags: <defaults>
</compile_context>

<pallas_src>
import numpy as np
import jax
import jax.numpy as jnp
from jax import lax
from jax.experimental import pallas as pl
from jax.experimental.pallas import tpu as pltpu


def _round_up(n, m):
    return ((n + m - 1) // m) * m


def _sigmoid(x):
    # single EUP push per call: sigmoid(x) = 0.5 * tanh(0.5 * x) + 0.5
    return 0.5 * jnp.tanh(0.5 * x) + 0.5


# ----------------------------- Pallas LSTM kernel -----------------------------

def _make_lstm_kernel(*, T, Tc, Hc, masked, reverse, unroll):
    """Builds the per-(batch-chunk, time-chunk) LSTM recurrence kernel.

    Refs seen per grid step:
      [lens_ref]    (Bc, 1)  int32      (only if masked)
      gx_ref        (Tc, Bc, 4*Hc)      x @ W_ih + b, gate order [i|f|o|g]
      whh_ref       (Hc, 4*Hc)
      h0_ref/c0_ref (Bc, Hc) f32        initial carries for this batch chunk
      y_ref         (Tc, Bc, Hc)        hidden outputs (un-reversed via BlockSpec)
      hN_ref/cN_ref (Bc, Hc) f32        final carries (written on last time chunk)
      h_scr/c_scr   (Bc, Hc) f32        VMEM carry scratch, persists across chunks
    """

    def kernel(*refs):
        if masked:
            (lens_ref, gx_ref, whh_ref, h0_ref, c0_ref,
             y_ref, hN_ref, cN_ref, h_scr, c_scr) = refs
        else:
            (gx_ref, whh_ref, h0_ref, c0_ref,
             y_ref, hN_ref, cN_ref, h_scr, c_scr) = refs

        t_chunk = pl.program_id(1)

        @pl.when(t_chunk == 0)
        def _():                       # new batch chunk -> (re)load initial carries
            h_scr[...] = h0_ref[...]
            c_scr[...] = c0_ref[...]

        whh = whh_ref[...]             # resident across the whole chunk
        if masked:
            lens = lens_ref[...]                       # (Bc, 1) int32
            thresh = (T - lens) if reverse else lens   # hoisted out of the loop
        base = t_chunk * Tc

        def step(s, carry):
            h, c = carry
            idx = (Tc - 1 - s) if reverse else s
            # the only per-step MXU work: (Bc, Hc) x (Hc, 4*Hc), f32 accumulation
            gates = gx_ref[idx].astype(jnp.float32) + jnp.dot(
                h.astype(whh.dtype), whh, preferred_element_type=jnp.float32)
            # [i | f | o | g]: one contiguous sigmoid over 3*Hc lanes, tanh on rest
            sig = _sigmoid(gates[:, :3 * Hc])
            i_g = sig[:, 0 * Hc:1 * Hc]
            f_g = sig[:, 1 * Hc:2 * Hc]
            o_g = sig[:, 2 * Hc:3 * Hc]
            g_g = jnp.tanh(gates[:, 3 * Hc:])
            c_new = f_g * c + i_g * g_g
            h_new = o_g * jnp.tanh(c_new)
            if masked:
                # packed-sequence validity computed from lengths (no mask tensor):
                # forward stream: t < len ; reversed stream: t >= T - len
                t_glb = base + s
                valid = (t_glb >= thresh) if reverse else (t_glb < thresh)
                y_ref[idx] = jnp.where(valid, h_new, 0.0).astype(y_ref.dtype)
                h = jnp.where(valid, h_new, h)
                c = jnp.where(valid, c_new, c)
            else:
                y_ref[idx] = h_new.astype(y_ref.dtype)
                h, c = h_new, c_new
            return h, c

        h, c = lax.fori_loop(0, Tc, step, (h_scr[...], c_scr[...]), unroll=unroll)
        h_scr[...] = h
        c_scr[...] = c

        @pl.when(t_chunk == pl.num_programs(1) - 1)
        def _():
            hN_ref[...] = h
            cN_ref[...] = c

    return kernel


def _pick_time_chunk(T, Bc, G, itemsize, cap=None, budget=6 * 2**20):
    """Largest divisor of T (<= cap) whose double-buffered gx+y tiles fit budget."""
    best = 1
    for d in range(1, T + 1):
        if T % d:
            continue
        if cap is not None and d > cap:
            continue
        if 2 * d * Bc * (G + G // 4) * itemsize <= budget:
            best = d
    return best


def lstm_layer_pallas(gx, whh, h0, c0, lens=None, *, reverse=False,
                      time_chunk=None, batch_chunk=None, unroll=8):
    """Masked / optionally time-reversed LSTM layer, gridded over (batch, time).

    gx    : (T, Bp, 4*Hc)  precomputed input projection (f32 or bf16), gates [i|f|o|g]
    whh   : (Hc, 4*Hc)     recurrent weights (bf16 here hits the bf16 MXU rate)
    h0,c0 : (Bp, Hp==Hc) f32 initial carries
    lens  : optional (Bp, 1) int32 valid lengths (packed-sequence semantics);
            None -> mask-free fast path (e.g. the decoder).
    reverse=True processes time back-to-front purely via BlockSpec index maps;
            the returned y is already in original time order.
    Returns y (T, Bp, Hc) in gx.dtype, hN, cN (Bp, Hc) f32.
    """
    T, Bp, G = gx.shape
    Hc = h0.shape[-1]
    assert G == 4 * Hc and Bp % 8 == 0 and h0.shape == (Bp, Hc)

    Bc = Bp if batch_chunk is None else batch_chunk
    assert Bp % Bc == 0 and Bc % 8 == 0
    itemsize = jnp.dtype(gx.dtype).itemsize
    Tc = _pick_time_chunk(T, Bc, G, itemsize, cap=time_chunk)
    nb, nt = Bp // Bc, T // Tc

    t_blk = (lambda b, t: nt - 1 - t) if reverse else (lambda b, t: t)
    masked = lens is not None
    kernel = _make_lstm_kernel(T=T, Tc=Tc, Hc=Hc, masked=masked, reverse=reverse,
                               unroll=min(unroll, Tc))

    in_specs, args = [], []
    if masked:
        in_specs.append(pl.BlockSpec((Bc, 1), lambda b, t: (b, 0)))
        args.append(lens)
    in_specs += [
        # production v5e note: add pipeline_mode=pl.Buffered(3) on this gx spec
        pl.BlockSpec((Tc, Bc, G), lambda b, t: (t_blk(b, t), b, 0)),
        pl.BlockSpec((Hc, G), lambda b, t: (0, 0)),
        pl.BlockSpec((Bc, Hc), lambda b, t: (b, 0)),
        pl.BlockSpec((Bc, Hc), lambda b, t: (b, 0)),
    ]
    args += [gx, whh, h0, c0]

    out_specs = (
        # y is one contiguous full-width store per step (>=128 lanes at prod Hc)
        pl.BlockSpec((Tc, Bc, Hc), lambda b, t: (t_blk(b, t), b, 0)),
        pl.BlockSpec((Bc, Hc), lambda b, t: (b, 0)),
        pl.BlockSpec((Bc, Hc), lambda b, t: (b, 0)),
    )
    out_shape = (
        jax.ShapeDtypeStruct((T, Bp, Hc), gx.dtype),
        jax.ShapeDtypeStruct((Bp, Hc), jnp.float32),
        jax.ShapeDtypeStruct((Bp, Hc), jnp.float32),
    )

    # VMEM working set: double-buffered gx/y tiles + weights + carries.
    need = (2 * Tc * Bc * (G + Hc) * itemsize + 2 * Hc * G * itemsize
            + 6 * Bc * Hc * 4 + 2 * Bc * 4)
    cp = dict(dimension_semantics=("parallel", "arbitrary"))
    if need > 12 * 2**20:
        # capped at 48 MiB so it also fits v7x's 64 MiB physical VMEM
        cp["vmem_limit_bytes"] = int(min(48 * 2**20, 2.5 * need))

    grid_spec = pltpu.PrefetchScalarGridSpec(
        num_scalar_prefetch=0,
        grid=(nb, nt),
        in_specs=in_specs,
        out_specs=out_specs,
        scratch_shapes=[pltpu.VMEM((Bc, Hc), jnp.float32),
                        pltpu.VMEM((Bc, Hc), jnp.float32)],
    )
    return pl.pallas_call(
        kernel,
        grid_spec=grid_spec,
        out_shape=out_shape,
        compiler_params=pltpu.CompilerParams(**cp),
    )(*args)


# ----------------------- pure-JAX recurrence (validation) ----------------------

def lstm_layer_ref(gx, whh, h0, c0, lens=None, *, reverse=False, **_):
    """lax.scan reference with identical layout & packed-sequence semantics."""
    T, _, _ = gx.shape
    Hc = h0.shape[-1]
    gx32 = gx.astype(jnp.float32)
    whh32 = whh.astype(jnp.float32)
    t_order = jnp.arange(T - 1, -1, -1) if reverse else jnp.arange(T)

    def step(carry, t):
        h, c = carry
        gates = gx32[t] + h @ whh32
        sig = jax.nn.sigmoid(gates[:, :3 * Hc])
        i_g, f_g, o_g = sig[:, :Hc], sig[:, Hc:2 * Hc], sig[:, 2 * Hc:]
        g_g = jnp.tanh(gates[:, 3 * Hc:])
        c_new = f_g * c + i_g * g_g
        h_new = o_g * jnp.tanh(c_new)
        if lens is None:
            return (h_new, c_new), h_new
        valid = t < lens
        return ((jnp.where(valid, h_new, h), jnp.where(valid, c_new, c)),
                jnp.where(valid, h_new, 0.0))

    (hN, cN), ys = lax.scan(step, (h0, c0), t_order)
    y = ys[::-1] if reverse else ys
    return y.astype(gx.dtype), hN, cN


def _lstm_direction_scan(x_tbh, mask_tb1, wih, whh, b):
    Hd = whh.shape[0]

    def step(carry, inp):
        h, c = carry
        x_t, m = inp
        gates = x_t @ wih + h @ whh + b
        sig = jax.nn.sigmoid(gates[:, :3 * Hd])
        i_g, f_g, o_g = sig[:, :Hd], sig[:, Hd:2 * Hd], sig[:, 2 * Hd:]
        g_g = jnp.tanh(gates[:, 3 * Hd:])
        c_new = f_g * c + i_g * g_g
        h_new = o_g * jnp.tanh(c_new)
        mb = m > 0.5
        return ((jnp.where(mb, h_new, h), jnp.where(mb, c_new, c)),
                jnp.where(mb, h_new, 0.0))

    B = x_tbh.shape[1]
    init = (jnp.zeros((B, Hd), jnp.float32), jnp.zeros((B, Hd), jnp.float32))
    (hN, cN), y = lax.scan(step, init, (x_tbh, mask_tb1))
    return y, hN, cN


def encoder_forward_reference(params, src, src_lengths):
    """Direct packed bi-LSTM reference (per-sequence reversal gather)."""
    emb = params["src_embedding"][src].astype(jnp.float32)
    B, T, _ = emb.shape
    x = jnp.transpose(emb, (1, 0, 2))
    t_idx = jnp.arange(T)[:, None]
    m = (t_idx < src_lengths[None, :]).astype(jnp.float32)[:, :, None]
    y_f, h_f, c_f = _lstm_direction_scan(x, m, params["enc_wih_f"],
                                         params["enc_whh_f"], params["enc_b_f"])
    rev_t = jnp.where(t_idx < src_lengths[None, :],
                      src_lengths[None, :] - 1 - t_idx, t_idx)
    b_idx = jnp.arange(B)[None, :]
    x_rev = x[rev_t, b_idx]
    y_br, h_b, c_b = _lstm_direction_scan(x_rev, m, params["enc_wih_b"],
                                          params["enc_whh_b"], params["enc_b_b"])
    y_b = y_br[rev_t, b_idx]
    enc = jnp.transpose(jnp.concatenate([y_f, y_b], -1), (1, 0, 2))
    return enc, (jnp.stack([h_f, h_b]), jnp.stack([c_f, c_b]))


# -------------------------------- model forward --------------------------------

def encoder_forward(params, src, src_lengths, recurrence, *, dtype=jnp.float32,
                    time_chunk=None):
    """Bidirectional packed-sequence LSTM encoder.

    The input projection of each direction is one large hoisted MXU matmul over
    T*Bp rows; the Pallas kernel only runs the serial h @ W_hh recurrence.  The
    backward direction's time reversal lives entirely in the kernel's BlockSpec
    index maps (no flip/gather of the gate stream in HBM)."""
    emb = params["src_embedding"][src].astype(jnp.float32)    # (B, T, H)
    B, T, H = emb.shape
    Hd = H // 2
    Bp = _round_up(max(B, 8), 8)                               # sublane-aligned batch

    x = jnp.transpose(emb, (1, 0, 2))
    x = jnp.pad(x, ((0, 0), (0, Bp - B), (0, 0))).astype(dtype)
    lens = jnp.pad(src_lengths.astype(jnp.int32), (0, Bp - B))[:, None]   # (Bp, 1)

    xf = x.reshape(T * Bp, H)
    gx_f = (xf @ params["enc_wih_f"].astype(dtype)
            + params["enc_b_f"].astype(dtype)).reshape(T, Bp, 4 * Hd)
    gx_b = (xf @ params["enc_wih_b"].astype(dtype)
            + params["enc_b_b"].astype(dtype)).reshape(T, Bp, 4 * Hd)

    zeros = jnp.zeros((Bp, Hd), jnp.float32)
    y_f, h_f, c_f = recurrence(gx_f, params["enc_whh_f"].astype(dtype),
                               zeros, zeros, lens, reverse=False,
                               time_chunk=time_chunk)
    y_b, h_b, c_b = recurrence(gx_b, params["enc_whh_b"].astype(dtype),
                               zeros, zeros, lens, reverse=True,
                               time_chunk=time_chunk)

    enc = jnp.concatenate([y_f.astype(jnp.float32), y_b.astype(jnp.float32)],
                          axis=-1)[:, :B]                      # (T, B, H), 0 past len
    enc = jnp.transpose(enc, (1, 0, 2))                        # (B, T, H)
    hidden = jnp.stack([h_f[:B], h_b[:B]], axis=0)             # (2, B, Hd)
    cell = jnp.stack([c_f[:B], c_b[:B]], axis=0)
    return enc, (hidden, cell)


def decoder_forward(params, tgt, dec_hidden, enc_outputs, src_lengths, recurrence,
                    *, dtype=jnp.float32, time_chunk=None):
    # TODO(synk): the Decoder class source is not part of the provided spec; this
    # assumes the standard embedding -> LSTM -> Luong dot attention ->
    # tanh(W[ctx;h]) structure implied by its (tgt, hidden, encoder_outputs,
    # src_lengths) call signature.
    emb = params["dec_embedding"][tgt].astype(jnp.float32)     # (B, Tt, H)
    B, Tt, H = emb.shape
    Bp = _round_up(max(B, 8), 8)

    h_enc, c_enc = dec_hidden
    if h_enc.shape[0] == 2:            # bidirectional encoder state -> concat dirs
        h0 = jnp.concatenate([h_enc[0], h_enc[1]], axis=-1)    # (B, H)
        c0 = jnp.concatenate([c_enc[0], c_enc[1]], axis=-1)
    else:
        h0, c0 = h_enc[0], c_enc[0]
    h0 = jnp.pad(h0, ((0, Bp - B), (0, 0))).astype(jnp.float32)
    c0 = jnp.pad(c0, ((0, Bp - B), (0, 0))).astype(jnp.float32)

    x = jnp.pad(jnp.transpose(emb, (1, 0, 2)),
                ((0, 0), (0, Bp - B), (0, 0))).astype(dtype)
    gx = (x.reshape(Tt * Bp, H) @ params["dec_wih"].astype(dtype)
          + params["dec_b"].astype(dtype)).reshape(Tt, Bp, 4 * H)

    # the target runs full length -> mask-free kernel variant (lens=None)
    y, hN, cN = recurrence(gx, params["dec_whh"].astype(dtype), h0, c0, None,
                           reverse=False, time_chunk=time_chunk)
    dec_out = jnp.transpose(y[:, :B].astype(jnp.float32), (1, 0, 2))   # (B, Tt, H)

    # Luong dot attention over encoder outputs, masked by src lengths.
    Ts = enc_outputs.shape[1]
    scores = jnp.einsum("bth,bsh->bts", dec_out, enc_outputs)
    valid = jnp.arange(Ts)[None, :] < src_lengths[:, None]
    scores = jnp.where(valid[:, None, :], scores, -1e9)
    attn = jax.nn.softmax(scores, axis=-1)
    ctx = jnp.einsum("bts,bsh->bth", attn, enc_outputs)
    out = jnp.tanh(jnp.concatenate([ctx, dec_out], axis=-1) @ params["attn_out"])
    return out, (hN[:B][None], cN[:B][None])


def seq2seq_forward(params, src, src_lengths, tgt, recurrence, dec_hidden=None,
                    *, dtype=jnp.float32, time_chunk=None):
    enc_outputs, final_enc_state = encoder_forward(
        params, src, src_lengths, recurrence, dtype=dtype, time_chunk=time_chunk)
    if dec_hidden is None:
        dec_hidden = final_enc_state
    output, dec_hidden = decoder_forward(
        params, tgt, dec_hidden, enc_outputs, src_lengths, recurrence,
        dtype=dtype, time_chunk=time_chunk)
    # generator: Linear with weight tied to the decoder embedding
    logits = output @ params["dec_embedding"].T + params["gen_bias"]
    return logits, dec_hidden


# ---------------------------------- parameters ---------------------------------

def _from_torch_lstm(w_ih, w_hh, b_ih, b_hh):
    """PyTorch nn.LSTM layout ((4H,in), gates [i,f,g,o]) ->
    kernel layout ((in,4H), gates [i|f|o|g], fused bias)."""
    Hc = w_ih.shape[0] // 4
    perm = np.concatenate([np.arange(0, 2 * Hc),          # i, f
                           np.arange(3 * Hc, 4 * Hc),      # o
                           np.arange(2 * Hc, 3 * Hc)])     # g
    return (jnp.asarray(w_ih)[perm].T, jnp.asarray(w_hh)[perm].T,
            (jnp.asarray(b_ih) + jnp.asarray(b_hh))[perm][None, :])


def init_params(key, src_vocab, tgt_vocab, hidden, padding_idx=0):
    H, Hd = hidden, hidden // 2
    ks = jax.random.split(key, 16)
    be, bd = 1.0 / np.sqrt(Hd), 1.0 / np.sqrt(H)

    def u(k, shape, b):
        return jax.random.uniform(k, shape, jnp.float32, -b, b)

    src_emb = jax.random.normal(ks[0], (src_vocab, H), jnp.float32).at[padding_idx].set(0.0)
    tgt_emb = jax.random.normal(ks[1], (tgt_vocab, H), jnp.float32).at[padding_idx].set(0.0)

    # weights created in native PyTorch layout, then converted to kernel layout
    wih_f, whh_f, b_f = _from_torch_lstm(u(ks[2], (4 * Hd, H), be),
                                         u(ks[3], (4 * Hd, Hd), be),
                                         u(ks[4], (4 * Hd,), be), u(ks[5], (4 * Hd,), be))
    wih_b, whh_b, b_b = _from_torch_lstm(u(ks[6], (4 * Hd, H), be),
                                         u(ks[7], (4 * Hd, Hd), be),
                                         u(ks[8], (4 * Hd,), be), u(ks[9], (4 * Hd,), be))
    dec_wih, dec_whh, dec_b = _from_torch_lstm(u(ks[10], (4 * H, H), bd),
                                               u(ks[11], (4 * H, H), bd),
                                               u(ks[12], (4 * H,), bd), u(ks[13], (4 * H,), bd))

    attn_out = u(ks[14], (H, 2 * H), bd).T                    # (2H, H)
    gen_bias = u(ks[15], (tgt_vocab,), bd)

    # TODO(synk): dropout modules in the original encoder/decoder are never applied
    # in this inference forward path and are omitted.
    return dict(src_embedding=src_emb, dec_embedding=tgt_emb,
                enc_wih_f=wih_f, enc_whh_f=whh_f, enc_b_f=b_f,
                enc_wih_b=wih_b, enc_whh_b=whh_b, enc_b_b=b_b,
                dec_wih=dec_wih, dec_whh=dec_whh, dec_b=dec_b,
                attn_out=attn_out, gen_bias=gen_bias)


# ------------------------------------- main -------------------------------------

if __name__ == "__main__":
    src_vocab, tgt_vocab = 50, 60
    hidden = 32                        # per-direction encoder hidden = 16
    padding_idx = 0
    B, T_src, T_tgt = 2, 8, 6

    key = jax.random.PRNGKey(0)
    k_params, k_src, k_tgt = jax.random.split(key, 3)
    params = init_params(k_params, src_vocab, tgt_vocab, hidden, padding_idx)

    src_lengths_np = np.array([8, 5], dtype=np.int32)
    src_np = np.array(jax.random.randint(k_src, (B, T_src), 1, src_vocab))
    for i, L in enumerate(src_lengths_np):
        src_np[i, L:] = padding_idx
    src = jnp.asarray(src_np, jnp.int32)
    src_lengths = jnp.asarray(src_lengths_np, jnp.int32)
    tgt = jax.random.randint(k_tgt, (B, T_tgt), 1, tgt_vocab).astype(jnp.int32)

    # time_chunk=4 forces >1 time chunk so the T-grid + carry-scratch pipeline runs
    run_pallas = jax.jit(lambda p, s, sl, t: seq2seq_forward(
        p, s, sl, t, lstm_layer_pallas, time_chunk=4))
    run_ref = jax.jit(lambda p, s, sl, t: seq2seq_forward(
        p, s, sl, t, lstm_layer_ref))
    enc_pallas = jax.jit(lambda p, s, sl: encoder_forward(
        p, s, sl, lstm_layer_pallas, time_chunk=4))
    enc_pallas_bf16 = jax.jit(lambda p, s, sl: encoder_forward(
        p, s, sl, lstm_layer_pallas, dtype=jnp.bfloat16, time_chunk=4))

    logits, (h_dec, c_dec) = run_pallas(params, src, src_lengths, tgt)
    logits = jax.block_until_ready(logits)

    # --- Pallas encoder vs direct packed-sequence (per-sequence gather) reference ---
    enc_p, (hid_p, cell_p) = enc_pallas(params, src, src_lengths)
    enc_r, (hid_r, cell_r) = encoder_forward_reference(params, src, src_lengths)
    assert np.allclose(np.asarray(enc_p), np.asarray(enc_r), atol=5e-5), "encoder output mismatch"
    assert np.allclose(np.asarray(hid_p), np.asarray(hid_r), atol=5e-5), "encoder hidden mismatch"
    assert np.allclose(np.asarray(cell_p), np.asarray(cell_r), atol=5e-5), "encoder cell mismatch"

    # --- full Seq2Seq vs lax.scan reference recurrence ---
    logits_r, (h_r, c_r) = run_ref(params, src, src_lengths, tgt)
    assert np.allclose(np.asarray(logits), np.asarray(logits_r), atol=5e-4), "logits mismatch"
    assert np.allclose(np.asarray(h_dec), np.asarray(h_r), atol=5e-4), "dec hidden mismatch"
    assert np.allclose(np.asarray(c_dec), np.asarray(c_r), atol=5e-4), "dec cell mismatch"

    # --- bf16 gate-stream / W_hh production path (v6e/v7x): loose sanity check ---
    enc_bf, _ = enc_pallas_bf16(params, src, src_lengths)
    enc_bf = jax.block_until_ready(enc_bf)
    assert np.max(np.abs(np.asarray(enc_bf) - np.asarray(enc_r))) < 0.1, "bf16 encoder diverged"

    assert logits.shape == (B, T_tgt, tgt_vocab)
    assert h_dec.shape == (1, B, hidden) and c_dec.shape == (1, B, hidden)

    print("KERNEL_OK")
</pallas_src>

<mosaic_0001>
module attributes {stable_mosaic.version = 11 : i64} {
  func.func @kernel(%arg0: i32, %arg1: i32, %arg2: memref<8x1xi32, #tpu.memory_space<vmem>>, %arg3: memref<4x8x64xf32, #tpu.memory_space<vmem>>, %arg4: memref<16x64xf32, #tpu.memory_space<vmem>>, %arg5: memref<8x16xf32, #tpu.memory_space<vmem>>, %arg6: memref<8x16xf32, #tpu.memory_space<vmem>>, %arg7: memref<4x8x16xf32, #tpu.memory_space<vmem>>, %arg8: memref<8x16xf32, #tpu.memory_space<vmem>>, %arg9: memref<8x16xf32, #tpu.memory_space<vmem>>, %arg10: memref<8x16xf32, #tpu.memory_space<vmem>>, %arg11: memref<8x16xf32, #tpu.memory_space<vmem>>) attributes {dimension_semantics = [#tpu.dimension_semantics<parallel>, #tpu.dimension_semantics<arbitrary>], iteration_bounds = array<i64: 1, 2>, scalar_prefetch = 0 : i64, scratch_operands = 2 : i64, tpu.core_type = #tpu.core_type<tc>, window_params = [{transform_indices = @transform_0, window_bounds = array<i64: 8, 1>}, {transform_indices = @transform_1, window_bounds = array<i64: 4, 8, 64>}, {pipeline_mode = #tpu.pipeline_mode<synchronous>, transform_indices = @transform_2, window_bounds = array<i64: 16, 64>}, {transform_indices = @transform_3, window_bounds = array<i64: 8, 16>}, {transform_indices = @transform_4, window_bounds = array<i64: 8, 16>}, {transform_indices = @transform_5, window_bounds = array<i64: 4, 8, 16>}, {transform_indices = @transform_6, window_bounds = array<i64: 8, 16>}, {transform_indices = @transform_7, window_bounds = array<i64: 8, 16>}]} {
    %c0_i32 = arith.constant 0 : i32
    %0 = arith.cmpi eq, %arg1, %c0_i32 : i32
    %1 = arith.extui %0 : i1 to i32
    %c0_i32_0 = arith.constant 0 : i32
    %2 = arith.cmpi ne, %1, %c0_i32_0 : i32
    scf.if %2 {
      %c0_55 = arith.constant 0 : index
      %c0_56 = arith.constant 0 : index
      %179 = vector.load %arg5[%c0_55, %c0_56] : memref<8x16xf32, #tpu.memory_space<vmem>>, vector<8x16xf32>
      %c0_57 = arith.constant 0 : index
      %c0_58 = arith.constant 0 : index
      %180 = vector.load %arg10[%c0_57, %c0_58] : memref<8x16xf32, #tpu.memory_space<vmem>>, vector<8x16xf32>
      tpu.vector_store %arg10[%c0_57, %c0_58], %179 {strides = array<i32>} : memref<8x16xf32, #tpu.memory_space<vmem>>, vector<8x16xf32>,
      %c0_59 = arith.constant 0 : index
      %c0_60 = arith.constant 0 : index
      %181 = vector.load %arg6[%c0_59, %c0_60] : memref<8x16xf32, #tpu.memory_space<vmem>>, vector<8x16xf32>
      %c0_61 = arith.constant 0 : index
      %c0_62 = arith.constant 0 : index
      %182 = vector.load %arg11[%c0_61, %c0_62] : memref<8x16xf32, #tpu.memory_space<vmem>>, vector<8x16xf32>
      tpu.vector_store %arg11[%c0_61, %c0_62], %181 {strides = array<i32>} : memref<8x16xf32, #tpu.memory_space<vmem>>, vector<8x16xf32>,
    } else {
    }
    %c0 = arith.constant 0 : index
    %c0_1 = arith.constant 0 : index
    %3 = vector.load %arg4[%c0, %c0_1] : memref<16x64xf32, #tpu.memory_space<vmem>>, vector<16x64xf32>
    %c0_2 = arith.constant 0 : index
    %c0_3 = arith.constant 0 : index
    %4 = vector.load %arg2[%c0_2, %c0_3] : memref<8x1xi32, #tpu.memory_space<vmem>>, vector<8x1xi32>
    %c8_i32 = arith.constant 8 : i32
    %5 = vector.broadcast %c8_i32 : i32 to vector<8x1xi32>
    %6 = arith.subi %5, %4 : vector<8x1xi32>
    %c4_i32 = arith.constant 4 : i32
    %7 = arith.muli %arg1, %c4_i32 : i32
    %c0_4 = arith.constant 0 : index
    %c0_5 = arith.constant 0 : index
    %8 = vector.load %arg10[%c0_4, %c0_5] : memref<8x16xf32, #tpu.memory_space<vmem>>, vector<8x16xf32>
    %c0_6 = arith.constant 0 : index
    %c0_7 = arith.constant 0 : index
    %9 = vector.load %arg11[%c0_6, %c0_7] : memref<8x16xf32, #tpu.memory_space<vmem>>, vector<8x16xf32>
    %c0_i32_8 = arith.constant 0 : i32
    %c3_i32 = arith.constant 3 : i32
    %10 = arith.subi %c3_i32, %c0_i32_8 : i32
    %11 = arith.index_cast %10 : i32 to index
    %c0_9 = arith.constant 0 : index
    %c0_10 = arith.constant 0 : index
    %12 = vector.load %arg3[%11, %c0_9, %c0_10] : memref<4x8x64xf32, #tpu.memory_space<vmem>>, vector<1x8x64xf32>
    %13 = vector.shape_cast %12 : vector<1x8x64xf32> to vector<8x64xf32>
    %cst = arith.constant dense<0.000000e+00> : vector<8x64xf32>
    %14 = tpu.matmul %8, %3, %cst {dimension_numbers = #tpu.dot_dimension_numbers<[1], [0], [0], [1], [0, 0, 1, 1], [], []>} : vector<8x16xf32>, vector<16x64xf32>, vector<8x64xf32> -> vector<8x64xf32>
    %15 = arith.addf %13, %14 : vector<8x64xf32>
    %16 = vector.extract_strided_slice %15 {offsets = [0, 0], sizes = [8, 48], strides = [1, 1]} : vector<8x64xf32> to vector<8x48xf32>
    %cst_11 = arith.constant 5.000000e-01 : f32
    %17 = vector.broadcast %cst_11 : f32 to vector<8x48xf32>
    %18 = arith.mulf %17, %16 : vector<8x48xf32>
    %19 = math.tanh %18 : vector<8x48xf32>
    %cst_12 = arith.constant 5.000000e-01 : f32
    %20 = vector.broadcast %cst_12 : f32 to vector<8x48xf32>
    %21 = arith.mulf %20, %19 : vector<8x48xf32>
    %cst_13 = arith.constant 5.000000e-01 : f32
    %22 = vector.broadcast %cst_13 : f32 to vector<8x48xf32>
    %23 = arith.addf %21, %22 : vector<8x48xf32>
    %24 = vector.extract_strided_slice %23 {offsets = [0, 0], sizes = [8, 16], strides = [1, 1]} : vector<8x48xf32> to vector<8x16xf32>
    %25 = vector.extract_strided_slice %23 {offsets = [0, 16], sizes = [8, 16], strides = [1, 1]} : vector<8x48xf32> to vector<8x16xf32>
    %26 = vector.extract_strided_slice %23 {offsets = [0, 32], sizes = [8, 16], strides = [1, 1]} : vector<8x48xf32> to vector<8x16xf32>
    %27 = vector.extract_strided_slice %15 {offsets = [0, 48], sizes = [8, 16], strides = [1, 1]} : vector<8x64xf32> to vector<8x16xf32>
    %28 = math.tanh %27 : vector<8x16xf32>
    %29 = arith.mulf %25, %9 : vector<8x16xf32>
    %30 = arith.mulf %24, %28 : vector<8x16xf32>
    %31 = arith.addf %29, %30 : vector<8x16xf32>
    %32 = math.tanh %31 : vector<8x16xf32>
    %33 = arith.mulf %26, %32 : vector<8x16xf32>
    %34 = arith.addi %7, %c0_i32_8 : i32
    %35 = vector.broadcast %34 : i32 to vector<8x1xi32>
    %36 = arith.cmpi sge, %35, %6 : vector<8x1xi32>
    %cst_14 = arith.constant 0.000000e+00 : f32
    %37 = vector.shape_cast %36 : vector<8x1xi1> to vector<8x1xi1>
    %38 = vector.broadcast %37 : vector<8x1xi1> to vector<8x16xi1>
    %39 = vector.broadcast %cst_14 : f32 to vector<8x16xf32>
    %40 = arith.select %38, %33, %39 : vector<8x16xi1>, vector<8x16xf32>
    %41 = arith.index_cast %10 : i32 to index
    %c0_15 = arith.constant 0 : index
    %c0_16 = arith.constant 0 : index
    %42 = vector.load %arg7[%41, %c0_15, %c0_16] : memref<4x8x16xf32, #tpu.memory_space<vmem>>, vector<1x8x16xf32>
    %43 = vector.shape_cast %42 : vector<1x8x16xf32> to vector<8x16xf32>
    %44 = vector.shape_cast %40 : vector<8x16xf32> to vector<1x8x16xf32>
    tpu.vector_store %arg7[%41, %c0_15, %c0_16], %44 {strides = array<i32>} : memref<4x8x16xf32, #tpu.memory_space<vmem>>, vector<1x8x16xf32>,
    %45 = vector.shape_cast %36 : vector<8x1xi1> to vector<8x1xi1>
    %46 = vector.broadcast %45 : vector<8x1xi1> to vector<8x16xi1>
    %47 = arith.select %46, %33, %8 : vector<8x16xi1>, vector<8x16xf32>
    %48 = vector.shape_cast %36 : vector<8x1xi1> to vector<8x1xi1>
    %49 = vector.broadcast %48 : vector<8x1xi1> to vector<8x16xi1>
    %50 = arith.select %49, %31, %9 : vector<8x16xi1>, vector<8x16xf32>
    %c1_i32 = arith.constant 1 : i32
    %c3_i32_17 = arith.constant 3 : i32
    %51 = arith.subi %c3_i32_17, %c1_i32 : i32
    %52 = arith.index_cast %51 : i32 to index
    %c0_18 = arith.constant 0 : index
    %c0_19 = arith.constant 0 : index
    %53 = vector.load %arg3[%52, %c0_18, %c0_19] : memref<4x8x64xf32, #tpu.memory_space<vmem>>, vector<1x8x64xf32>
    %54 = vector.shape_cast %53 : vector<1x8x64xf32> to vector<8x64xf32>
    %cst_20 = arith.constant dense<0.000000e+00> : vector<8x64xf32>
    %55 = tpu.matmul %47, %3, %cst_20 {dimension_numbers = #tpu.dot_dimension_numbers<[1], [0], [0], [1], [0, 0, 1, 1], [], []>} : vector<8x16xf32>, vector<16x64xf32>, vector<8x64xf32> -> vector<8x64xf32>
    %56 = arith.addf %54, %55 : vector<8x64xf32>
    %57 = vector.extract_strided_slice %56 {offsets = [0, 0], sizes = [8, 48], strides = [1, 1]} : vector<8x64xf32> to vector<8x48xf32>
    %cst_21 = arith.constant 5.000000e-01 : f32
    %58 = vector.broadcast %cst_21 : f32 to vector<8x48xf32>
    %59 = arith.mulf %58, %57 : vector<8x48xf32>
    %60 = math.tanh %59 : vector<8x48xf32>
    %cst_22 = arith.constant 5.000000e-01 : f32
    %61 = vector.broadcast %cst_22 : f32 to vector<8x48xf32>
    %62 = arith.mulf %61, %60 : vector<8x48xf32>
    %cst_23 = arith.constant 5.000000e-01 : f32
    %63 = vector.broadcast %cst_23 : f32 to vector<8x48xf32>
    %64 = arith.addf %62, %63 : vector<8x48xf32>
    %65 = vector.extract_strided_slice %64 {offsets = [0, 0], sizes = [8, 16], strides = [1, 1]} : vector<8x48xf32> to vector<8x16xf32>
    %66 = vector.extract_strided_slice %64 {offsets = [0, 16], sizes = [8, 16], strides = [1, 1]} : vector<8x48xf32> to vector<8x16xf32>
    %67 = vector.extract_strided_slice %64 {offsets = [0, 32], sizes = [8, 16], strides = [1, 1]} : vector<8x48xf32> to vector<8x16xf32>
    %68 = vector.extract_strided_slice %56 {offsets = [0, 48], sizes = [8, 16], strides = [1, 1]} : vector<8x64xf32> to vector<8x16xf32>
    %69 = math.tanh %68 : vector<8x16xf32>
    %70 = arith.mulf %66, %50 : vector<8x16xf32>
    %71 = arith.mulf %65, %69 : vector<8x16xf32>
    %72 = arith.addf %70, %71 : vector<8x16xf32>
    %73 = math.tanh %72 : vector<8x16xf32>
    %74 = arith.mulf %67, %73 : vector<8x16xf32>
    %75 = arith.addi %7, %c1_i32 : i32
    %76 = vector.broadcast %75 : i32 to vector<8x1xi32>
    %77 = arith.cmpi sge, %76, %6 : vector<8x1xi32>
    %cst_24 = arith.constant 0.000000e+00 : f32
    %78 = vector.shape_cast %77 : vector<8x1xi1> to vector<8x1xi1>
    %79 = vector.broadcast %78 : vector<8x1xi1> to vector<8x16xi1>
    %80 = vector.broadcast %cst_24 : f32 to vector<8x16xf32>
    %81 = arith.select %79, %74, %80 : vector<8x16xi1>, vector<8x16xf32>
    %82 = arith.index_cast %51 : i32 to index
    %c0_25 = arith.constant 0 : index
    %c0_26 = arith.constant 0 : index
    %83 = vector.load %arg7[%82, %c0_25, %c0_26] : memref<4x8x16xf32, #tpu.memory_space<vmem>>, vector<1x8x16xf32>
    %84 = vector.shape_cast %83 : vector<1x8x16xf32> to vector<8x16xf32>
    %85 = vector.shape_cast %81 : vector<8x16xf32> to vector<1x8x16xf32>
    tpu.vector_store %arg7[%82, %c0_25, %c0_26], %85 {strides = array<i32>} : memref<4x8x16xf32, #tpu.memory_space<vmem>>, vector<1x8x16xf32>,
    %86 = vector.shape_cast %77 : vector<8x1xi1> to vector<8x1xi1>
    %87 = vector.broadcast %86 : vector<8x1xi1> to vector<8x16xi1>
    %88 = arith.select %87, %74, %47 : vector<8x16xi1>, vector<8x16xf32>
    %89 = vector.shape_cast %77 : vector<8x1xi1> to vector<8x1xi1>
    %90 = vector.broadcast %89 : vector<8x1xi1> to vector<8x16xi1>
    %91 = arith.select %90, %72, %50 : vector<8x16xi1>, vector<8x16xf32>
    %c2_i32 = arith.constant 2 : i32
    %c3_i32_27 = arith.constant 3 : i32
    %92 = arith.subi %c3_i32_27, %c2_i32 : i32
    %93 = arith.index_cast %92 : i32 to index
    %c0_28 = arith.constant 0 : index
    %c0_29 = arith.constant 0 : index
    %94 = vector.load %arg3[%93, %c0_28, %c0_29] : memref<4x8x64xf32, #tpu.memory_space<vmem>>, vector<1x8x64xf32>
    %95 = vector.shape_cast %94 : vector<1x8x64xf32> to vector<8x64xf32>
    %cst_30 = arith.constant dense<0.000000e+00> : vector<8x64xf32>
    %96 = tpu.matmul %88, %3, %cst_30 {dimension_numbers = #tpu.dot_dimension_numbers<[1], [0], [0], [1], [0, 0, 1, 1], [], []>} : vector<8x16xf32>, vector<16x64xf32>, vector<8x64xf32> -> vector<8x64xf32>
    %97 = arith.addf %95, %96 : vector<8x64xf32>
    %98 = vector.extract_strided_slice %97 {offsets = [0, 0], sizes = [8, 48], strides = [1, 1]} : vector<8x64xf32> to vector<8x48xf32>
    %cst_31 = arith.constant 5.000000e-01 : f32
    %99 = vector.broadcast %cst_31 : f32 to vector<8x48xf32>
    %100 = arith.mulf %99, %98 : vector<8x48xf32>
    %101 = math.tanh %100 : vector<8x48xf32>
    %cst_32 = arith.constant 5.000000e-01 : f32
    %102 = vector.broadcast %cst_32 : f32 to vector<8x48xf32>
    %103 = arith.mulf %102, %101 : vector<8x48xf32>
    %cst_33 = arith.constant 5.000000e-01 : f32
    %104 = vector.broadcast %cst_33 : f32 to vector<8x48xf32>
    %105 = arith.addf %103, %104 : vector<8x48xf32>
    %106 = vector.extract_strided_slice %105 {offsets = [0, 0], sizes = [8, 16], strides = [1, 1]} : vector<8x48xf32> to vector<8x16xf32>
    %107 = vector.extract_strided_slice %105 {offsets = [0, 16], sizes = [8, 16], strides = [1, 1]} : vector<8x48xf32> to vector<8x16xf32>
    %108 = vector.extract_strided_slice %105 {offsets = [0, 32], sizes = [8, 16], strides = [1, 1]} : vector<8x48xf32> to vector<8x16xf32>
    %109 = vector.extract_strided_slice %97 {offsets = [0, 48], sizes = [8, 16], strides = [1, 1]} : vector<8x64xf32> to vector<8x16xf32>
    %110 = math.tanh %109 : vector<8x16xf32>
    %111 = arith.mulf %107, %91 : vector<8x16xf32>
    %112 = arith.mulf %106, %110 : vector<8x16xf32>
    %113 = arith.addf %111, %112 : vector<8x16xf32>
    %114 = math.tanh %113 : vector<8x16xf32>
    %115 = arith.mulf %108, %114 : vector<8x16xf32>
    %116 = arith.addi %7, %c2_i32 : i32
    %117 = vector.broadcast %116 : i32 to vector<8x1xi32>
    %118 = arith.cmpi sge, %117, %6 : vector<8x1xi32>
    %cst_34 = arith.constant 0.000000e+00 : f32
    %119 = vector.shape_cast %118 : vector<8x1xi1> to vector<8x1xi1>
    %120 = vector.broadcast %119 : vector<8x1xi1> to vector<8x16xi1>
    %121 = vector.broadcast %cst_34 : f32 to vector<8x16xf32>
    %122 = arith.select %120, %115, %121 : vector<8x16xi1>, vector<8x16xf32>
    %123 = arith.index_cast %92 : i32 to index
    %c0_35 = arith.constant 0 : index
    %c0_36 = arith.constant 0 : index
    %124 = vector.load %arg7[%123, %c0_35, %c0_36] : memref<4x8x16xf32, #tpu.memory_space<vmem>>, vector<1x8x16xf32>
    %125 = vector.shape_cast %124 : vector<1x8x16xf32> to vector<8x16xf32>
    %126 = vector.shape_cast %122 : vector<8x16xf32> to vector<1x8x16xf32>
    tpu.vector_store %arg7[%123, %c0_35, %c0_36], %126 {strides = array<i32>} : memref<4x8x16xf32, #tpu.memory_space<vmem>>, vector<1x8x16xf32>,
    %127 = vector.shape_cast %118 : vector<8x1xi1> to vector<8x1xi1>
    %128 = vector.broadcast %127 : vector<8x1xi1> to vector<8x16xi1>
    %129 = arith.select %128, %115, %88 : vector<8x16xi1>, vector<8x16xf32>
    %130 = vector.shape_cast %118 : vector<8x1xi1> to vector<8x1xi1>
    %131 = vector.broadcast %130 : vector<8x1xi1> to vector<8x16xi1>
    %132 = arith.select %131, %113, %91 : vector<8x16xi1>, vector<8x16xf32>
    %c3_i32_37 = arith.constant 3 : i32
    %c3_i32_38 = arith.constant 3 : i32
    %133 = arith.subi %c3_i32_38, %c3_i32_37 : i32
    %134 = arith.index_cast %133 : i32 to index
    %c0_39 = arith.constant 0 : index
    %c0_40 = arith.constant 0 : index
    %135 = vector.load %arg3[%134, %c0_39, %c0_40] : memref<4x8x64xf32, #tpu.memory_space<vmem>>, vector<1x8x64xf32>
    %136 = vector.shape_cast %135 : vector<1x8x64xf32> to vector<8x64xf32>
    %cst_41 = arith.constant dense<0.000000e+00> : vector<8x64xf32>
    %137 = tpu.matmul %129, %3, %cst_41 {dimension_numbers = #tpu.dot_dimension_numbers<[1], [0], [0], [1], [0, 0, 1, 1], [], []>} : vector<8x16xf32>, vector<16x64xf32>, vector<8x64xf32> -> vector<8x64xf32>
    %138 = arith.addf %136, %137 : vector<8x64xf32>
    %139 = vector.extract_strided_slice %138 {offsets = [0, 0], sizes = [8, 48], strides = [1, 1]} : vector<8x64xf32> to vector<8x48xf32>
    %cst_42 = arith.constant 5.000000e-01 : f32
    %140 = vector.broadcast %cst_42 : f32 to vector<8x48xf32>
    %141 = arith.mulf %140, %139 : vector<8x48xf32>
    %142 = math.tanh %141 : vector<8x48xf32>
    %cst_43 = arith.constant 5.000000e-01 : f32
    %143 = vector.broadcast %cst_43 : f32 to vector<8x48xf32>
    %144 = arith.mulf %143, %142 : vector<8x48xf32>
    %cst_44 = arith.constant 5.000000e-01 : f32
    %145 = vector.broadcast %cst_44 : f32 to vector<8x48xf32>
    %146 = arith.addf %144, %145 : vector<8x48xf32>
    %147 = vector.extract_strided_slice %146 {offsets = [0, 0], sizes = [8, 16], strides = [1, 1]} : vector<8x48xf32> to vector<8x16xf32>
    %148 = vector.extract_strided_slice %146 {offsets = [0, 16], sizes = [8, 16], strides = [1, 1]} : vector<8x48xf32> to vector<8x16xf32>
    %149 = vector.extract_strided_slice %146 {offsets = [0, 32], sizes = [8, 16], strides = [1, 1]} : vector<8x48xf32> to vector<8x16xf32>
    %150 = vector.extract_strided_slice %138 {offsets = [0, 48], sizes = [8, 16], strides = [1, 1]} : vector<8x64xf32> to vector<8x16xf32>
    %151 = math.tanh %150 : vector<8x16xf32>
    %152 = arith.mulf %148, %132 : vector<8x16xf32>
    %153 = arith.mulf %147, %151 : vector<8x16xf32>
    %154 = arith.addf %152, %153 : vector<8x16xf32>
    %155 = math.tanh %154 : vector<8x16xf32>
    %156 = arith.mulf %149, %155 : vector<8x16xf32>
    %157 = arith.addi %7, %c3_i32_37 : i32
    %158 = vector.broadcast %157 : i32 to vector<8x1xi32>
    %159 = arith.cmpi sge, %158, %6 : vector<8x1xi32>
    %cst_45 = arith.constant 0.000000e+00 : f32
    %160 = vector.shape_cast %159 : vector<8x1xi1> to vector<8x1xi1>
    %161 = vector.broadcast %160 : vector<8x1xi1> to vector<8x16xi1>
    %162 = vector.broadcast %cst_45 : f32 to vector<8x16xf32>
    %163 = arith.select %161, %156, %162 : vector<8x16xi1>, vector<8x16xf32>
    %164 = arith.index_cast %133 : i32 to index
    %c0_46 = arith.constant 0 : index
    %c0_47 = arith.constant 0 : index
    %165 = vector.load %arg7[%164, %c0_46, %c0_47] : memref<4x8x16xf32, #tpu.memory_space<vmem>>, vector<1x8x16xf32>
    %166 = vector.shape_cast %165 : vector<1x8x16xf32> to vector<8x16xf32>
    %167 = vector.shape_cast %163 : vector<8x16xf32> to vector<1x8x16xf32>
    tpu.vector_store %arg7[%164, %c0_46, %c0_47], %167 {strides = array<i32>} : memref<4x8x16xf32, #tpu.memory_space<vmem>>, vector<1x8x16xf32>,
    %168 = vector.shape_cast %159 : vector<8x1xi1> to vector<8x1xi1>
    %169 = vector.broadcast %168 : vector<8x1xi1> to vector<8x16xi1>
    %170 = arith.select %169, %156, %129 : vector<8x16xi1>, vector<8x16xf32>
    %171 = vector.shape_cast %159 : vector<8x1xi1> to vector<8x1xi1>
    %172 = vector.broadcast %171 : vector<8x1xi1> to vector<8x16xi1>
    %173 = arith.select %172, %154, %132 : vector<8x16xi1>, vector<8x16xf32>
    %c4_i32_48 = arith.constant 4 : i32
    %c0_49 = arith.constant 0 : index
    %c0_50 = arith.constant 0 : index
    %174 = vector.load %arg10[%c0_49, %c0_50] : memref<8x16xf32, #tpu.memory_space<vmem>>, vector<8x16xf32>
    tpu.vector_store %arg10[%c0_49, %c0_50], %170 {strides = array<i32>} : memref<8x16xf32, #tpu.memory_space<vmem>>, vector<8x16xf32>,
    %c0_51 = arith.constant 0 : index
    %c0_52 = arith.constant 0 : index
    %175 = vector.load %arg11[%c0_51, %c0_52] : memref<8x16xf32, #tpu.memory_space<vmem>>, vector<8x16xf32>
    tpu.vector_store %arg11[%c0_51, %c0_52], %173 {strides = array<i32>} : memref<8x16xf32, #tpu.memory_space<vmem>>, vector<8x16xf32>,
    %c1_i32_53 = arith.constant 1 : i32
    %176 = arith.cmpi eq, %arg1, %c1_i32_53 : i32
    %177 = arith.extui %176 : i1 to i32
    %c0_i32_54 = arith.constant 0 : i32
    %178 = arith.cmpi ne, %177, %c0_i32_54 : i32
    scf.if %178 {
      %c0_55 = arith.constant 0 : index
      %c0_56 = arith.constant 0 : index
      %179 = vector.load %arg8[%c0_55, %c0_56] : memref<8x16xf32, #tpu.memory_space<vmem>>, vector<8x16xf32>
      tpu.vector_store %arg8[%c0_55, %c0_56], %170 {strides = array<i32>} : memref<8x16xf32, #tpu.memory_space<vmem>>, vector<8x16xf32>,
      %c0_57 = arith.constant 0 : index
      %c0_58 = arith.constant 0 : index
      %180 = vector.load %arg9[%c0_57, %c0_58] : memref<8x16xf32, #tpu.memory_space<vmem>>, vector<8x16xf32>
      tpu.vector_store %arg9[%c0_57, %c0_58], %173 {strides = array<i32>} : memref<8x16xf32, #tpu.memory_space<vmem>>, vector<8x16xf32>,
    } else {
    }
    return
  }
  func.func @transform_0(%arg0: i32, %arg1: i32) -> (i32, i32) {
    %c0_i32 = arith.constant 0 : i32
    %c0_i32_0 = arith.constant 0 : i32
    return %arg0, %c0_i32 : i32, i32
  }
  func.func @transform_1(%arg0: i32, %arg1: i32) -> (i32, i32, i32) {
    %c1_i32 = arith.constant 1 : i32
    %0 = arith.subi %c1_i32, %arg1 : i32
    %c0_i32 = arith.constant 0 : i32
    %c0_i32_0 = arith.constant 0 : i32
    return %0, %arg0, %c0_i32 : i32, i32, i32
  }
  func.func @transform_2(%arg0: i32, %arg1: i32) -> (i32, i32) {
    %c0_i32 = arith.constant 0 : i32
    %c0_i32_0 = arith.constant 0 : i32
    %c0_i32_1 = arith.constant 0 : i32
    return %c0_i32, %c0_i32_0 : i32, i32
  }
  func.func @transform_3(%arg0: i32, %arg1: i32) -> (i32, i32) {
    %c0_i32 = arith.constant 0 : i32
    %c0_i32_0 = arith.constant 0 : i32
    return %arg0, %c0_i32 : i32, i32
  }
  func.func @transform_4(%arg0: i32, %arg1: i32) -> (i32, i32) {
    %c0_i32 = arith.constant 0 : i32
    %c0_i32_0 = arith.constant 0 : i32
    return %arg0, %c0_i32 : i32, i32
  }
  func.func @transform_5(%arg0: i32, %arg1: i32) -> (i32, i32, i32) {
    %c1_i32 = arith.constant 1 : i32
    %0 = arith.subi %c1_i32, %arg1 : i32
    %c0_i32 = arith.constant 0 : i32
    %c0_i32_0 = arith.constant 0 : i32
    return %0, %arg0, %c0_i32 : i32, i32, i32
  }
  func.func @transform_6(%arg0: i32, %arg1: i32) -> (i32, i32) {
    %c0_i32 = arith.constant 0 : i32
    %c0_i32_0 = arith.constant 0 : i32
    return %arg0, %c0_i32 : i32, i32
  }
  func.func @transform_7(%arg0: i32, %arg1: i32) -> (i32, i32) {
    %c0_i32 = arith.constant 0 : i32
    %c0_i32_0 = arith.constant 0 : i32
    return %arg0, %c0_i32 : i32, i32
  }
}

module attributes {stable_mosaic.version = 11 : i64} {
  func.func @kernel(%arg0: i32, %arg1: i32, %arg2: memref<8x1xi32, #tpu.memory_space<vmem>>, %arg3: memref<4x8x64xf32, #tpu.memory_space<vmem>>, %arg4: memref<16x64xf32, #tpu.memory_space<vmem>>, %arg5: memref<8x16xf32, #tpu.memory_space<vmem>>, %arg6: memref<8x16xf32, #tpu.memory_space<vmem>>, %arg7: memref<4x8x16xf32, #tpu.memory_space<vmem>>, %arg8: memref<8x16xf32, #tpu.memory_space<vmem>>, %arg9: memref<8x16xf32, #tpu.memory_space<vmem>>, %arg10: memref<8x16xf32, #tpu.memory_space<vmem>>, %arg11: memref<8x16xf32, #tpu.memory_space<vmem>>) attributes {dimension_semantics = [#tpu.dimension_semantics<parallel>, #tpu.dimension_semantics<arbitrary>], iteration_bounds = array<i64: 1, 2>, scalar_prefetch = 0 : i64, scratch_operands = 2 : i64, tpu.core_type = #tpu.core_type<tc>, window_params = [{transform_indices = @transform_0, window_bounds = array<i64: 8, 1>}, {transform_indices = @transform_1, window_bounds = array<i64: 4, 8, 64>}, {pipeline_mode = #tpu.pipeline_mode<synchronous>, transform_indices = @transform_2, window_bounds = array<i64: 16, 64>}, {transform_indices = @transform_3, window_bounds = array<i64: 8, 16>}, {transform_indices = @transform_4, window_bounds = array<i64: 8, 16>}, {transform_indices = @transform_5, window_bounds = array<i64: 4, 8, 16>}, {transform_indices = @transform_6, window_bounds = array<i64: 8, 16>}, {transform_indices = @transform_7, window_bounds = array<i64: 8, 16>}]} {
    %c0_i32 = arith.constant 0 : i32
    %0 = arith.cmpi eq, %arg1, %c0_i32 : i32
    %1 = arith.extui %0 : i1 to i32
    %c0_i32_0 = arith.constant 0 : i32
    %2 = arith.cmpi ne, %1, %c0_i32_0 : i32
    scf.if %2 {
      %c0_51 = arith.constant 0 : index
      %c0_52 = arith.constant 0 : index
      %173 = vector.load %arg5[%c0_51, %c0_52] : memref<8x16xf32, #tpu.memory_space<vmem>>, vector<8x16xf32>
      %c0_53 = arith.constant 0 : index
      %c0_54 = arith.constant 0 : index
      %174 = vector.load %arg10[%c0_53, %c0_54] : memref<8x16xf32, #tpu.memory_space<vmem>>, vector<8x16xf32>
      tpu.vector_store %arg10[%c0_53, %c0_54], %173 {strides = array<i32>} : memref<8x16xf32, #tpu.memory_space<vmem>>, vector<8x16xf32>,
      %c0_55 = arith.constant 0 : index
      %c0_56 = arith.constant 0 : index
      %175 = vector.load %arg6[%c0_55, %c0_56] : memref<8x16xf32, #tpu.memory_space<vmem>>, vector<8x16xf32>
      %c0_57 = arith.constant 0 : index
      %c0_58 = arith.constant 0 : index
      %176 = vector.load %arg11[%c0_57, %c0_58] : memref<8x16xf32, #tpu.memory_space<vmem>>, vector<8x16xf32>
      tpu.vector_store %arg11[%c0_57, %c0_58], %175 {strides = array<i32>} : memref<8x16xf32, #tpu.memory_space<vmem>>, vector<8x16xf32>,
    } else {
    }
    %c0 = arith.constant 0 : index
    %c0_1 = arith.constant 0 : index
    %3 = vector.load %arg4[%c0, %c0_1] : memref<16x64xf32, #tpu.memory_space<vmem>>, vector<16x64xf32>
    %c0_2 = arith.constant 0 : index
    %c0_3 = arith.constant 0 : index
    %4 = vector.load %arg2[%c0_2, %c0_3] : memref<8x1xi32, #tpu.memory_space<vmem>>, vector<8x1xi32>
    %c4_i32 = arith.constant 4 : i32
    %5 = arith.muli %arg1, %c4_i32 : i32
    %c0_4 = arith.constant 0 : index
    %c0_5 = arith.constant 0 : index
    %6 = vector.load %arg10[%c0_4, %c0_5] : memref<8x16xf32, #tpu.memory_space<vmem>>, vector<8x16xf32>
    %c0_6 = arith.constant 0 : index
    %c0_7 = arith.constant 0 : index
    %7 = vector.load %arg11[%c0_6, %c0_7] : memref<8x16xf32, #tpu.memory_space<vmem>>, vector<8x16xf32>
    %c0_i32_8 = arith.constant 0 : i32
    %8 = arith.index_cast %c0_i32_8 : i32 to index
    %c0_9 = arith.constant 0 : index
    %c0_10 = arith.constant 0 : index
    %9 = vector.load %arg3[%8, %c0_9, %c0_10] : memref<4x8x64xf32, #tpu.memory_space<vmem>>, vector<1x8x64xf32>
    %10 = vector.shape_cast %9 : vector<1x8x64xf32> to vector<8x64xf32>
    %cst = arith.constant dense<0.000000e+00> : vector<8x64xf32>
    %11 = tpu.matmul %6, %3, %cst {dimension_numbers = #tpu.dot_dimension_numbers<[1], [0], [0], [1], [0, 0, 1, 1], [], []>} : vector<8x16xf32>, vector<16x64xf32>, vector<8x64xf32> -> vector<8x64xf32>
    %12 = arith.addf %10, %11 : vector<8x64xf32>
    %13 = vector.extract_strided_slice %12 {offsets = [0, 0], sizes = [8, 48], strides = [1, 1]} : vector<8x64xf32> to vector<8x48xf32>
    %cst_11 = arith.constant 5.000000e-01 : f32
    %14 = vector.broadcast %cst_11 : f32 to vector<8x48xf32>
    %15 = arith.mulf %14, %13 : vector<8x48xf32>
    %16 = math.tanh %15 : vector<8x48xf32>
    %cst_12 = arith.constant 5.000000e-01 : f32
    %17 = vector.broadcast %cst_12 : f32 to vector<8x48xf32>
    %18 = arith.mulf %17, %16 : vector<8x48xf32>
    %cst_13 = arith.constant 5.000000e-01 : f32
    %19 = vector.broadcast %cst_13 : f32 to vector<8x48xf32>
    %20 = arith.addf %18, %19 : vector<8x48xf32>
    %21 = vector.extract_strided_slice %20 {offsets = [0, 0], sizes = [8, 16], strides = [1, 1]} : vector<8x48xf32> to vector<8x16xf32>
    %22 = vector.extract_strided_slice %20 {offsets = [0, 16], sizes = [8, 16], strides = [1, 1]} : vector<8x48xf32> to vector<8x16xf32>
    %23 = vector.extract_strided_slice %20 {offsets = [0, 32], sizes = [8, 16], strides = [1, 1]} : vector<8x48xf32> to vector<8x16xf32>
    %24 = vector.extract_strided_slice %12 {offsets = [0, 48], sizes = [8, 16], strides = [1, 1]} : vector<8x64xf32> to vector<8x16xf32>
    %25 = math.tanh %24 : vector<8x16xf32>
    %26 = arith.mulf %22, %7 : vector<8x16xf32>
    %27 = arith.mulf %21, %25 : vector<8x16xf32>
    %28 = arith.addf %26, %27 : vector<8x16xf32>
    %29 = math.tanh %28 : vector<8x16xf32>
    %30 = arith.mulf %23, %29 : vector<8x16xf32>
    %31 = arith.addi %5, %c0_i32_8 : i32
    %32 = vector.broadcast %31 : i32 to vector<8x1xi32>
    %33 = arith.cmpi slt, %32, %4 : vector<8x1xi32>
    %cst_14 = arith.constant 0.000000e+00 : f32
    %34 = vector.shape_cast %33 : vector<8x1xi1> to vector<8x1xi1>
    %35 = vector.broadcast %34 : vector<8x1xi1> to vector<8x16xi1>
    %36 = vector.broadcast %cst_14 : f32 to vector<8x16xf32>
    %37 = arith.select %35, %30, %36 : vector<8x16xi1>, vector<8x16xf32>
    %38 = arith.index_cast %c0_i32_8 : i32 to index
    %c0_15 = arith.constant 0 : index
    %c0_16 = arith.constant 0 : index
    %39 = vector.load %arg7[%38, %c0_15, %c0_16] : memref<4x8x16xf32, #tpu.memory_space<vmem>>, vector<1x8x16xf32>
    %40 = vector.shape_cast %39 : vector<1x8x16xf32> to vector<8x16xf32>
    %41 = vector.shape_cast %37 : vector<8x16xf32> to vector<1x8x16xf32>
    tpu.vector_store %arg7[%38, %c0_15, %c0_16], %41 {strides = array<i32>} : memref<4x8x16xf32, #tpu.memory_space<vmem>>, vector<1x8x16xf32>,
    %42 = vector.shape_cast %33 : vector<8x1xi1> to vector<8x1xi1>
    %43 = vector.broadcast %42 : vector<8x1xi1> to vector<8x16xi1>
    %44 = arith.select %43, %30, %6 : vector<8x16xi1>, vector<8x16xf32>
    %45 = vector.shape_cast %33 : vector<8x1xi1> to vector<8x1xi1>
    %46 = vector.broadcast %45 : vector<8x1xi1> to vector<8x16xi1>
    %47 = arith.select %46, %28, %7 : vector<8x16xi1>, vector<8x16xf32>
    %c1_i32 = arith.constant 1 : i32
    %48 = arith.index_cast %c1_i32 : i32 to index
    %c0_17 = arith.constant 0 : index
    %c0_18 = arith.constant 0 : index
    %49 = vector.load %arg3[%48, %c0_17, %c0_18] : memref<4x8x64xf32, #tpu.memory_space<vmem>>, vector<1x8x64xf32>
    %50 = vector.shape_cast %49 : vector<1x8x64xf32> to vector<8x64xf32>
    %cst_19 = arith.constant dense<0.000000e+00> : vector<8x64xf32>
    %51 = tpu.matmul %44, %3, %cst_19 {dimension_numbers = #tpu.dot_dimension_numbers<[1], [0], [0], [1], [0, 0, 1, 1], [], []>} : vector<8x16xf32>, vector<16x64xf32>, vector<8x64xf32> -> vector<8x64xf32>
    %52 = arith.addf %50, %51 : vector<8x64xf32>
    %53 = vector.extract_strided_slice %52 {offsets = [0, 0], sizes = [8, 48], strides = [1, 1]} : vector<8x64xf32> to vector<8x48xf32>
    %cst_20 = arith.constant 5.000000e-01 : f32
    %54 = vector.broadcast %cst_20 : f32 to vector<8x48xf32>
    %55 = arith.mulf %54, %53 : vector<8x48xf32>
    %56 = math.tanh %55 : vector<8x48xf32>
    %cst_21 = arith.constant 5.000000e-01 : f32
    %57 = vector.broadcast %cst_21 : f32 to vector<8x48xf32>
    %58 = arith.mulf %57, %56 : vector<8x48xf32>
    %cst_22 = arith.constant 5.000000e-01 : f32
    %59 = vector.broadcast %cst_22 : f32 to vector<8x48xf32>
    %60 = arith.addf %58, %59 : vector<8x48xf32>
    %61 = vector.extract_strided_slice %60 {offsets = [0, 0], sizes = [8, 16], strides = [1, 1]} : vector<8x48xf32> to vector<8x16xf32>
    %62 = vector.extract_strided_slice %60 {offsets = [0, 16], sizes = [8, 16], strides = [1, 1]} : vector<8x48xf32> to vector<8x16xf32>
    %63 = vector.extract_strided_slice %60 {offsets = [0, 32], sizes = [8, 16], strides = [1, 1]} : vector<8x48xf32> to vector<8x16xf32>
    %64 = vector.extract_strided_slice %52 {offsets = [0, 48], sizes = [8, 16], strides = [1, 1]} : vector<8x64xf32> to vector<8x16xf32>
    %65 = math.tanh %64 : vector<8x16xf32>
    %66 = arith.mulf %62, %47 : vector<8x16xf32>
    %67 = arith.mulf %61, %65 : vector<8x16xf32>
    %68 = arith.addf %66, %67 : vector<8x16xf32>
    %69 = math.tanh %68 : vector<8x16xf32>
    %70 = arith.mulf %63, %69 : vector<8x16xf32>
    %71 = arith.addi %5, %c1_i32 : i32
    %72 = vector.broadcast %71 : i32 to vector<8x1xi32>
    %73 = arith.cmpi slt, %72, %4 : vector<8x1xi32>
    %cst_23 = arith.constant 0.000000e+00 : f32
    %74 = vector.shape_cast %73 : vector<8x1xi1> to vector<8x1xi1>
    %75 = vector.broadcast %74 : vector<8x1xi1> to vector<8x16xi1>
    %76 = vector.broadcast %cst_23 : f32 to vector<8x16xf32>
    %77 = arith.select %75, %70, %76 : vector<8x16xi1>, vector<8x16xf32>
    %78 = arith.index_cast %c1_i32 : i32 to index
    %c0_24 = arith.constant 0 : index
    %c0_25 = arith.constant 0 : index
    %79 = vector.load %arg7[%78, %c0_24, %c0_25] : memref<4x8x16xf32, #tpu.memory_space<vmem>>, vector<1x8x16xf32>
    %80 = vector.shape_cast %79 : vector<1x8x16xf32> to vector<8x16xf32>
    %81 = vector.shape_cast %77 : vector<8x16xf32> to vector<1x8x16xf32>
    tpu.vector_store %arg7[%78, %c0_24, %c0_25], %81 {strides = array<i32>} : memref<4x8x16xf32, #tpu.memory_space<vmem>>, vector<1x8x16xf32>,
    %82 = vector.shape_cast %73 : vector<8x1xi1> to vector<8x1xi1>
    %83 = vector.broadcast %82 : vector<8x1xi1> to vector<8x16xi1>
    %84 = arith.select %83, %70, %44 : vector<8x16xi1>, vector<8x16xf32>
    %85 = vector.shape_cast %73 : vector<8x1xi1> to vector<8x1xi1>
    %86 = vector.broadcast %85 : vector<8x1xi1> to vector<8x16xi1>
    %87 = arith.select %86, %68, %47 : vector<8x16xi1>, vector<8x16xf32>
    %c2_i32 = arith.constant 2 : i32
    %88 = arith.index_cast %c2_i32 : i32 to index
    %c0_26 = arith.constant 0 : index
    %c0_27 = arith.constant 0 : index
    %89 = vector.load %arg3[%88, %c0_26, %c0_27] : memref<4x8x64xf32, #tpu.memory_space<vmem>>, vector<1x8x64xf32>
    %90 = vector.shape_cast %89 : vector<1x8x64xf32> to vector<8x64xf32>
    %cst_28 = arith.constant dense<0.000000e+00> : vector<8x64xf32>
    %91 = tpu.matmul %84, %3, %cst_28 {dimension_numbers = #tpu.dot_dimension_numbers<[1], [0], [0], [1], [0, 0, 1, 1], [], []>} : vector<8x16xf32>, vector<16x64xf32>, vector<8x64xf32> -> vector<8x64xf32>
    %92 = arith.addf %90, %91 : vector<8x64xf32>
    %93 = vector.extract_strided_slice %92 {offsets = [0, 0], sizes = [8, 48], strides = [1, 1]} : vector<8x64xf32> to vector<8x48xf32>
    %cst_29 = arith.constant 5.000000e-01 : f32
    %94 = vector.broadcast %cst_29 : f32 to vector<8x48xf32>
    %95 = arith.mulf %94, %93 : vector<8x48xf32>
    %96 = math.tanh %95 : vector<8x48xf32>
    %cst_30 = arith.constant 5.000000e-01 : f32
    %97 = vector.broadcast %cst_30 : f32 to vector<8x48xf32>
    %98 = arith.mulf %97, %96 : vector<8x48xf32>
    %cst_31 = arith.constant 5.000000e-01 : f32
    %99 = vector.broadcast %cst_31 : f32 to vector<8x48xf32>
    %100 = arith.addf %98, %99 : vector<8x48xf32>
    %101 = vector.extract_strided_slice %100 {offsets = [0, 0], sizes = [8, 16], strides = [1, 1]} : vector<8x48xf32> to vector<8x16xf32>
    %102 = vector.extract_strided_slice %100 {offsets = [0, 16], sizes = [8, 16], strides = [1, 1]} : vector<8x48xf32> to vector<8x16xf32>
    %103 = vector.extract_strided_slice %100 {offsets = [0, 32], sizes = [8, 16], strides = [1, 1]} : vector<8x48xf32> to vector<8x16xf32>
    %104 = vector.extract_strided_slice %92 {offsets = [0, 48], sizes = [8, 16], strides = [1, 1]} : vector<8x64xf32> to vector<8x16xf32>
    %105 = math.tanh %104 : vector<8x16xf32>
    %106 = arith.mulf %102, %87 : vector<8x16xf32>
    %107 = arith.mulf %101, %105 : vector<8x16xf32>
    %108 = arith.addf %106, %107 : vector<8x16xf32>
    %109 = math.tanh %108 : vector<8x16xf32>
    %110 = arith.mulf %103, %109 : vector<8x16xf32>
    %111 = arith.addi %5, %c2_i32 : i32
    %112 = vector.broadcast %111 : i32 to vector<8x1xi32>
    %113 = arith.cmpi slt, %112, %4 : vector<8x1xi32>
    %cst_32 = arith.constant 0.000000e+00 : f32
    %114 = vector.shape_cast %113 : vector<8x1xi1> to vector<8x1xi1>
    %115 = vector.broadcast %114 : vector<8x1xi1> to vector<8x16xi1>
    %116 = vector.broadcast %cst_32 : f32 to vector<8x16xf32>
    %117 = arith.select %115, %110, %116 : vector<8x16xi1>, vector<8x16xf32>
    %118 = arith.index_cast %c2_i32 : i32 to index
    %c0_33 = arith.constant 0 : index
    %c0_34 = arith.constant 0 : index
    %119 = vector.load %arg7[%118, %c0_33, %c0_34] : memref<4x8x16xf32, #tpu.memory_space<vmem>>, vector<1x8x16xf32>
    %120 = vector.shape_cast %119 : vector<1x8x16xf32> to vector<8x16xf32>
    %121 = vector.shape_cast %117 : vector<8x16xf32> to vector<1x8x16xf32>
    tpu.vector_store %arg7[%118, %c0_33, %c0_34], %121 {strides = array<i32>} : memref<4x8x16xf32, #tpu.memory_space<vmem>>, vector<1x8x16xf32>,
    %122 = vector.shape_cast %113 : vector<8x1xi1> to vector<8x1xi1>
    %123 = vector.broadcast %122 : vector<8x1xi1> to vector<8x16xi1>
    %124 = arith.select %123, %110, %84 : vector<8x16xi1>, vector<8x16xf32>
    %125 = vector.shape_cast %113 : vector<8x1xi1> to vector<8x1xi1>
    %126 = vector.broadcast %125 : vector<8x1xi1> to vector<8x16xi1>
    %127 = arith.select %126, %108, %87 : vector<8x16xi1>, vector<8x16xf32>
    %c3_i32 = arith.constant 3 : i32
    %128 = arith.index_cast %c3_i32 : i32 to index
    %c0_35 = arith.constant 0 : index
    %c0_36 = arith.constant 0 : index
    %129 = vector.load %arg3[%128, %c0_35, %c0_36] : memref<4x8x64xf32, #tpu.memory_space<vmem>>, vector<1x8x64xf32>
    %130 = vector.shape_cast %129 : vector<1x8x64xf32> to vector<8x64xf32>
    %cst_37 = arith.constant dense<0.000000e+00> : vector<8x64xf32>
    %131 = tpu.matmul %124, %3, %cst_37 {dimension_numbers = #tpu.dot_dimension_numbers<[1], [0], [0], [1], [0, 0, 1, 1], [], []>} : vector<8x16xf32>, vector<16x64xf32>, vector<8x64xf32> -> vector<8x64xf32>
    %132 = arith.addf %130, %131 : vector<8x64xf32>
    %133 = vector.extract_strided_slice %132 {offsets = [0, 0], sizes = [8, 48], strides = [1, 1]} : vector<8x64xf32> to vector<8x48xf32>
    %cst_38 = arith.constant 5.000000e-01 : f32
    %134 = vector.broadcast %cst_38 : f32 to vector<8x48xf32>
    %135 = arith.mulf %134, %133 : vector<8x48xf32>
    %136 = math.tanh %135 : vector<8x48xf32>
    %cst_39 = arith.constant 5.000000e-01 : f32
    %137 = vector.broadcast %cst_39 : f32 to vector<8x48xf32>
    %138 = arith.mulf %137, %136 : vector<8x48xf32>
    %cst_40 = arith.constant 5.000000e-01 : f32
    %139 = vector.broadcast %cst_40 : f32 to vector<8x48xf32>
    %140 = arith.addf %138, %139 : vector<8x48xf32>
    %141 = vector.extract_strided_slice %140 {offsets = [0, 0], sizes = [8, 16], strides = [1, 1]} : vector<8x48xf32> to vector<8x16xf32>
    %142 = vector.extract_strided_slice %140 {offsets = [0, 16], sizes = [8, 16], strides = [1, 1]} : vector<8x48xf32> to vector<8x16xf32>
    %143 = vector.extract_strided_slice %140 {offsets = [0, 32], sizes = [8, 16], strides = [1, 1]} : vector<8x48xf32> to vector<8x16xf32>
    %144 = vector.extract_strided_slice %132 {offsets = [0, 48], sizes = [8, 16], strides = [1, 1]} : vector<8x64xf32> to vector<8x16xf32>
    %145 = math.tanh %144 : vector<8x16xf32>
    %146 = arith.mulf %142, %127 : vector<8x16xf32>
    %147 = arith.mulf %141, %145 : vector<8x16xf32>
    %148 = arith.addf %146, %147 : vector<8x16xf32>
    %149 = math.tanh %148 : vector<8x16xf32>
    %150 = arith.mulf %143, %149 : vector<8x16xf32>
    %151 = arith.addi %5, %c3_i32 : i32
    %152 = vector.broadcast %151 : i32 to vector<8x1xi32>
    %153 = arith.cmpi slt, %152, %4 : vector<8x1xi32>
    %cst_41 = arith.constant 0.000000e+00 : f32
    %154 = vector.shape_cast %153 : vector<8x1xi1> to vector<8x1xi1>
    %155 = vector.broadcast %154 : vector<8x1xi1> to vector<8x16xi1>
    %156 = vector.broadcast %cst_41 : f32 to vector<8x16xf32>
    %157 = arith.select %155, %150, %156 : vector<8x16xi1>, vector<8x16xf32>
    %158 = arith.index_cast %c3_i32 : i32 to index
    %c0_42 = arith.constant 0 : index
    %c0_43 = arith.constant 0 : index
    %159 = vector.load %arg7[%158, %c0_42, %c0_43] : memref<4x8x16xf32, #tpu.memory_space<vmem>>, vector<1x8x16xf32>
    %160 = vector.shape_cast %159 : vector<1x8x16xf32> to vector<8x16xf32>
    %161 = vector.shape_cast %157 : vector<8x16xf32> to vector<1x8x16xf32>
    tpu.vector_store %arg7[%158, %c0_42, %c0_43], %161 {strides = array<i32>} : memref<4x8x16xf32, #tpu.memory_space<vmem>>, vector<1x8x16xf32>,
    %162 = vector.shape_cast %153 : vector<8x1xi1> to vector<8x1xi1>
    %163 = vector.broadcast %162 : vector<8x1xi1> to vector<8x16xi1>
    %164 = arith.select %163, %150, %124 : vector<8x16xi1>, vector<8x16xf32>
    %165 = vector.shape_cast %153 : vector<8x1xi1> to vector<8x1xi1>
    %166 = vector.broadcast %165 : vector<8x1xi1> to vector<8x16xi1>
    %167 = arith.select %166, %148, %127 : vector<8x16xi1>, vector<8x16xf32>
    %c4_i32_44 = arith.constant 4 : i32
    %c0_45 = arith.constant 0 : index
    %c0_46 = arith.constant 0 : index
    %168 = vector.load %arg10[%c0_45, %c0_46] : memref<8x16xf32, #tpu.memory_space<vmem>>, vector<8x16xf32>
    tpu.vector_store %arg10[%c0_45, %c0_46], %164 {strides = array<i32>} : memref<8x16xf32, #tpu.memory_space<vmem>>, vector<8x16xf32>,
    %c0_47 = arith.constant 0 : index
    %c0_48 = arith.constant 0 : index
    %169 = vector.load %arg11[%c0_47, %c0_48] : memref<8x16xf32, #tpu.memory_space<vmem>>, vector<8x16xf32>
    tpu.vector_store %arg11[%c0_47, %c0_48], %167 {strides = array<i32>} : memref<8x16xf32, #tpu.memory_space<vmem>>, vector<8x16xf32>,
    %c1_i32_49 = arith.constant 1 : i32
    %170 = arith.cmpi eq, %arg1, %c1_i32_49 : i32
    %171 = arith.extui %170 : i1 to i32
    %c0_i32_50 = arith.constant 0 : i32
    %172 = arith.cmpi ne, %171, %c0_i32_50 : i32
    scf.if %172 {
      %c0_51 = arith.constant 0 : index
      %c0_52 = arith.constant 0 : index
      %173 = vector.load %arg8[%c0_51, %c0_52] : memref<8x16xf32, #tpu.memory_space<vmem>>, vector<8x16xf32>
      tpu.vector_store %arg8[%c0_51, %c0_52], %164 {strides = array<i32>} : memref<8x16xf32, #tpu.memory_space<vmem>>, vector<8x16xf32>,
      %c0_53 = arith.constant 0 : index
      %c0_54 = arith.constant 0 : index
      %174 = vector.load %arg9[%c0_53, %c0_54] : memref<8x16xf32, #tpu.memory_space<vmem>>, vector<8x16xf32>
      tpu.vector_store %arg9[%c0_53, %c0_54], %167 {strides = array<i32>} : memref<8x16xf32, #tpu.memory_space<vmem>>, vector<8x16xf32>,
    } else {
    }
    return
  }
  func.func @transform_0(%arg0: i32, %arg1: i32) -> (i32, i32) {
    %c0_i32 = arith.constant 0 : i32
    %c0_i32_0 = arith.constant 0 : i32
    return %arg0, %c0_i32 : i32, i32
  }
  func.func @transform_1(%arg0: i32, %arg1: i32) -> (i32, i32, i32) {
    %c0_i32 = arith.constant 0 : i32
    %c0_i32_0 = arith.constant 0 : i32
    return %arg1, %arg0, %c0_i32 : i32, i32, i32
  }
  func.func @transform_2(%arg0: i32, %arg1: i32) -> (i32, i32) {
    %c0_i32 = arith.constant 0 : i32
    %c0_i32_0 = arith.constant 0 : i32
    %c0_i32_1 = arith.constant 0 : i32
    return %c0_i32, %c0_i32_0 : i32, i32
  }
  func.func @transform_3(%arg0: i32, %arg1: i32) -> (i32, i32) {
    %c0_i32 = arith.constant 0 : i32
    %c0_i32_0 = arith.constant 0 : i32
    return %arg0, %c0_i32 : i32, i32
  }
  func.func @transform_4(%arg0: i32, %arg1: i32) -> (i32, i32) {
    %c0_i32 = arith.constant 0 : i32
    %c0_i32_0 = arith.constant 0 : i32
    return %arg0, %c0_i32 : i32, i32
  }
  func.func @transform_5(%arg0: i32, %arg1: i32) -> (i32, i32, i32) {
    %c0_i32 = arith.constant 0 : i32
    %c0_i32_0 = arith.constant 0 : i32
    return %arg1, %arg0, %c0_i32 : i32, i32, i32
  }
  func.func @transform_6(%arg0: i32, %arg1: i32) -> (i32, i32) {
    %c0_i32 = arith.constant 0 : i32
    %c0_i32_0 = arith.constant 0 : i32
    return %arg0, %c0_i32 : i32, i32
  }
  func.func @transform_7(%arg0: i32, %arg1: i32) -> (i32, i32) {
    %c0_i32 = arith.constant 0 : i32
    %c0_i32_0 = arith.constant 0 : i32
    return %arg0, %c0_i32 : i32, i32
  }
}

module attributes {stable_mosaic.version = 11 : i64} {
  func.func @kernel(%arg0: i32, %arg1: i32, %arg2: memref<3x8x128xf32, #tpu.memory_space<vmem>>, %arg3: memref<32x128xf32, #tpu.memory_space<vmem>>, %arg4: memref<8x32xf32, #tpu.memory_space<vmem>>, %arg5: memref<8x32xf32, #tpu.memory_space<vmem>>, %arg6: memref<3x8x32xf32, #tpu.memory_space<vmem>>, %arg7: memref<8x32xf32, #tpu.memory_space<vmem>>, %arg8: memref<8x32xf32, #tpu.memory_space<vmem>>, %arg9: memref<8x32xf32, #tpu.memory_space<vmem>>, %arg10: memref<8x32xf32, #tpu.memory_space<vmem>>) attributes {dimension_semantics = [#tpu.dimension_semantics<parallel>, #tpu.dimension_semantics<arbitrary>], iteration_bounds = array<i64: 1, 2>, scalar_prefetch = 0 : i64, scratch_operands = 2 : i64, tpu.core_type = #tpu.core_type<tc>, window_params = [{transform_indices = @transform_0, window_bounds = array<i64: 3, 8, 128>}, {pipeline_mode = #tpu.pipeline_mode<synchronous>, transform_indices = @transform_1, window_bounds = array<i64: 32, 128>}, {transform_indices = @transform_2, window_bounds = array<i64: 8, 32>}, {transform_indices = @transform_3, window_bounds = array<i64: 8, 32>}, {transform_indices = @transform_4, window_bounds = array<i64: 3, 8, 32>}, {transform_indices = @transform_5, window_bounds = array<i64: 8, 32>}, {transform_indices = @transform_6, window_bounds = array<i64: 8, 32>}]} {
    %c0_i32 = arith.constant 0 : i32
    %0 = arith.cmpi eq, %arg1, %c0_i32 : i32
    %1 = arith.extui %0 : i1 to i32
    %c0_i32_0 = arith.constant 0 : i32
    %2 = arith.cmpi ne, %1, %c0_i32_0 : i32
    scf.if %2 {
      %c0_36 = arith.constant 0 : index
      %c0_37 = arith.constant 0 : index
      %92 = vector.load %arg4[%c0_36, %c0_37] : memref<8x32xf32, #tpu.memory_space<vmem>>, vector<8x32xf32>
      %c0_38 = arith.constant 0 : index
      %c0_39 = arith.constant 0 : index
      %93 = vector.load %arg9[%c0_38, %c0_39] : memref<8x32xf32, #tpu.memory_space<vmem>>, vector<8x32xf32>
      tpu.vector_store %arg9[%c0_38, %c0_39], %92 {strides = array<i32>} : memref<8x32xf32, #tpu.memory_space<vmem>>, vector<8x32xf32>,
      %c0_40 = arith.constant 0 : index
      %c0_41 = arith.constant 0 : index
      %94 = vector.load %arg5[%c0_40, %c0_41] : memref<8x32xf32, #tpu.memory_space<vmem>>, vector<8x32xf32>
      %c0_42 = arith.constant 0 : index
      %c0_43 = arith.constant 0 : index
      %95 = vector.load %arg10[%c0_42, %c0_43] : memref<8x32xf32, #tpu.memory_space<vmem>>, vector<8x32xf32>
      tpu.vector_store %arg10[%c0_42, %c0_43], %94 {strides = array<i32>} : memref<8x32xf32, #tpu.memory_space<vmem>>, vector<8x32xf32>,
    } else {
    }
    %c0 = arith.constant 0 : index
    %c0_1 = arith.constant 0 : index
    %3 = vector.load %arg3[%c0, %c0_1] : memref<32x128xf32, #tpu.memory_space<vmem>>, vector<32x128xf32>
    %c0_2 = arith.constant 0 : index
    %c0_3 = arith.constant 0 : index
    %4 = vector.load %arg9[%c0_2, %c0_3] : memref<8x32xf32, #tpu.memory_space<vmem>>, vector<8x32xf32>
    %c0_4 = arith.constant 0 : index
    %c0_5 = arith.constant 0 : index
    %5 = vector.load %arg10[%c0_4, %c0_5] : memref<8x32xf32, #tpu.memory_space<vmem>>, vector<8x32xf32>
    %c0_i32_6 = arith.constant 0 : i32
    %6 = arith.index_cast %c0_i32_6 : i32 to index
    %c0_7 = arith.constant 0 : index
    %c0_8 = arith.constant 0 : index
    %7 = vector.load %arg2[%6, %c0_7, %c0_8] : memref<3x8x128xf32, #tpu.memory_space<vmem>>, vector<1x8x128xf32>
    %8 = vector.shape_cast %7 : vector<1x8x128xf32> to vector<8x128xf32>
    %cst = arith.constant dense<0.000000e+00> : vector<8x128xf32>
    %9 = tpu.matmul %4, %3, %cst {dimension_numbers = #tpu.dot_dimension_numbers<[1], [0], [0], [1], [0, 0, 1, 1], [], []>} : vector<8x32xf32>, vector<32x128xf32>, vector<8x128xf32> -> vector<8x128xf32>
    %10 = arith.addf %8, %9 : vector<8x128xf32>
    %11 = vector.extract_strided_slice %10 {offsets = [0, 0], sizes = [8, 96], strides = [1, 1]} : vector<8x128xf32> to vector<8x96xf32>
    %cst_9 = arith.constant 5.000000e-01 : f32
    %12 = vector.broadcast %cst_9 : f32 to vector<8x96xf32>
    %13 = arith.mulf %12, %11 : vector<8x96xf32>
    %14 = math.tanh %13 : vector<8x96xf32>
    %cst_10 = arith.constant 5.000000e-01 : f32
    %15 = vector.broadcast %cst_10 : f32 to vector<8x96xf32>
    %16 = arith.mulf %15, %14 : vector<8x96xf32>
    %cst_11 = arith.constant 5.000000e-01 : f32
    %17 = vector.broadcast %cst_11 : f32 to vector<8x96xf32>
    %18 = arith.addf %16, %17 : vector<8x96xf32>
    %19 = vector.extract_strided_slice %18 {offsets = [0, 0], sizes = [8, 32], strides = [1, 1]} : vector<8x96xf32> to vector<8x32xf32>
    %20 = vector.extract_strided_slice %18 {offsets = [0, 32], sizes = [8, 32], strides = [1, 1]} : vector<8x96xf32> to vector<8x32xf32>
    %21 = vector.extract_strided_slice %18 {offsets = [0, 64], sizes = [8, 32], strides = [1, 1]} : vector<8x96xf32> to vector<8x32xf32>
    %22 = vector.extract_strided_slice %10 {offsets = [0, 96], sizes = [8, 32], strides = [1, 1]} : vector<8x128xf32> to vector<8x32xf32>
    %23 = math.tanh %22 : vector<8x32xf32>
    %24 = arith.mulf %20, %5 : vector<8x32xf32>
    %25 = arith.mulf %19, %23 : vector<8x32xf32>
    %26 = arith.addf %24, %25 : vector<8x32xf32>
    %27 = math.tanh %26 : vector<8x32xf32>
    %28 = arith.mulf %21, %27 : vector<8x32xf32>
    %29 = arith.index_cast %c0_i32_6 : i32 to index
    %c0_12 = arith.constant 0 : index
    %c0_13 = arith.constant 0 : index
    %30 = vector.load %arg6[%29, %c0_12, %c0_13] : memref<3x8x32xf32, #tpu.memory_space<vmem>>, vector<1x8x32xf32>
    %31 = vector.shape_cast %30 : vector<1x8x32xf32> to vector<8x32xf32>
    %32 = vector.shape_cast %28 : vector<8x32xf32> to vector<1x8x32xf32>
    tpu.vector_store %arg6[%29, %c0_12, %c0_13], %32 {strides = array<i32>} : memref<3x8x32xf32, #tpu.memory_space<vmem>>, vector<1x8x32xf32>,
    %c1_i32 = arith.constant 1 : i32
    %33 = arith.index_cast %c1_i32 : i32 to index
    %c0_14 = arith.constant 0 : index
    %c0_15 = arith.constant 0 : index
    %34 = vector.load %arg2[%33, %c0_14, %c0_15] : memref<3x8x128xf32, #tpu.memory_space<vmem>>, vector<1x8x128xf32>
    %35 = vector.shape_cast %34 : vector<1x8x128xf32> to vector<8x128xf32>
    %cst_16 = arith.constant dense<0.000000e+00> : vector<8x128xf32>
    %36 = tpu.matmul %28, %3, %cst_16 {dimension_numbers = #tpu.dot_dimension_numbers<[1], [0], [0], [1], [0, 0, 1, 1], [], []>} : vector<8x32xf32>, vector<32x128xf32>, vector<8x128xf32> -> vector<8x128xf32>
    %37 = arith.addf %35, %36 : vector<8x128xf32>
    %38 = vector.extract_strided_slice %37 {offsets = [0, 0], sizes = [8, 96], strides = [1, 1]} : vector<8x128xf32> to vector<8x96xf32>
    %cst_17 = arith.constant 5.000000e-01 : f32
    %39 = vector.broadcast %cst_17 : f32 to vector<8x96xf32>
    %40 = arith.mulf %39, %38 : vector<8x96xf32>
    %41 = math.tanh %40 : vector<8x96xf32>
    %cst_18 = arith.constant 5.000000e-01 : f32
    %42 = vector.broadcast %cst_18 : f32 to vector<8x96xf32>
    %43 = arith.mulf %42, %41 : vector<8x96xf32>
    %cst_19 = arith.constant 5.000000e-01 : f32
    %44 = vector.broadcast %cst_19 : f32 to vector<8x96xf32>
    %45 = arith.addf %43, %44 : vector<8x96xf32>
    %46 = vector.extract_strided_slice %45 {offsets = [0, 0], sizes = [8, 32], strides = [1, 1]} : vector<8x96xf32> to vector<8x32xf32>
    %47 = vector.extract_strided_slice %45 {offsets = [0, 32], sizes = [8, 32], strides = [1, 1]} : vector<8x96xf32> to vector<8x32xf32>
    %48 = vector.extract_strided_slice %45 {offsets = [0, 64], sizes = [8, 32], strides = [1, 1]} : vector<8x96xf32> to vector<8x32xf32>
    %49 = vector.extract_strided_slice %37 {offsets = [0, 96], sizes = [8, 32], strides = [1, 1]} : vector<8x128xf32> to vector<8x32xf32>
    %50 = math.tanh %49 : vector<8x32xf32>
    %51 = arith.mulf %47, %26 : vector<8x32xf32>
    %52 = arith.mulf %46, %50 : vector<8x32xf32>
    %53 = arith.addf %51, %52 : vector<8x32xf32>
    %54 = math.tanh %53 : vector<8x32xf32>
    %55 = arith.mulf %48, %54 : vector<8x32xf32>
    %56 = arith.index_cast %c1_i32 : i32 to index
    %c0_20 = arith.constant 0 : index
    %c0_21 = arith.constant 0 : index
    %57 = vector.load %arg6[%56, %c0_20, %c0_21] : memref<3x8x32xf32, #tpu.memory_space<vmem>>, vector<1x8x32xf32>
    %58 = vector.shape_cast %57 : vector<1x8x32xf32> to vector<8x32xf32>
    %59 = vector.shape_cast %55 : vector<8x32xf32> to vector<1x8x32xf32>
    tpu.vector_store %arg6[%56, %c0_20, %c0_21], %59 {strides = array<i32>} : memref<3x8x32xf32, #tpu.memory_space<vmem>>, vector<1x8x32xf32>,
    %c2_i32 = arith.constant 2 : i32
    %60 = arith.index_cast %c2_i32 : i32 to index
    %c0_22 = arith.constant 0 : index
    %c0_23 = arith.constant 0 : index
    %61 = vector.load %arg2[%60, %c0_22, %c0_23] : memref<3x8x128xf32, #tpu.memory_space<vmem>>, vector<1x8x128xf32>
    %62 = vector.shape_cast %61 : vector<1x8x128xf32> to vector<8x128xf32>
    %cst_24 = arith.constant dense<0.000000e+00> : vector<8x128xf32>
    %63 = tpu.matmul %55, %3, %cst_24 {dimension_numbers = #tpu.dot_dimension_numbers<[1], [0], [0], [1], [0, 0, 1, 1], [], []>} : vector<8x32xf32>, vector<32x128xf32>, vector<8x128xf32> -> vector<8x128xf32>
    %64 = arith.addf %62, %63 : vector<8x128xf32>
    %65 = vector.extract_strided_slice %64 {offsets = [0, 0], sizes = [8, 96], strides = [1, 1]} : vector<8x128xf32> to vector<8x96xf32>
    %cst_25 = arith.constant 5.000000e-01 : f32
    %66 = vector.broadcast %cst_25 : f32 to vector<8x96xf32>
    %67 = arith.mulf %66, %65 : vector<8x96xf32>
    %68 = math.tanh %67 : vector<8x96xf32>
    %cst_26 = arith.constant 5.000000e-01 : f32
    %69 = vector.broadcast %cst_26 : f32 to vector<8x96xf32>
    %70 = arith.mulf %69, %68 : vector<8x96xf32>
    %cst_27 = arith.constant 5.000000e-01 : f32
    %71 = vector.broadcast %cst_27 : f32 to vector<8x96xf32>
    %72 = arith.addf %70, %71 : vector<8x96xf32>
    %73 = vector.extract_strided_slice %72 {offsets = [0, 0], sizes = [8, 32], strides = [1, 1]} : vector<8x96xf32> to vector<8x32xf32>
    %74 = vector.extract_strided_slice %72 {offsets = [0, 32], sizes = [8, 32], strides = [1, 1]} : vector<8x96xf32> to vector<8x32xf32>
    %75 = vector.extract_strided_slice %72 {offsets = [0, 64], sizes = [8, 32], strides = [1, 1]} : vector<8x96xf32> to vector<8x32xf32>
    %76 = vector.extract_strided_slice %64 {offsets = [0, 96], sizes = [8, 32], strides = [1, 1]} : vector<8x128xf32> to vector<8x32xf32>
    %77 = math.tanh %76 : vector<8x32xf32>
    %78 = arith.mulf %74, %53 : vector<8x32xf32>
    %79 = arith.mulf %73, %77 : vector<8x32xf32>
    %80 = arith.addf %78, %79 : vector<8x32xf32>
    %81 = math.tanh %80 : vector<8x32xf32>
    %82 = arith.mulf %75, %81 : vector<8x32xf32>
    %83 = arith.index_cast %c2_i32 : i32 to index
    %c0_28 = arith.constant 0 : index
    %c0_29 = arith.constant 0 : index
    %84 = vector.load %arg6[%83, %c0_28, %c0_29] : memref<3x8x32xf32, #tpu.memory_space<vmem>>, vector<1x8x32xf32>
    %85 = vector.shape_cast %84 : vector<1x8x32xf32> to vector<8x32xf32>
    %86 = vector.shape_cast %82 : vector<8x32xf32> to vector<1x8x32xf32>
    tpu.vector_store %arg6[%83, %c0_28, %c0_29], %86 {strides = array<i32>} : memref<3x8x32xf32, #tpu.memory_space<vmem>>, vector<1x8x32xf32>,
    %c3_i32 = arith.constant 3 : i32
    %c0_30 = arith.constant 0 : index
    %c0_31 = arith.constant 0 : index
    %87 = vector.load %arg9[%c0_30, %c0_31] : memref<8x32xf32, #tpu.memory_space<vmem>>, vector<8x32xf32>
    tpu.vector_store %arg9[%c0_30, %c0_31], %82 {strides = array<i32>} : memref<8x32xf32, #tpu.memory_space<vmem>>, vector<8x32xf32>,
    %c0_32 = arith.constant 0 : index
    %c0_33 = arith.constant 0 : index
    %88 = vector.load %arg10[%c0_32, %c0_33] : memref<8x32xf32, #tpu.memory_space<vmem>>, vector<8x32xf32>
    tpu.vector_store %arg10[%c0_32, %c0_33], %80 {strides = array<i32>} : memref<8x32xf32, #tpu.memory_space<vmem>>, vector<8x32xf32>,
    %c1_i32_34 = arith.constant 1 : i32
    %89 = arith.cmpi eq, %arg1, %c1_i32_34 : i32
    %90 = arith.extui %89 : i1 to i32
    %c0_i32_35 = arith.constant 0 : i32
    %91 = arith.cmpi ne, %90, %c0_i32_35 : i32
    scf.if %91 {
      %c0_36 = arith.constant 0 : index
      %c0_37 = arith.constant 0 : index
      %92 = vector.load %arg7[%c0_36, %c0_37] : memref<8x32xf32, #tpu.memory_space<vmem>>, vector<8x32xf32>
      tpu.vector_store %arg7[%c0_36, %c0_37], %82 {strides = array<i32>} : memref<8x32xf32, #tpu.memory_space<vmem>>, vector<8x32xf32>,
      %c0_38 = arith.constant 0 : index
      %c0_39 = arith.constant 0 : index
      %93 = vector.load %arg8[%c0_38, %c0_39] : memref<8x32xf32, #tpu.memory_space<vmem>>, vector<8x32xf32>
      tpu.vector_store %arg8[%c0_38, %c0_39], %80 {strides = array<i32>} : memref<8x32xf32, #tpu.memory_space<vmem>>, vector<8x32xf32>,
    } else {
    }
    return
  }
  func.func @transform_0(%arg0: i32, %arg1: i32) -> (i32, i32, i32) {
    %c0_i32 = arith.constant 0 : i32
    %c0_i32_0 = arith.constant 0 : i32
    return %arg1, %arg0, %c0_i32 : i32, i32, i32
  }
  func.func @transform_1(%arg0: i32, %arg1: i32) -> (i32, i32) {
    %c0_i32 = arith.constant 0 : i32
    %c0_i32_0 = arith.constant 0 : i32
    %c0_i32_1 = arith.constant 0 : i32
    return %c0_i32, %c0_i32_0 : i32, i32
  }
  func.func @transform_2(%arg0: i32, %arg1: i32) -> (i32, i32) {
    %c0_i32 = arith.constant 0 : i32
    %c0_i32_0 = arith.constant 0 : i32
    return %arg0, %c0_i32 : i32, i32
  }
  func.func @transform_3(%arg0: i32, %arg1: i32) -> (i32, i32) {
    %c0_i32 = arith.constant 0 : i32
    %c0_i32_0 = arith.constant 0 : i32
    return %arg0, %c0_i32 : i32, i32
  }
  func.func @transform_4(%arg0: i32, %arg1: i32) -> (i32, i32, i32) {
    %c0_i32 = arith.constant 0 : i32
    %c0_i32_0 = arith.constant 0 : i32
    return %arg1, %arg0, %c0_i32 : i32, i32, i32
  }
  func.func @transform_5(%arg0: i32, %arg1: i32) -> (i32, i32) {
    %c0_i32 = arith.constant 0 : i32
    %c0_i32_0 = arith.constant 0 : i32
    return %arg0, %c0_i32 : i32, i32
  }
  func.func @transform_6(%arg0: i32, %arg1: i32) -> (i32, i32) {
    %c0_i32 = arith.constant 0 : i32
    %c0_i32_0 = arith.constant 0 : i32
    return %arg0, %c0_i32 : i32, i32
  }
}

</mosaic_0001>

<llo_original>
// kernel: _lambda_.3
$region0: #{_lambda_.3}
  #allocation0 [shape = 'u32[]', space=smem, size = 0x4, offset = 0x4, fixed_abs, tag = 'smem constant byte address 0x4 - core index']
  #allocation1 [shape = 'u32[72,128]{1,0:T(1,128)}', space=vmem, size = 0x9000, scoped, tag = 'internal scratch']
  #allocation2 [shape = 'f32[8,16]{1,0:T(8,128)}', space=vmem, size = 0x1000, scoped, tag = 'scratch operand']
  #allocation3 [shape = 'f32[8,16]{1,0:T(8,128)}', space=vmem, size = 0x1000, scoped, tag = 'scratch operand']
  %s0 = inlined_call_operand.vmem [shape: s32[8,1], index: 0, kind: input, shape index: {}]
  %s1 = inlined_call_operand.vmem [shape: f32[8,8,64], index: 1, kind: input, shape index: {}]
  %s2 = inlined_call_operand.vmem [shape: f32[16,64], index: 2, kind: input, shape index: {}]
  %s3 = inlined_call_operand.vmem [shape: f32[8,16], index: 3, kind: input, shape index: {}, may-alias: {3,4}]
  %s4 = inlined_call_operand.vmem [shape: f32[8,16], index: 4, kind: input, shape index: {}, may-alias: {3,4}]
  %s5 = inlined_call_operand.vmem [shape: f32[8,8,16], index: 5, kind: output, shape index: {0}]
  %s6 = inlined_call_operand.vmem [shape: f32[8,16], index: 6, kind: output, shape index: {1}]
  %s7 = inlined_call_operand.vmem [shape: f32[8,16], index: 7, kind: output, shape index: {2}]
  %8 = xla_tuple %s5, %s6, %s7
  %s9 = sld [smem:[#allocation0]]
  $region77: #{_lambda_.3} parent=0
    _
  %s11 = ssub.s32 1, %s9
  %s12 = scalar_select 0, %s11, %s9
  loop: start=0, step=1, limit=4
  $region2: #{_lambda_.3} parent=0 // loop_pre_header
    _
  $region3: #{_lambda_.3} parent=0 // loop_header
    %s14 = sphi 0, %s18
    %p15 = scmp.ge.s32.totalorder %s14, 4
    %s21 = sphi 0, %s33
    %s22 = sphi 0, %s29
    %s23 = sphi 0, %s21
    %s24 = sphi 0, %s22
    %s25 = sphi 0, %s23
    %s26 = sphi 0, %s24
    %s36 = sphi 0, %s38
    %s39 = sphi 0, %s36
    %s40 = sphi 0, %s39
    %s56 = sphi 0, %s40
    %s64 = sphi 0, %s66
    %s67 = sphi 0, %s64
    %s68 = sphi 0, %s67
    %s84 = sphi 0, %s68
    %s88 = sphi 0, %s88
    %s90 = sphi 0, %s88
    %s91 = sphi 0, %s90
    %s105 = sphi 0, %s91
    %s111 = sphi 0, %s113
    %s114 = sphi 0, %s111
    %s115 = sphi 0, %s114
    %s131 = sphi 0, %s115
    %s137 = sphi 0, %s139
    %s140 = sphi 0, %s137
    %s141 = sphi 0, %s140
    %s157 = sphi 0, %s141
    %s165 = sphi 0, %s167
    %s168 = sphi 0, %s165
    %s169 = sphi 0, %s168
    %s185 = sphi 0, %s169
    %s191 = sphi 0, %s193
    %s194 = sphi 0, %s191
    %s195 = sphi 0, %s194
    %s211 = sphi 0, %s195
    %s217 = sphi 0, %s219
    %s220 = sphi 0, %s217
    %s221 = sphi 0, %s220
    %s237 = sphi 0, %s221
  $region4: #{_lambda_.3} parent=0 // loop_header_branch
    %17 = sbr.rel (%p15) target = $region8
  $region5: #{_lambda_.3} parent=0 // loop_body
    %s19 = ssub.s32 %s14, 1
    %s20 = ssub.s32 %s14, 2
    %s27 = sadd.s32 1, %s22
    %p28 = scmp.ge.s32.totalorder %s27, 2
    %s29 = scalar_select %p28, 0, %s27
    %s30 = sadd.s32 1, %s21
    %s31 = scalar_select %p28, %s30, %s21
    %p32 = scmp.ge.s32.totalorder %s31, 1
    %s33 = scalar_select %p32, 0, %s31
    %s34 = ssub.s32 %s21, %s33
    %p35 = scmp.eq.s32.totalorder %s34, 0
    %s37 = sadd.s32 %s36, 1
    %s38 = scalar_select %p35, %s36, %s37
    %p41 = pneg %p35
    %p42 = scmp.eq.s32.totalorder %s14, 1
    %p43 = por %p41, %p42
    %p44 = scmp.ne.s32.totalorder %s36, %s39
    %p45 = scmp.eq.s32.totalorder %s14, 0
    %p46 = por %p44, %p45
    %p47 = scmp.ne.s32.totalorder %s36, %s39
    %p48 = scmp.eq.s32.totalorder %s19, 1
    %p49 = por %p47, %p48
    %p50 = scmp.ne.s32.totalorder %s39, %s40
    %p51 = scmp.eq.s32.totalorder %s19, 0
    %p52 = por %p50, %p51
    %p53 = scmp.ne.s32.totalorder %s39, %s40
    %p54 = scmp.eq.s32.totalorder %s20, 1
    %p55 = por %p53, %p54
    %p57 = scmp.ne.s32.totalorder %s40, %s56
    %p58 = scmp.eq.s32.totalorder %s20, 0
    %p59 = por %p57, %p58
    %s60 = ssub.s32 %s22, %s29
    %s61 = ssub.s32 %s21, %s33
    %s62 = sor.u32 %s60, %s61
    %p63 = scmp.eq.s32.totalorder %s62, 0
    %s65 = sadd.s32 %s64, 1
    %s66 = scalar_select %p63, %s64, %s65
    %p69 = pneg %p63
    %p70 = scmp.eq.s32.totalorder %s14, 1
    %p71 = por %p69, %p70
    %p72 = scmp.ne.s32.totalorder %s64, %s67
    %p73 = scmp.eq.s32.totalorder %s14, 0
    %p74 = por %p72, %p73
    %p75 = scmp.ne.s32.totalorder %s64, %s67
    %p76 = scmp.eq.s32.totalorder %s19, 1
    %p77 = por %p75, %p76
    %p78 = scmp.ne.s32.totalorder %s67, %s68
    %p79 = scmp.eq.s32.totalorder %s19, 0
    %p80 = por %p78, %p79
    %p81 = scmp.ne.s32.totalorder %s67, %s68
    %p82 = scmp.eq.s32.totalorder %s20, 1
    %p83 = por %p81, %p82
    %p85 = scmp.ne.s32.totalorder %s68, %s84
    %p86 = scmp.eq.s32.totalorder %s20, 0
    %p87 = por %p85, %p86
    %s89 = sadd.s32 %s88, 1
    %p92 = scmp.eq.s32.totalorder %s14, 1
    %p93 = scmp.ne.s32.totalorder %s88, %s90
    %p94 = scmp.eq.s32.totalorder %s14, 0
    %p95 = por %p93, %p94
    %p96 = scmp.ne.s32.totalorder %s88, %s90
    %p97 = scmp.eq.s32.totalorder %s19, 1
    %p98 = por %p96, %p97
    %p99 = scmp.ne.s32.totalorder %s90, %s91
    %p100 = scmp.eq.s32.totalorder %s19, 0
    %p101 = por %p99, %p100
    %p102 = scmp.ne.s32.totalorder %s90, %s91
    %p103 = scmp.eq.s32.totalorder %s20, 1
    %p104 = por %p102, %p103
    %p106 = scmp.ne.s32.totalorder %s91, %s105
    %p107 = scmp.eq.s32.totalorder %s20, 0
    %p108 = por %p106, %p107
    %s109 = ssub.s32 %s21, %s33
    %p110 = scmp.eq.s32.totalorder %s109, 0
    %s112 = sadd.s32 %s111, 1
    %s113 = scalar_select %p110, %s111, %s112
    %p116 = pneg %p110
    %p117 = scmp.eq.s32.totalorder %s14, 1
    %p118 = por %p116, %p117
    %p119 = scmp.ne.s32.totalorder %s111, %s114
    %p120 = scmp.eq.s32.totalorder %s14, 0
    %p121 = por %p119, %p120
    %p122 = scmp.ne.s32.totalorder %s111, %s114
    %p123 = scmp.eq.s32.totalorder %s19, 1
    %p124 = por %p122, %p123
    %p125 = scmp.ne.s32.totalorder %s114, %s115
    %p126 = scmp.eq.s32.totalorder %s19, 0
    %p127 = por %p125, %p126
    %p128 = scmp.ne.s32.totalorder %s114, %s115
    %p129 = scmp.eq.s32.totalorder %s20, 1
    %p130 = por %p128, %p129
    %p132 = scmp.ne.s32.totalorder %s115, %s131
    %p133 = scmp.eq.s32.totalorder %s20, 0
    %p134 = por %p132, %p133
    %s135 = ssub.s32 %s21, %s33
    %p136 = scmp.eq.s32.totalorder %s135, 0
    %s138 = sadd.s32 %s137, 1
    %s139 = scalar_select %p136, %s137, %s138
    %p142 = pneg %p136
    %p143 = scmp.eq.s32.totalorder %s14, 1
    %p144 = por %p142, %p143
    %p145 = scmp.ne.s32.totalorder %s137, %s140
    %p146 = scmp.eq.s32.totalorder %s14, 0
    %p147 = por %p145, %p146
    %p148 = scmp.ne.s32.totalorder %s137, %s140
    %p149 = scmp.eq.s32.totalorder %s19, 1
    %p150 = por %p148, %p149
    %p151 = scmp.ne.s32.totalorder %s140, %s141
    %p152 = scmp.eq.s32.totalorder %s19, 0
    %p153 = por %p151, %p152
    %p154 = scmp.ne.s32.totalorder %s140, %s141
    %p155 = scmp.eq.s32.totalorder %s20, 1
    %p156 = por %p154, %p155
    %p158 = scmp.ne.s32.totalorder %s141, %s157
    %p159 = scmp.eq.s32.totalorder %s20, 0
    %p160 = por %p158, %p159
    %s161 = ssub.s32 %s22, %s29
    %s162 = ssub.s32 %s21, %s33
    %s163 = sor.u32 %s161, %s162
    %p164 = scmp.eq.s32.totalorder %s163, 0
    %s166 = sadd.s32 %s165, 1
    %s167 = scalar_select %p164, %s165, %s166
    %p170 = pneg %p164
    %p171 = scmp.eq.s32.totalorder %s14, 1
    %p172 = por %p170, %p171
    %p173 = scmp.ne.s32.totalorder %s165, %s168
    %p174 = scmp.eq.s32.totalorder %s14, 0
    %p175 = por %p173, %p174
    %p176 = scmp.ne.s32.totalorder %s165, %s168
    %p177 = scmp.eq.s32.totalorder %s19, 1
    %p178 = por %p176, %p177
    %p179 = scmp.ne.s32.totalorder %s168, %s169
    %p180 = scmp.eq.s32.totalorder %s19, 0
    %p181 = por %p179, %p180
    %p182 = scmp.ne.s32.totalorder %s168, %s169
    %p183 = scmp.eq.s32.totalorder %s20, 1
    %p184 = por %p182, %p183
    %p186 = scmp.ne.s32.totalorder %s169, %s185
    %p187 = scmp.eq.s32.totalorder %s20, 0
    %p188 = por %p186, %p187
    %s189 = ssub.s32 %s21, %s33
    %p190 = scmp.eq.s32.totalorder %s189, 0
    %s192 = sadd.s32 %s191, 1
    %s193 = scalar_select %p190, %s191, %s192
    %p196 = pneg %p190
    %p197 = scmp.eq.s32.totalorder %s14, 1
    %p198 = por %p196, %p197
    %p199 = scmp.ne.s32.totalorder %s191, %s194
    %p200 = scmp.eq.s32.totalorder %s14, 0
    %p201 = por %p199, %p200
    %p202 = scmp.ne.s32.totalorder %s191, %s194
    %p203 = scmp.eq.s32.totalorder %s19, 1
    %p204 = por %p202, %p203
    %p205 = scmp.ne.s32.totalorder %s194, %s195
    %p206 = scmp.eq.s32.totalorder %s19, 0
    %p207 = por %p205, %p206
    %p208 = scmp.ne.s32.totalorder %s194, %s195
    %p209 = scmp.eq.s32.totalorder %s20, 1
    %p210 = por %p208, %p209
    %p212 = scmp.ne.s32.totalorder %s195, %s211
    %p213 = scmp.eq.s32.totalorder %s20, 0
    %p214 = por %p212, %p213
    %s215 = ssub.s32 %s21, %s33
    %p216 = scmp.eq.s32.totalorder %s215, 0
    %s218 = sadd.s32 %s217, 1
    %s219 = scalar_select %p216, %s217, %s218
    %p222 = pneg %p216
    %p223 = scmp.eq.s32.totalorder %s14, 1
    %p224 = por %p222, %p223
    %p225 = scmp.ne.s32.totalorder %s217, %s220
    %p226 = scmp.eq.s32.totalorder %s14, 0
    %p227 = por %p225, %p226
    %p228 = scmp.ne.s32.totalorder %s217, %s220
    %p229 = scmp.eq.s32.totalorder %s19, 1
    %p230 = por %p228, %p229
    %p231 = scmp.ne.s32.totalorder %s220, %s221
    %p232 = scmp.eq.s32.totalorder %s19, 0
    %p233 = por %p231, %p232
    %p234 = scmp.ne.s32.totalorder %s220, %s221
    %p235 = scmp.eq.s32.totalorder %s20, 1
    %p236 = por %p234, %p235
    %p238 = scmp.ne.s32.totalorder %s221, %s237
    %p239 = scmp.eq.s32.totalorder %s20, 0
    %p240 = por %p238, %p239
    %p241 = scmp.le.s32.totalorder 1, %s14
    %p242 = scmp.lt.s32.totalorder %s14, 3
    %p243 = pnand %p241, %p242
    %p244 = pneg %p243
    // Predicated region
    $region9: #{_lambda_.3} parent=5 // pred_check
      _
    $region10: #{_lambda_.3} parent=5 // pred_check_branch
      %246 = sbr.rel (%p243) target = $region12
    $region11: #{_lambda_.3} parent=5 // pred_region
      %s247 = ssub.s32 %s14, 1
      // Predicated region
      $region13: #{_lambda_.3} parent=11 // pred_check
        %p248 = pneg %p52
      $region14: #{_lambda_.3} parent=11 // pred_check_branch
        %250 = sbr.rel (%p248) target = $region16
      $region15: #{_lambda_.3} parent=11 // pred_region
        %p251 = scmp.lt.s32.totalorder %s23, 0
        %s252 = scalar_select %p251, %s23, 0
        %s253 = smul.addr %s252, 8
        %s254 = scalar_lea.vmem %s0, %s253
      $region16: #{_lambda_.3} parent=11 // pred_fallthru
        _
      // Predicated region
      $region17: #{_lambda_.3} parent=11 // pred_check
        %p255 = pneg %p101
      $region18: #{_lambda_.3} parent=11 // pred_check_branch
        %257 = sbr.rel (%p255) target = $region20
      $region19: #{_lambda_.3} parent=11 // pred_region
        _
      $region20: #{_lambda_.3} parent=11 // pred_fallthru
        _
      // Predicated region
      $region21: #{_lambda_.3} parent=11 // pred_check
        %p258 = pneg %p127
      $region22: #{_lambda_.3} parent=11 // pred_check_branch
        %260 = sbr.rel (%p258) target = $region24
      $region23: #{_lambda_.3} parent=11 // pred_region
        %p261 = scmp.lt.s32.totalorder %s23, 0
        %s262 = scalar_select %p261, %s23, 0
        %s263 = smul.addr %s262, 8
        %s264 = scalar_lea.vmem %s3, %s263
      $region24: #{_lambda_.3} parent=11 // pred_fallthru
        _
      // Predicated region
      $region25: #{_lambda_.3} parent=11 // pred_check
        %p265 = pneg %p153
      $region26: #{_lambda_.3} parent=11 // pred_check_branch
        %267 = sbr.rel (%p265) target = $region28
      $region27: #{_lambda_.3} parent=11 // pred_region
        %p268 = scmp.lt.s32.totalorder %s23, 0
        %s269 = scalar_select %p268, %s23, 0
        %s270 = smul.addr %s269, 8
        %s271 = scalar_lea.vmem %s4, %s270
      $region28: #{_lambda_.3} parent=11 // pred_fallthru
        _
    $region12: #{_lambda_.3} parent=5 // pred_fallthru
      _
    %p272 = scmp.lt.s32.totalorder %s14, 2
    // Predicated region
    $region29: #{_lambda_.3} parent=5 // pred_check
      %p273 = pneg %p272
    $region30: #{_lambda_.3} parent=5 // pred_check_branch
      %275 = sbr.rel (%p273) target = $region32
    $region31: #{_lambda_.3} parent=5 // pred_region
      // Predicated region
      $region33: #{_lambda_.3} parent=31 // pred_check
        %p276 = pneg %p74
      $region34: #{_lambda_.3} parent=31 // pred_check_branch
        %278 = sbr.rel (%p276) target = $region36
      $region35: #{_lambda_.3} parent=31 // pred_region
        %s279 = smul.u32 4, %s22
        %p280 = scmp.lt.s32.totalorder %s279, 7
        %s281 = scalar_select %p280, %s279, 7
        %p282 = scmp.lt.s32.totalorder %s21, 0
        %s283 = scalar_select %p282, %s21, 0
        %s284 = sadd.s32 %s283, %s281
        %s285 = smul.addr %s284, 8
        %s286 = scalar_lea.vmem %s1, %s285
        %s287 = smul.u32 4, %s22
      $region36: #{_lambda_.3} parent=31 // pred_fallthru
        _
    $region32: #{_lambda_.3} parent=5 // pred_fallthru
      _
    %p288 = scmp.le.s32.totalorder 1, %s14
    %p289 = scmp.lt.s32.totalorder %s14, 3
    %p290 = pnand %p288, %p289
    %p291 = pneg %p290
    // Predicated region
    $region37: #{_lambda_.3} parent=5 // pred_check
      _
    $region38: #{_lambda_.3} parent=5 // pred_check_branch
      %293 = sbr.rel (%p290) target = $region40
    $region39: #{_lambda_.3} parent=5 // pred_region
      %s294 = ssub.s32 %s14, 1
      %p295 = scmp.lt.s32.totalorder %s23, 0
      %s296 = scalar_select %p295, %s23, 0
      %s297 = smul.addr %s296, 8
      %s298 = scalar_lea.vmem %s0, %s297
      %p299 = pneg %p52
      %p300 = pneg %p49
      %s301 = smul.u32 4, %s24
      %p302 = scmp.lt.s32.totalorder %s301, 7
      %s303 = scalar_select %p302, %s301, 7
      %p304 = scmp.lt.s32.totalorder %s23, 0
      %s305 = scalar_select %p304, %s23, 0
      %s306 = sadd.s32 %s305, %s303
      %s307 = smul.addr %s306, 8
      %s308 = scalar_lea.vmem %s1, %s307
      %p309 = pneg %p80
      %p310 = pneg %p77
      %p311 = pneg %p101
      %p312 = pneg %p98
      %p313 = scmp.lt.s32.totalorder %s23, 0
      %s314 = scalar_select %p313, %s23, 0
      %s315 = smul.addr %s314, 8
      %s316 = scalar_lea.vmem %s3, %s315
      %p317 = pneg %p127
      %p318 = pneg %p124
      %p319 = scmp.lt.s32.totalorder %s23, 0
      %s320 = scalar_select %p319, %s23, 0
      %s321 = smul.addr %s320, 8
      %s322 = scalar_lea.vmem %s4, %s321
      %p323 = pneg %p153
      %p324 = pneg %p150
      %p325 = pneg %p181
      %p326 = pneg %p178
      %s327 = smul.u32 4, %s24
      %p328 = scmp.lt.s32.totalorder %s327, 7
      %s329 = scalar_select %p328, %s327, 7
      %p330 = scmp.lt.s32.totalorder %s23, 0
      %s331 = scalar_select %p330, %s23, 0
      %s332 = sadd.s32 %s331, %s329
      %s333 = smul.addr %s332, 8
      %s334 = scalar_lea.vmem %s5, %s333
      %p335 = pneg %p207
      %p336 = pneg %p204
      %p337 = scmp.lt.s32.totalorder %s23, 0
      %s338 = scalar_select %p337, %s23, 0
      %s339 = smul.addr %s338, 8
      %s340 = scalar_lea.vmem %s6, %s339
      %p341 = pneg %p233
      %p342 = pneg %p230
      %p343 = scmp.lt.s32.totalorder %s23, 0
      %s344 = scalar_select %p343, %s23, 0
      %s345 = smul.addr %s344, 8
      %s346 = scalar_lea.vmem %s7, %s345
      %p347 = scmp.lt.s32.totalorder %s23, 0
      %s348 = scalar_select %p347, %s23, 0
      %s349 = smul.addr %s348, 8
      %s350 = scalar_lea.vmem %s0, %s349
      %s351 = smul.u32 4, %s24
      %p352 = scmp.lt.s32.totalorder %s351, 7
      %s353 = scalar_select %p352, %s351, 7
      %p354 = scmp.lt.s32.totalorder %s23, 0
      %s355 = scalar_select %p354, %s23, 0
      %s356 = sadd.s32 %s355, %s353
      %s357 = smul.addr %s356, 8
      %s358 = scalar_lea.vmem %s1, %s357
      %s359 = smul.u32 4, %s24
      %p360 = scmp.lt.s32.totalorder %s23, 0
      %s361 = scalar_select %p360, %s23, 0
      %s362 = smul.addr %s361, 8
      %s363 = scalar_lea.vmem %s3, %s362
      %p364 = scmp.lt.s32.totalorder %s23, 0
      %s365 = scalar_select %p364, %s23, 0
      %s366 = smul.addr %s365, 8
      %s367 = scalar_lea.vmem %s4, %s366
      %s368 = smul.u32 4, %s24
      %p369 = scmp.lt.s32.totalorder %s368, 7
      %s370 = scalar_select %p369, %s368, 7
      %p371 = scmp.lt.s32.totalorder %s23, 0
      %s372 = scalar_select %p371, %s23, 0
      %s373 = sadd.s32 %s372, %s370
      %s374 = smul.addr %s373, 8
      %s375 = scalar_lea.vmem %s5, %s374
      %s376 = smul.u32 4, %s24
      %p377 = scmp.lt.s32.totalorder %s23, 0
      %s378 = scalar_select %p377, %s23, 0
      %s379 = smul.addr %s378, 8
      %s380 = scalar_lea.vmem %s6, %s379
      %p381 = scmp.lt.s32.totalorder %s23, 0
      %s382 = scalar_select %p381, %s23, 0
      %s383 = smul.addr %s382, 8
      %s384 = scalar_lea.vmem %s7, %s383
      %p385 = scmp.eq.s32.totalorder %s24, 0
      // Predicated region
      $region41: #{_lambda_.3} parent=39 // pred_check
        %p386 = pneg %p385
      $region42: #{_lambda_.3} parent=39 // pred_check_branch
        %388 = sbr.rel (%p386) target = $region44
      $region43: #{_lambda_.3} parent=39 // pred_region
        %v389 = vld [vmem:[%s363] sm:$0xff]
        %vm390 = vcmask 130048
        %391 = vst.msk [vmem:[#allocation2] sm:$0xff] %vm390, %v389
        %v392 = vld [vmem:[%s367] sm:$0xff]
        %393 = vst.msk [vmem:[#allocation3] sm:$0xff] %vm390, %v392
      $region44: #{_lambda_.3} parent=39 // pred_fallthru
        _
      %v394 = vld [vmem:[%s2] sm:$0xff]
      %v395 = vld [vmem:[%s2 + $0x8] sm:$0xff]
      %v396 = vld [vmem:[%s350] sm:$0xff]
      %s397 = smul.u32 %s24, 4
      %v398 = vld [vmem:[#allocation2] sm:$0xff]
      %v399 = vld [vmem:[#allocation3] sm:$0xff]
      %v400 = vld [vmem:[%s358] sm:$0xff]
      %vm401 = vcmask 130048
      %v403 = vsel %vm401, %v398, 0
      %405 = vmatpush.msra.mxu0 0.0
      %406 = vmatpush.msra.mxu0 0.0
      %407 = vmatpush.msra.mxu0 0.0
      %408 = vmatpush.msra.mxu0 0.0
      %409 = vmatpush.msra.mxu0 0.0
      %410 = vmatpush.msra.mxu0 0.0
      %411 = vmatpush.msra.mxu0 0.0
      %412 = vmatpush.msra.mxu0 0.0
      %413 = vmatpush.msra.mxu0 0.0
      %414 = vmatpush.msra.mxu0 0.0
      %415 = vmatpush.msra.mxu0 0.0
      %416 = vmatpush.msra.mxu0 0.0
      %417 = vmatpush.msra.mxu0 0.0
      %418 = vmatpush.msra.mxu0 0.0
      %419 = vmatpush.msra.mxu0 %v395
      %420 = vmatpush.msra.mxu0 %v394
      %421 = vmatmul.f32.gmra.mxu0 %v403
      %v422 = vpop.f32.mrf.mxu0
      %v423 = vadd.f32 0.0, %v422
      %424 = vdwg.mxu0
      %v425 = vadd.f32 %v400, %v423
      %v426 = vmul.f32 %v425, 0.5
      %v427 = vtanh.pop %v426
      %v428 = vmul.f32 %v427, 0.5
      %v429 = vadd.f32 %v428, 0.5
      %v430 = vtanh.pop %v425
      %432 = vrot.lane.b32.xlu0 %v399, 16
      %v433 = vpop.permute.xlu0 %432
      %v435 = vmul.f32 %v429, %v433
      %437 = vrot.lane.b32.xlu0 %v430, 80
      %v438 = vpop.permute.xlu0 %437
      %v440 = vmul.f32 %v429, %v438
      %442 = vrot.lane.b32.xlu0 %v440, 16
      %v443 = vpop.permute.xlu0 %442
      %v445 = vadd.f32 %v435, %v443
      %v446 = vtanh.pop %v445
      %448 = vrot.lane.b32.xlu0 %v446, 16
      %v449 = vpop.permute.xlu0 %448
      %v451 = vmul.f32 %v429, %v449
      %v452 = vstv %s397
      %vm453 = vcmp.lt.s32.totalorder %v452, %v396
      %v454 = vsel %vm453, 1, 0
      %455 = vset.pattern.permute.xlu0 0
      %456 = vperm.xlu0 %455, %v454
      %v457 = vpop.permute.xlu0 %456
      %vm458 = vcmp.eq.s32.totalorder %v457, 1
      %v459 = vsel %vm458, %v451, 0.0
      %461 = vrot.lane.b32.xlu0 %v459, 96
      %v462 = vpop.permute.xlu0 %461
      %464 = vst.msk [vmem:[%s375] sm:$0xff] %vm401, %v462
      %465 = vrot.lane.b32.xlu0 %v398, 32
      %v466 = vpop.permute.xlu0 %465
      %v468 = vsel %vm458, %v451, %v466
      %v469 = vsel %vm458, %v445, %v433
      %s470 = scalar_lea.vmem %s358, 8
      %v471 = vld [vmem:[%s470] sm:$0xff]
      %473 = vrot.lane.b32.xlu0 %v468, 96
      %v474 = vpop.permute.xlu0 %473
      %v475 = vsel %vm401, %v474, 0
      %477 = vmatpush.msra.mxu0 0.0
      %478 = vmatpush.msra.mxu0 0.0
      %479 = vmatpush.msra.mxu0 0.0
      %480 = vmatpush.msra.mxu0 0.0
      %481 = vmatpush.msra.mxu0 0.0
      %482 = vmatpush.msra.mxu0 0.0
      %483 = vmatpush.msra.mxu0 0.0
      %484 = vmatpush.msra.mxu0 0.0
      %485 = vmatpush.msra.mxu0 0.0
      %486 = vmatpush.msra.mxu0 0.0
      %487 = vmatpush.msra.mxu0 0.0
      %488 = vmatpush.msra.mxu0 0.0
      %489 = vmatpush.msra.mxu0 0.0
      %490 = vmatpush.msra.mxu0 0.0
      %491 = vmatpush.msra.mxu0 %v395
      %492 = vmatpush.msra.mxu0 %v394
      %493 = vmatmul.f32.gmra.mxu0 %v475
      %v494 = vpop.f32.mrf.mxu0
      %v495 = vadd.f32 0.0, %v494
      %496 = vdwg.mxu0
      %v497 = vadd.f32 %v471, %v495
      %v498 = vmul.f32 %v497, 0.5
      %v499 = vtanh.pop %v498
      %v500 = vmul.f32 %v499, 0.5
      %v501 = vadd.f32 %v500, 0.5
      %v502 = vtanh.pop %v497
      %v503 = vmul.f32 %v501, %v469
      %505 = vrot.lane.b32.xlu0 %v502, 80
      %v506 = vpop.permute.xlu0 %505
      %v508 = vmul.f32 %v501, %v506
      %510 = vrot.lane.b32.xlu0 %v508, 16
      %v511 = vpop.permute.xlu0 %510
      %v513 = vadd.f32 %v503, %v511
      %v514 = vtanh.pop %v513
      %516 = vrot.lane.b32.xlu0 %v514, 16
      %v517 = vpop.permute.xlu0 %516
      %v519 = vmul.f32 %v501, %v517
      %s520 = sadd.s32 %s397, 1
      %v521 = vstv %s520
      %vm522 = vcmp.lt.s32.totalorder %v521, %v396
      %v523 = vsel %vm522, 1, 0
      %524 = vset.pattern.permute.xlu0 0
      %525 = vperm.xlu0 %524, %v523
      %v526 = vpop.permute.xlu0 %525
      %vm527 = vcmp.eq.s32.totalorder %v526, 1
      %v528 = vsel %vm527, %v519, 0.0
      %530 = vrot.lane.b32.xlu0 %v528, 96
      %v531 = vpop.permute.xlu0 %530
      %s533 = scalar_lea.vmem %s375, 8
      %534 = vst.msk [vmem:[%s533] sm:$0xff] %vm401, %v531
      %v535 = vsel %vm527, %v519, %v468
      %v536 = vsel %vm527, %v513, %v469
      %s537 = scalar_lea.vmem %s358, 16
      %v538 = vld [vmem:[%s537] sm:$0xff]
      %540 = vrot.lane.b32.xlu0 %v535, 96
      %v541 = vpop.permute.xlu0 %540
      %v542 = vsel %vm401, %v541, 0
      %544 = vmatpush.msra.mxu0 0.0
      %545 = vmatpush.msra.mxu0 0.0
      %546 = vmatpush.msra.mxu0 0.0
      %547 = vmatpush.msra.mxu0 0.0
      %548 = vmatpush.msra.mxu0 0.0
      %549 = vmatpush.msra.mxu0 0.0
      %550 = vmatpush.msra.mxu0 0.0
      %551 = vmatpush.msra.mxu0 0.0
      %552 = vmatpush.msra.mxu0 0.0
      %553 = vmatpush.msra.mxu0 0.0
      %554 = vmatpush.msra.mxu0 0.0
      %555 = vmatpush.msra.mxu0 0.0
      %556 = vmatpush.msra.mxu0 0.0
      %557 = vmatpush.msra.mxu0 0.0
      %558 = vmatpush.msra.mxu0 %v395
      %559 = vmatpush.msra.mxu0 %v394
      %560 = vmatmul.f32.gmra.mxu0 %v542
      %v561 = vpop.f32.mrf.mxu0
      %v562 = vadd.f32 0.0, %v561
      %563 = vdwg.mxu0
      %v564 = vadd.f32 %v538, %v562
      %v565 = vmul.f32 %v564, 0.5
      %v566 = vtanh.pop %v565
      %v567 = vmul.f32 %v566, 0.5
      %v568 = vadd.f32 %v567, 0.5
      %v569 = vtanh.pop %v564
      %v570 = vmul.f32 %v568, %v536
      %572 = vrot.lane.b32.xlu0 %v569, 80
      %v573 = vpop.permute.xlu0 %572
      %v575 = vmul.f32 %v568, %v573
      %577 = vrot.lane.b32.xlu0 %v575, 16
      %v578 = vpop.permute.xlu0 %577
      %v580 = vadd.f32 %v570, %v578
      %v581 = vtanh.pop %v580
      %583 = vrot.lane.b32.xlu0 %v581, 16
      %v584 = vpop.permute.xlu0 %583
      %v586 = vmul.f32 %v568, %v584
      %s587 = sadd.s32 %s397, 2
      %v588 = vstv %s587
      %vm589 = vcmp.lt.s32.totalorder %v588, %v396
      %v590 = vsel %vm589, 1, 0
      %591 = vset.pattern.permute.xlu0 0
      %592 = vperm.xlu0 %591, %v590
      %v593 = vpop.permute.xlu0 %592
      %vm594 = vcmp.eq.s32.totalorder %v593, 1
      %v595 = vsel %vm594, %v586, 0.0
      %597 = vrot.lane.b32.xlu0 %v595, 96
      %v598 = vpop.permute.xlu0 %597
      %s600 = scalar_lea.vmem %s375, 16
      %601 = vst.msk [vmem:[%s600] sm:$0xff] %vm401, %v598
      %v602 = vsel %vm594, %v586, %v535
      %v603 = vsel %vm594, %v580, %v536
      %s604 = scalar_lea.vmem %s358, 24
      %v605 = vld [vmem:[%s604] sm:$0xff]
      %607 = vrot.lane.b32.xlu0 %v602, 96
      %v608 = vpop.permute.xlu0 %607
      %v609 = vsel %vm401, %v608, 0
      %611 = vmatpush.msra.mxu0 0.0
      %612 = vmatpush.msra.mxu0 0.0
      %613 = vmatpush.msra.mxu0 0.0
      %614 = vmatpush.msra.mxu0 0.0
      %615 = vmatpush.msra.mxu0 0.0
      %616 = vmatpush.msra.mxu0 0.0
      %617 = vmatpush.msra.mxu0 0.0
      %618 = vmatpush.msra.mxu0 0.0
      %619 = vmatpush.msra.mxu0 0.0
      %620 = vmatpush.msra.mxu0 0.0
      %621 = vmatpush.msra.mxu0 0.0
      %622 = vmatpush.msra.mxu0 0.0
      %623 = vmatpush.msra.mxu0 0.0
      %624 = vmatpush.msra.mxu0 0.0
      %625 = vmatpush.msra.mxu0 %v395
      %626 = vmatpush.msra.mxu0 %v394
      %627 = vmatmul.f32.gmra.mxu0 %v609
      %v628 = vpop.f32.mrf.mxu0
      %v629 = vadd.f32 0.0, %v628
      %630 = vdwg.mxu0
      %v631 = vadd.f32 %v605, %v629
      %v632 = vmul.f32 %v631, 0.5
      %v633 = vtanh.pop %v632
      %v634 = vmul.f32 %v633, 0.5
      %v635 = vadd.f32 %v634, 0.5
      %v636 = vtanh.pop %v631
      %v637 = vmul.f32 %v635, %v603
      %639 = vrot.lane.b32.xlu0 %v636, 80
      %v640 = vpop.permute.xlu0 %639
      %v642 = vmul.f32 %v635, %v640
      %644 = vrot.lane.b32.xlu0 %v642, 16
      %v645 = vpop.permute.xlu0 %644
      %v647 = vadd.f32 %v637, %v645
      %v648 = vtanh.pop %v647
      %650 = vrot.lane.b32.xlu0 %v648, 16
      %v651 = vpop.permute.xlu0 %650
      %v653 = vmul.f32 %v635, %v651
      %s654 = sadd.s32 %s397, 3
      %v655 = vstv %s654
      %vm656 = vcmp.lt.s32.totalorder %v655, %v396
      %v657 = vsel %vm656, 1, 0
      %658 = vset.pattern.permute.xlu0 0
      %659 = vperm.xlu0 %658, %v657
      %v660 = vpop.permute.xlu0 %659
      %vm661 = vcmp.eq.s32.totalorder %v660, 1
      %v662 = vsel %vm661, %v653, 0.0
      %664 = vrot.lane.b32.xlu0 %v662, 96
      %v665 = vpop.permute.xlu0 %664
      %s667 = scalar_lea.vmem %s375, 24
      %668 = vst.msk [vmem:[%s667] sm:$0xff] %vm401, %v665
      %v669 = vsel %vm661, %v653, %v602
      %v670 = vsel %vm661, %v647, %v603
      %672 = vrot.lane.b32.xlu0 %v669, 96
      %v673 = vpop.permute.xlu0 %672
      %675 = vst.msk [vmem:[#allocation2] sm:$0xff] %vm401, %v673
      %677 = vrot.lane.b32.xlu0 %v670, 112
      %v678 = vpop.permute.xlu0 %677
      %680 = vst.msk [vmem:[#allocation3] sm:$0xff] %vm401, %v678
      %p681 = scmp.eq.s32.totalorder %s24, 1
      // Predicated region
      $region45: #{_lambda_.3} parent=39 // pred_check
        %p682 = pneg %p681
      $region46: #{_lambda_.3} parent=39 // pred_check_branch
        %684 = sbr.rel (%p682) target = $region48
      $region47: #{_lambda_.3} parent=39 // pred_region
        %685 = vst.msk [vmem:[%s380] sm:$0xff] %vm401, %v673
        %686 = vst.msk [vmem:[%s384] sm:$0xff] %vm401, %v678
      $region48: #{_lambda_.3} parent=39 // pred_fallthru
        _
      %s687 = smul.u32 4, %s24
      %p688 = scmp.lt.s32.totalorder %s687, 7
      %s689 = scalar_select %p688, %s687, 7
      %p690 = scmp.lt.s32.totalorder %s23, 0
      %s691 = scalar_select %p690, %s23, 0
      %s692 = sadd.s32 %s691, %s689
      %s693 = smul.addr %s692, 8
      %s694 = scalar_lea.vmem %s5, %s693
      %p695 = scmp.lt.s32.totalorder %s23, 0
      %s696 = scalar_select %p695, %s23, 0
      %s697 = smul.addr %s696, 8
      %s698 = scalar_lea.vmem %s6, %s697
      %p699 = scmp.lt.s32.totalorder %s23, 0
      %s700 = scalar_select %p699, %s23, 0
      %s701 = smul.addr %s700, 8
      %s702 = scalar_lea.vmem %s7, %s701
      // Predicated region
      $region49: #{_lambda_.3} parent=39 // pred_check
        %p703 = pneg %p178
      $region50: #{_lambda_.3} parent=39 // pred_check_branch
        %705 = sbr.rel (%p703) target = $region52
      $region51: #{_lambda_.3} parent=39 // pred_region
        %s706 = smul.u32 4, %s24
      $region52: #{_lambda_.3} parent=39 // pred_fallthru
        _
      // Predicated region
      $region53: #{_lambda_.3} parent=39 // pred_check
        %p707 = pneg %p204
      $region54: #{_lambda_.3} parent=39 // pred_check_branch
        %709 = sbr.rel (%p707) target = $region56
      $region55: #{_lambda_.3} parent=39 // pred_region
        _
      $region56: #{_lambda_.3} parent=39 // pred_fallthru
        _
      // Predicated region
      $region57: #{_lambda_.3} parent=39 // pred_check
        %p710 = pneg %p230
      $region58: #{_lambda_.3} parent=39 // pred_check_branch
        %712 = sbr.rel (%p710) target = $region60
      $region59: #{_lambda_.3} parent=39 // pred_region
        _
      $region60: #{_lambda_.3} parent=39 // pred_fallthru
        _
      // Predicated region
      $region61: #{_lambda_.3} parent=39 // pred_check
        %p713 = pneg %p204
      $region62: #{_lambda_.3} parent=39 // pred_check_branch
        %715 = sbr.rel (%p713) target = $region64
      $region63: #{_lambda_.3} parent=39 // pred_region
        %p716 = scmp.lt.s32.totalorder %s23, 0
        %s717 = scalar_select %p716, %s23, 0
        %s718 = smul.addr %s717, 8
        %s719 = scalar_lea.vmem %s6, %s718
      $region64: #{_lambda_.3} parent=39 // pred_fallthru
        _
      // Predicated region
      $region65: #{_lambda_.3} parent=39 // pred_check
        %p720 = pneg %p230
      $region66: #{_lambda_.3} parent=39 // pred_check_branch
        %722 = sbr.rel (%p720) target = $region68
      $region67: #{_lambda_.3} parent=39 // pred_region
        %p723 = scmp.lt.s32.totalorder %s23, 0
        %s724 = scalar_select %p723, %s23, 0
        %s725 = smul.addr %s724, 8
        %s726 = scalar_lea.vmem %s7, %s725
      $region68: #{_lambda_.3} parent=39 // pred_fallthru
        _
    $region40: #{_lambda_.3} parent=5 // pred_fallthru
      _
    %p727 = scmp.le.s32.totalorder 2, %s14
    // Predicated region
    $region69: #{_lambda_.3} parent=5 // pred_check
      %p728 = pneg %p727
    $region70: #{_lambda_.3} parent=5 // pred_check_branch
      %730 = sbr.rel (%p728) target = $region72
    $region71: #{_lambda_.3} parent=5 // pred_region
      %s731 = ssub.s32 %s14, 2
      // Predicated region
      $region73: #{_lambda_.3} parent=71 // pred_check
        %p732 = pneg %p184
      $region74: #{_lambda_.3} parent=71 // pred_check_branch
        %734 = sbr.rel (%p732) target = $region76
      $region75: #{_lambda_.3} parent=71 // pred_region
        %s735 = smul.u32 4, %s26
        %p736 = scmp.lt.s32.totalorder %s735, 7
        %s737 = scalar_select %p736, %s735, 7
        %p738 = scmp.lt.s32.totalorder %s25, 0
        %s739 = scalar_select %p738, %s25, 0
        %s740 = sadd.s32 %s739, %s737
        %s741 = smul.addr %s740, 8
        %s742 = scalar_lea.vmem %s5, %s741
      $region76: #{_lambda_.3} parent=71 // pred_fallthru
        _
    $region72: #{_lambda_.3} parent=5 // pred_fallthru
      _
  $region6: #{_lambda_.3} parent=0 // loop_footer
    %s18 = sadd.s32 1, %s14
  $region7: #{_lambda_.3} parent=0 // loop_footer_branch
    %13 = sbr.rel target = $region3
  $region8: #{_lambda_.3} parent=0 // loop_exit
    _

// kernel: _lambda_.4
$region0: #{_lambda_.4}
  #allocation0 [shape = 'u32[]', space=smem, size = 0x4, offset = 0x4, fixed_abs, tag = 'smem constant byte address 0x4 - core index']
  #allocation1 [shape = 'u32[72,128]{1,0:T(1,128)}', space=vmem, size = 0x9000, scoped, tag = 'internal scratch']
  #allocation2 [shape = 'f32[8,16]{1,0:T(8,128)}', space=vmem, size = 0x1000, scoped, tag = 'scratch operand']
  #allocation3 [shape = 'f32[8,16]{1,0:T(8,128)}', space=vmem, size = 0x1000, scoped, tag = 'scratch operand']
  %s0 = inlined_call_operand.vmem [shape: s32[8,1], index: 0, kind: input, shape index: {}]
  %s1 = inlined_call_operand.vmem [shape: f32[8,8,64], index: 1, kind: input, shape index: {}]
  %s2 = inlined_call_operand.vmem [shape: f32[16,64], index: 2, kind: input, shape index: {}]
  %s3 = inlined_call_operand.vmem [shape: f32[8,16], index: 3, kind: input, shape index: {}, may-alias: {3,4}]
  %s4 = inlined_call_operand.vmem [shape: f32[8,16], index: 4, kind: input, shape index: {}, may-alias: {3,4}]
  %s5 = inlined_call_operand.vmem [shape: f32[8,8,16], index: 5, kind: output, shape index: {0}]
  %s6 = inlined_call_operand.vmem [shape: f32[8,16], index: 6, kind: output, shape index: {1}]
  %s7 = inlined_call_operand.vmem [shape: f32[8,16], index: 7, kind: output, shape index: {2}]
  %8 = xla_tuple %s5, %s6, %s7
  %s9 = sld [smem:[#allocation0]]
  $region77: #{_lambda_.4} parent=0
    _
  %s11 = ssub.s32 1, %s9
  %s12 = scalar_select 0, %s11, %s9
  loop: start=0, step=1, limit=4
  $region2: #{_lambda_.4} parent=0 // loop_pre_header
    _
  $region3: #{_lambda_.4} parent=0 // loop_header
    %s14 = sphi 0, %s18
    %p15 = scmp.ge.s32.totalorder %s14, 4
    %s21 = sphi 0, %s33
    %s22 = sphi 0, %s29
    %s23 = sphi 0, %s21
    %s24 = sphi 0, %s22
    %s25 = sphi 0, %s23
    %s26 = sphi 0, %s24
    %s36 = sphi 0, %s38
    %s39 = sphi 0, %s36
    %s40 = sphi 0, %s39
    %s56 = sphi 0, %s40
    %s66 = sphi 0, %s68
    %s69 = sphi 0, %s66
    %s70 = sphi 0, %s69
    %s86 = sphi 0, %s70
    %s90 = sphi 0, %s90
    %s92 = sphi 0, %s90
    %s93 = sphi 0, %s92
    %s107 = sphi 0, %s93
    %s113 = sphi 0, %s115
    %s116 = sphi 0, %s113
    %s117 = sphi 0, %s116
    %s133 = sphi 0, %s117
    %s139 = sphi 0, %s141
    %s142 = sphi 0, %s139
    %s143 = sphi 0, %s142
    %s159 = sphi 0, %s143
    %s169 = sphi 0, %s171
    %s172 = sphi 0, %s169
    %s173 = sphi 0, %s172
    %s189 = sphi 0, %s173
    %s195 = sphi 0, %s197
    %s198 = sphi 0, %s195
    %s199 = sphi 0, %s198
    %s215 = sphi 0, %s199
    %s221 = sphi 0, %s223
    %s224 = sphi 0, %s221
    %s225 = sphi 0, %s224
    %s241 = sphi 0, %s225
  $region4: #{_lambda_.4} parent=0 // loop_header_branch
    %17 = sbr.rel (%p15) target = $region8
  $region5: #{_lambda_.4} parent=0 // loop_body
    %s19 = ssub.s32 %s14, 1
    %s20 = ssub.s32 %s14, 2
    %s27 = sadd.s32 1, %s22
    %p28 = scmp.ge.s32.totalorder %s27, 2
    %s29 = scalar_select %p28, 0, %s27
    %s30 = sadd.s32 1, %s21
    %s31 = scalar_select %p28, %s30, %s21
    %p32 = scmp.ge.s32.totalorder %s31, 1
    %s33 = scalar_select %p32, 0, %s31
    %s34 = ssub.s32 %s21, %s33
    %p35 = scmp.eq.s32.totalorder %s34, 0
    %s37 = sadd.s32 %s36, 1
    %s38 = scalar_select %p35, %s36, %s37
    %p41 = pneg %p35
    %p42 = scmp.eq.s32.totalorder %s14, 1
    %p43 = por %p41, %p42
    %p44 = scmp.ne.s32.totalorder %s36, %s39
    %p45 = scmp.eq.s32.totalorder %s14, 0
    %p46 = por %p44, %p45
    %p47 = scmp.ne.s32.totalorder %s36, %s39
    %p48 = scmp.eq.s32.totalorder %s19, 1
    %p49 = por %p47, %p48
    %p50 = scmp.ne.s32.totalorder %s39, %s40
    %p51 = scmp.eq.s32.totalorder %s19, 0
    %p52 = por %p50, %p51
    %p53 = scmp.ne.s32.totalorder %s39, %s40
    %p54 = scmp.eq.s32.totalorder %s20, 1
    %p55 = por %p53, %p54
    %p57 = scmp.ne.s32.totalorder %s40, %s56
    %p58 = scmp.eq.s32.totalorder %s20, 0
    %p59 = por %p57, %p58
    %s60 = ssub.s32 1, %s22
    %s61 = ssub.s32 1, %s29
    %s62 = ssub.s32 %s60, %s61
    %s63 = ssub.s32 %s21, %s33
    %s64 = sor.u32 %s62, %s63
    %p65 = scmp.eq.s32.totalorder %s64, 0
    %s67 = sadd.s32 %s66, 1
    %s68 = scalar_select %p65, %s66, %s67
    %p71 = pneg %p65
    %p72 = scmp.eq.s32.totalorder %s14, 1
    %p73 = por %p71, %p72
    %p74 = scmp.ne.s32.totalorder %s66, %s69
    %p75 = scmp.eq.s32.totalorder %s14, 0
    %p76 = por %p74, %p75
    %p77 = scmp.ne.s32.totalorder %s66, %s69
    %p78 = scmp.eq.s32.totalorder %s19, 1
    %p79 = por %p77, %p78
    %p80 = scmp.ne.s32.totalorder %s69, %s70
    %p81 = scmp.eq.s32.totalorder %s19, 0
    %p82 = por %p80, %p81
    %p83 = scmp.ne.s32.totalorder %s69, %s70
    %p84 = scmp.eq.s32.totalorder %s20, 1
    %p85 = por %p83, %p84
    %p87 = scmp.ne.s32.totalorder %s70, %s86
    %p88 = scmp.eq.s32.totalorder %s20, 0
    %p89 = por %p87, %p88
    %s91 = sadd.s32 %s90, 1
    %p94 = scmp.eq.s32.totalorder %s14, 1
    %p95 = scmp.ne.s32.totalorder %s90, %s92
    %p96 = scmp.eq.s32.totalorder %s14, 0
    %p97 = por %p95, %p96
    %p98 = scmp.ne.s32.totalorder %s90, %s92
    %p99 = scmp.eq.s32.totalorder %s19, 1
    %p100 = por %p98, %p99
    %p101 = scmp.ne.s32.totalorder %s92, %s93
    %p102 = scmp.eq.s32.totalorder %s19, 0
    %p103 = por %p101, %p102
    %p104 = scmp.ne.s32.totalorder %s92, %s93
    %p105 = scmp.eq.s32.totalorder %s20, 1
    %p106 = por %p104, %p105
    %p108 = scmp.ne.s32.totalorder %s93, %s107
    %p109 = scmp.eq.s32.totalorder %s20, 0
    %p110 = por %p108, %p109
    %s111 = ssub.s32 %s21, %s33
    %p112 = scmp.eq.s32.totalorder %s111, 0
    %s114 = sadd.s32 %s113, 1
    %s115 = scalar_select %p112, %s113, %s114
    %p118 = pneg %p112
    %p119 = scmp.eq.s32.totalorder %s14, 1
    %p120 = por %p118, %p119
    %p121 = scmp.ne.s32.totalorder %s113, %s116
    %p122 = scmp.eq.s32.totalorder %s14, 0
    %p123 = por %p121, %p122
    %p124 = scmp.ne.s32.totalorder %s113, %s116
    %p125 = scmp.eq.s32.totalorder %s19, 1
    %p126 = por %p124, %p125
    %p127 = scmp.ne.s32.totalorder %s116, %s117
    %p128 = scmp.eq.s32.totalorder %s19, 0
    %p129 = por %p127, %p128
    %p130 = scmp.ne.s32.totalorder %s116, %s117
    %p131 = scmp.eq.s32.totalorder %s20, 1
    %p132 = por %p130, %p131
    %p134 = scmp.ne.s32.totalorder %s117, %s133
    %p135 = scmp.eq.s32.totalorder %s20, 0
    %p136 = por %p134, %p135
    %s137 = ssub.s32 %s21, %s33
    %p138 = scmp.eq.s32.totalorder %s137, 0
    %s140 = sadd.s32 %s139, 1
    %s141 = scalar_select %p138, %s139, %s140
    %p144 = pneg %p138
    %p145 = scmp.eq.s32.totalorder %s14, 1
    %p146 = por %p144, %p145
    %p147 = scmp.ne.s32.totalorder %s139, %s142
    %p148 = scmp.eq.s32.totalorder %s14, 0
    %p149 = por %p147, %p148
    %p150 = scmp.ne.s32.totalorder %s139, %s142
    %p151 = scmp.eq.s32.totalorder %s19, 1
    %p152 = por %p150, %p151
    %p153 = scmp.ne.s32.totalorder %s142, %s143
    %p154 = scmp.eq.s32.totalorder %s19, 0
    %p155 = por %p153, %p154
    %p156 = scmp.ne.s32.totalorder %s142, %s143
    %p157 = scmp.eq.s32.totalorder %s20, 1
    %p158 = por %p156, %p157
    %p160 = scmp.ne.s32.totalorder %s143, %s159
    %p161 = scmp.eq.s32.totalorder %s20, 0
    %p162 = por %p160, %p161
    %s163 = ssub.s32 1, %s22
    %s164 = ssub.s32 1, %s29
    %s165 = ssub.s32 %s163, %s164
    %s166 = ssub.s32 %s21, %s33
    %s167 = sor.u32 %s165, %s166
    %p168 = scmp.eq.s32.totalorder %s167, 0
    %s170 = sadd.s32 %s169, 1
    %s171 = scalar_select %p168, %s169, %s170
    %p174 = pneg %p168
    %p175 = scmp.eq.s32.totalorder %s14, 1
    %p176 = por %p174, %p175
    %p177 = scmp.ne.s32.totalorder %s169, %s172
    %p178 = scmp.eq.s32.totalorder %s14, 0
    %p179 = por %p177, %p178
    %p180 = scmp.ne.s32.totalorder %s169, %s172
    %p181 = scmp.eq.s32.totalorder %s19, 1
    %p182 = por %p180, %p181
    %p183 = scmp.ne.s32.totalorder %s172, %s173
    %p184 = scmp.eq.s32.totalorder %s19, 0
    %p185 = por %p183, %p184
    %p186 = scmp.ne.s32.totalorder %s172, %s173
    %p187 = scmp.eq.s32.totalorder %s20, 1
    %p188 = por %p186, %p187
    %p190 = scmp.ne.s32.totalorder %s173, %s189
    %p191 = scmp.eq.s32.totalorder %s20, 0
    %p192 = por %p190, %p191
    %s193 = ssub.s32 %s21, %s33
    %p194 = scmp.eq.s32.totalorder %s193, 0
    %s196 = sadd.s32 %s195, 1
    %s197 = scalar_select %p194, %s195, %s196
    %p200 = pneg %p194
    %p201 = scmp.eq.s32.totalorder %s14, 1
    %p202 = por %p200, %p201
    %p203 = scmp.ne.s32.totalorder %s195, %s198
    %p204 = scmp.eq.s32.totalorder %s14, 0
    %p205 = por %p203, %p204
    %p206 = scmp.ne.s32.totalorder %s195, %s198
    %p207 = scmp.eq.s32.totalorder %s19, 1
    %p208 = por %p206, %p207
    %p209 = scmp.ne.s32.totalorder %s198, %s199
    %p210 = scmp.eq.s32.totalorder %s19, 0
    %p211 = por %p209, %p210
    %p212 = scmp.ne.s32.totalorder %s198, %s199
    %p213 = scmp.eq.s32.totalorder %s20, 1
    %p214 = por %p212, %p213
    %p216 = scmp.ne.s32.totalorder %s199, %s215
    %p217 = scmp.eq.s32.totalorder %s20, 0
    %p218 = por %p216, %p217
    %s219 = ssub.s32 %s21, %s33
    %p220 = scmp.eq.s32.totalorder %s219, 0
    %s222 = sadd.s32 %s221, 1
    %s223 = scalar_select %p220, %s221, %s222
    %p226 = pneg %p220
    %p227 = scmp.eq.s32.totalorder %s14, 1
    %p228 = por %p226, %p227
    %p229 = scmp.ne.s32.totalorder %s221, %s224
    %p230 = scmp.eq.s32.totalorder %s14, 0
    %p231 = por %p229, %p230
    %p232 = scmp.ne.s32.totalorder %s221, %s224
    %p233 = scmp.eq.s32.totalorder %s19, 1
    %p234 = por %p232, %p233
    %p235 = scmp.ne.s32.totalorder %s224, %s225
    %p236 = scmp.eq.s32.totalorder %s19, 0
    %p237 = por %p235, %p236
    %p238 = scmp.ne.s32.totalorder %s224, %s225
    %p239 = scmp.eq.s32.totalorder %s20, 1
    %p240 = por %p238, %p239
    %p242 = scmp.ne.s32.totalorder %s225, %s241
    %p243 = scmp.eq.s32.totalorder %s20, 0
    %p244 = por %p242, %p243
    %p245 = scmp.le.s32.totalorder 1, %s14
    %p246 = scmp.lt.s32.totalorder %s14, 3
    %p247 = pnand %p245, %p246
    %p248 = pneg %p247
    // Predicated region
    $region9: #{_lambda_.4} parent=5 // pred_check
      _
    $region10: #{_lambda_.4} parent=5 // pred_check_branch
      %250 = sbr.rel (%p247) target = $region12
    $region11: #{_lambda_.4} parent=5 // pred_region
      %s251 = ssub.s32 %s14, 1
      // Predicated region
      $region13: #{_lambda_.4} parent=11 // pred_check
        %p252 = pneg %p52
      $region14: #{_lambda_.4} parent=11 // pred_check_branch
        %254 = sbr.rel (%p252) target = $region16
      $region15: #{_lambda_.4} parent=11 // pred_region
        %p255 = scmp.lt.s32.totalorder %s23, 0
        %s256 = scalar_select %p255, %s23, 0
        %s257 = smul.addr %s256, 8
        %s258 = scalar_lea.vmem %s0, %s257
      $region16: #{_lambda_.4} parent=11 // pred_fallthru
        _
      // Predicated region
      $region17: #{_lambda_.4} parent=11 // pred_check
        %p259 = pneg %p103
      $region18: #{_lambda_.4} parent=11 // pred_check_branch
        %261 = sbr.rel (%p259) target = $region20
      $region19: #{_lambda_.4} parent=11 // pred_region
        _
      $region20: #{_lambda_.4} parent=11 // pred_fallthru
        _
      // Predicated region
      $region21: #{_lambda_.4} parent=11 // pred_check
        %p262 = pneg %p129
      $region22: #{_lambda_.4} parent=11 // pred_check_branch
        %264 = sbr.rel (%p262) target = $region24
      $region23: #{_lambda_.4} parent=11 // pred_region
        %p265 = scmp.lt.s32.totalorder %s23, 0
        %s266 = scalar_select %p265, %s23, 0
        %s267 = smul.addr %s266, 8
        %s268 = scalar_lea.vmem %s3, %s267
      $region24: #{_lambda_.4} parent=11 // pred_fallthru
        _
      // Predicated region
      $region25: #{_lambda_.4} parent=11 // pred_check
        %p269 = pneg %p155
      $region26: #{_lambda_.4} parent=11 // pred_check_branch
        %271 = sbr.rel (%p269) target = $region28
      $region27: #{_lambda_.4} parent=11 // pred_region
        %p272 = scmp.lt.s32.totalorder %s23, 0
        %s273 = scalar_select %p272, %s23, 0
        %s274 = smul.addr %s273, 8
        %s275 = scalar_lea.vmem %s4, %s274
      $region28: #{_lambda_.4} parent=11 // pred_fallthru
        _
    $region12: #{_lambda_.4} parent=5 // pred_fallthru
      _
    %p276 = scmp.lt.s32.totalorder %s14, 2
    // Predicated region
    $region29: #{_lambda_.4} parent=5 // pred_check
      %p277 = pneg %p276
    $region30: #{_lambda_.4} parent=5 // pred_check_branch
      %279 = sbr.rel (%p277) target = $region32
    $region31: #{_lambda_.4} parent=5 // pred_region
      // Predicated region
      $region33: #{_lambda_.4} parent=31 // pred_check
        %p280 = pneg %p76
      $region34: #{_lambda_.4} parent=31 // pred_check_branch
        %282 = sbr.rel (%p280) target = $region36
      $region35: #{_lambda_.4} parent=31 // pred_region
        %s283 = ssub.s32 1, %s22
        %s284 = smul.u32 4, %s283
        %p285 = scmp.lt.s32.totalorder %s284, 7
        %s286 = scalar_select %p285, %s284, 7
        %p287 = scmp.lt.s32.totalorder %s21, 0
        %s288 = scalar_select %p287, %s21, 0
        %s289 = sadd.s32 %s288, %s286
        %s290 = smul.addr %s289, 8
        %s291 = scalar_lea.vmem %s1, %s290
        %s292 = ssub.s32 1, %s22
        %s293 = smul.u32 4, %s292
      $region36: #{_lambda_.4} parent=31 // pred_fallthru
        _
    $region32: #{_lambda_.4} parent=5 // pred_fallthru
      _
    %p294 = scmp.le.s32.totalorder 1, %s14
    %p295 = scmp.lt.s32.totalorder %s14, 3
    %p296 = pnand %p294, %p295
    %p297 = pneg %p296
    // Predicated region
    $region37: #{_lambda_.4} parent=5 // pred_check
      _
    $region38: #{_lambda_.4} parent=5 // pred_check_branch
      %299 = sbr.rel (%p296) target = $region40
    $region39: #{_lambda_.4} parent=5 // pred_region
      %s300 = ssub.s32 %s14, 1
      %p301 = scmp.lt.s32.totalorder %s23, 0
      %s302 = scalar_select %p301, %s23, 0
      %s303 = smul.addr %s302, 8
      %s304 = scalar_lea.vmem %s0, %s303
      %p305 = pneg %p52
      %p306 = pneg %p49
      %s307 = ssub.s32 1, %s24
      %s308 = smul.u32 4, %s307
      %p309 = scmp.lt.s32.totalorder %s308, 7
      %s310 = scalar_select %p309, %s308, 7
      %p311 = scmp.lt.s32.totalorder %s23, 0
      %s312 = scalar_select %p311, %s23, 0
      %s313 = sadd.s32 %s312, %s310
      %s314 = smul.addr %s313, 8
      %s315 = scalar_lea.vmem %s1, %s314
      %p316 = pneg %p82
      %p317 = pneg %p79
      %p318 = pneg %p103
      %p319 = pneg %p100
      %p320 = scmp.lt.s32.totalorder %s23, 0
      %s321 = scalar_select %p320, %s23, 0
      %s322 = smul.addr %s321, 8
      %s323 = scalar_lea.vmem %s3, %s322
      %p324 = pneg %p129
      %p325 = pneg %p126
      %p326 = scmp.lt.s32.totalorder %s23, 0
      %s327 = scalar_select %p326, %s23, 0
      %s328 = smul.addr %s327, 8
      %s329 = scalar_lea.vmem %s4, %s328
      %p330 = pneg %p155
      %p331 = pneg %p152
      %p332 = pneg %p185
      %p333 = pneg %p182
      %s334 = ssub.s32 1, %s24
      %s335 = smul.u32 4, %s334
      %p336 = scmp.lt.s32.totalorder %s335, 7
      %s337 = scalar_select %p336, %s335, 7
      %p338 = scmp.lt.s32.totalorder %s23, 0
      %s339 = scalar_select %p338, %s23, 0
      %s340 = sadd.s32 %s339, %s337
      %s341 = smul.addr %s340, 8
      %s342 = scalar_lea.vmem %s5, %s341
      %p343 = pneg %p211
      %p344 = pneg %p208
      %p345 = scmp.lt.s32.totalorder %s23, 0
      %s346 = scalar_select %p345, %s23, 0
      %s347 = smul.addr %s346, 8
      %s348 = scalar_lea.vmem %s6, %s347
      %p349 = pneg %p237
      %p350 = pneg %p234
      %p351 = scmp.lt.s32.totalorder %s23, 0
      %s352 = scalar_select %p351, %s23, 0
      %s353 = smul.addr %s352, 8
      %s354 = scalar_lea.vmem %s7, %s353
      %p355 = scmp.lt.s32.totalorder %s23, 0
      %s356 = scalar_select %p355, %s23, 0
      %s357 = smul.addr %s356, 8
      %s358 = scalar_lea.vmem %s0, %s357
      %s359 = ssub.s32 1, %s24
      %s360 = smul.u32 4, %s359
      %p361 = scmp.lt.s32.totalorder %s360, 7
      %s362 = scalar_select %p361, %s360, 7
      %p363 = scmp.lt.s32.totalorder %s23, 0
      %s364 = scalar_select %p363, %s23, 0
      %s365 = sadd.s32 %s364, %s362
      %s366 = smul.addr %s365, 8
      %s367 = scalar_lea.vmem %s1, %s366
      %s368 = ssub.s32 1, %s24
      %s369 = smul.u32 4, %s368
      %p370 = scmp.lt.s32.totalorder %s23, 0
      %s371 = scalar_select %p370, %s23, 0
      %s372 = smul.addr %s371, 8
      %s373 = scalar_lea.vmem %s3, %s372
      %p374 = scmp.lt.s32.totalorder %s23, 0
      %s375 = scalar_select %p374, %s23, 0
      %s376 = smul.addr %s375, 8
      %s377 = scalar_lea.vmem %s4, %s376
      %s378 = ssub.s32 1, %s24
      %s379 = smul.u32 4, %s378
      %p380 = scmp.lt.s32.totalorder %s379, 7
      %s381 = scalar_select %p380, %s379, 7
      %p382 = scmp.lt.s32.totalorder %s23, 0
      %s383 = scalar_select %p382, %s23, 0
      %s384 = sadd.s32 %s383, %s381
      %s385 = smul.addr %s384, 8
      %s386 = scalar_lea.vmem %s5, %s385
      %s387 = ssub.s32 1, %s24
      %s388 = smul.u32 4, %s387
      %p389 = scmp.lt.s32.totalorder %s23, 0
      %s390 = scalar_select %p389, %s23, 0
      %s391 = smul.addr %s390, 8
      %s392 = scalar_lea.vmem %s6, %s391
      %p393 = scmp.lt.s32.totalorder %s23, 0
      %s394 = scalar_select %p393, %s23, 0
      %s395 = smul.addr %s394, 8
      %s396 = scalar_lea.vmem %s7, %s395
      %p397 = scmp.eq.s32.totalorder %s24, 0
      // Predicated region
      $region41: #{_lambda_.4} parent=39 // pred_check
        %p398 = pneg %p397
      $region42: #{_lambda_.4} parent=39 // pred_check_branch
        %400 = sbr.rel (%p398) target = $region44
      $region43: #{_lambda_.4} parent=39 // pred_region
        %v401 = vld [vmem:[%s373] sm:$0xff]
        %vm402 = vcmask 130048
        %403 = vst.msk [vmem:[#allocation2] sm:$0xff] %vm402, %v401
        %v404 = vld [vmem:[%s377] sm:$0xff]
        %405 = vst.msk [vmem:[#allocation3] sm:$0xff] %vm402, %v404
      $region44: #{_lambda_.4} parent=39 // pred_fallthru
        _
      %v406 = vld [vmem:[%s2] sm:$0xff]
      %v407 = vld [vmem:[%s2 + $0x8] sm:$0xff]
      %v408 = vld [vmem:[%s358] sm:$0xff]
      %v409 = vsub.s32 8, %v408
      %s410 = smul.u32 %s24, 4
      %v411 = vld [vmem:[#allocation2] sm:$0xff]
      %v412 = vld [vmem:[#allocation3] sm:$0xff]
      %s413 = scalar_lea.vmem %s367, 24
      %v414 = vld [vmem:[%s413] sm:$0xff]
      %vm415 = vcmask 130048
      %v417 = vsel %vm415, %v411, 0
      %419 = vmatpush.msra.mxu0 0.0
      %420 = vmatpush.msra.mxu0 0.0
      %421 = vmatpush.msra.mxu0 0.0
      %422 = vmatpush.msra.mxu0 0.0
      %423 = vmatpush.msra.mxu0 0.0
      %424 = vmatpush.msra.mxu0 0.0
      %425 = vmatpush.msra.mxu0 0.0
      %426 = vmatpush.msra.mxu0 0.0
      %427 = vmatpush.msra.mxu0 0.0
      %428 = vmatpush.msra.mxu0 0.0
      %429 = vmatpush.msra.mxu0 0.0
      %430 = vmatpush.msra.mxu0 0.0
      %431 = vmatpush.msra.mxu0 0.0
      %432 = vmatpush.msra.mxu0 0.0
      %433 = vmatpush.msra.mxu0 %v407
      %434 = vmatpush.msra.mxu0 %v406
      %435 = vmatmul.f32.gmra.mxu0 %v417
      %v436 = vpop.f32.mrf.mxu0
      %v437 = vadd.f32 0.0, %v436
      %438 = vdwg.mxu0
      %v439 = vadd.f32 %v414, %v437
      %v440 = vmul.f32 %v439, 0.5
      %v441 = vtanh.pop %v440
      %v442 = vmul.f32 %v441, 0.5
      %v443 = vadd.f32 %v442, 0.5
      %v444 = vtanh.pop %v439
      %446 = vrot.lane.b32.xlu0 %v412, 16
      %v447 = vpop.permute.xlu0 %446
      %v449 = vmul.f32 %v443, %v447
      %451 = vrot.lane.b32.xlu0 %v444, 80
      %v452 = vpop.permute.xlu0 %451
      %v454 = vmul.f32 %v443, %v452
      %456 = vrot.lane.b32.xlu0 %v454, 16
      %v457 = vpop.permute.xlu0 %456
      %v459 = vadd.f32 %v449, %v457
      %v460 = vtanh.pop %v459
      %462 = vrot.lane.b32.xlu0 %v460, 16
      %v463 = vpop.permute.xlu0 %462
      %v465 = vmul.f32 %v443, %v463
      %v466 = vstv %s410
      %vm467 = vcmp.ge.s32.totalorder %v466, %v409
      %v468 = vsel %vm467, 1, 0
      %469 = vset.pattern.permute.xlu0 0
      %470 = vperm.xlu0 %469, %v468
      %v471 = vpop.permute.xlu0 %470
      %vm472 = vcmp.eq.s32.totalorder %v471, 1
      %v473 = vsel %vm472, %v465, 0.0
      %475 = vrot.lane.b32.xlu0 %v473, 96
      %v476 = vpop.permute.xlu0 %475
      %s478 = scalar_lea.vmem %s386, 24
      %479 = vst.msk [vmem:[%s478] sm:$0xff] %vm415, %v476
      %480 = vrot.lane.b32.xlu0 %v411, 32
      %v481 = vpop.permute.xlu0 %480
      %v483 = vsel %vm472, %v465, %v481
      %v484 = vsel %vm472, %v459, %v447
      %s485 = scalar_lea.vmem %s367, 16
      %v486 = vld [vmem:[%s485] sm:$0xff]
      %488 = vrot.lane.b32.xlu0 %v483, 96
      %v489 = vpop.permute.xlu0 %488
      %v490 = vsel %vm415, %v489, 0
      %492 = vmatpush.msra.mxu0 0.0
      %493 = vmatpush.msra.mxu0 0.0
      %494 = vmatpush.msra.mxu0 0.0
      %495 = vmatpush.msra.mxu0 0.0
      %496 = vmatpush.msra.mxu0 0.0
      %497 = vmatpush.msra.mxu0 0.0
      %498 = vmatpush.msra.mxu0 0.0
      %499 = vmatpush.msra.mxu0 0.0
      %500 = vmatpush.msra.mxu0 0.0
      %501 = vmatpush.msra.mxu0 0.0
      %502 = vmatpush.msra.mxu0 0.0
      %503 = vmatpush.msra.mxu0 0.0
      %504 = vmatpush.msra.mxu0 0.0
      %505 = vmatpush.msra.mxu0 0.0
      %506 = vmatpush.msra.mxu0 %v407
      %507 = vmatpush.msra.mxu0 %v406
      %508 = vmatmul.f32.gmra.mxu0 %v490
      %v509 = vpop.f32.mrf.mxu0
      %v510 = vadd.f32 0.0, %v509
      %511 = vdwg.mxu0
      %v512 = vadd.f32 %v486, %v510
      %v513 = vmul.f32 %v512, 0.5
      %v514 = vtanh.pop %v513
      %v515 = vmul.f32 %v514, 0.5
      %v516 = vadd.f32 %v515, 0.5
      %v517 = vtanh.pop %v512
      %v518 = vmul.f32 %v516, %v484
      %520 = vrot.lane.b32.xlu0 %v517, 80
      %v521 = vpop.permute.xlu0 %520
      %v523 = vmul.f32 %v516, %v521
      %525 = vrot.lane.b32.xlu0 %v523, 16
      %v526 = vpop.permute.xlu0 %525
      %v528 = vadd.f32 %v518, %v526
      %v529 = vtanh.pop %v528
      %531 = vrot.lane.b32.xlu0 %v529, 16
      %v532 = vpop.permute.xlu0 %531
      %v534 = vmul.f32 %v516, %v532
      %s535 = sadd.s32 %s410, 1
      %v536 = vstv %s535
      %vm537 = vcmp.ge.s32.totalorder %v536, %v409
      %v538 = vsel %vm537, 1, 0
      %539 = vset.pattern.permute.xlu0 0
      %540 = vperm.xlu0 %539, %v538
      %v541 = vpop.permute.xlu0 %540
      %vm542 = vcmp.eq.s32.totalorder %v541, 1
      %v543 = vsel %vm542, %v534, 0.0
      %545 = vrot.lane.b32.xlu0 %v543, 96
      %v546 = vpop.permute.xlu0 %545
      %s548 = scalar_lea.vmem %s386, 16
      %549 = vst.msk [vmem:[%s548] sm:$0xff] %vm415, %v546
      %v550 = vsel %vm542, %v534, %v483
      %v551 = vsel %vm542, %v528, %v484
      %s552 = scalar_lea.vmem %s367, 8
      %v553 = vld [vmem:[%s552] sm:$0xff]
      %555 = vrot.lane.b32.xlu0 %v550, 96
      %v556 = vpop.permute.xlu0 %555
      %v557 = vsel %vm415, %v556, 0
      %559 = vmatpush.msra.mxu0 0.0
      %560 = vmatpush.msra.mxu0 0.0
      %561 = vmatpush.msra.mxu0 0.0
      %562 = vmatpush.msra.mxu0 0.0
      %563 = vmatpush.msra.mxu0 0.0
      %564 = vmatpush.msra.mxu0 0.0
      %565 = vmatpush.msra.mxu0 0.0
      %566 = vmatpush.msra.mxu0 0.0
      %567 = vmatpush.msra.mxu0 0.0
      %568 = vmatpush.msra.mxu0 0.0
      %569 = vmatpush.msra.mxu0 0.0
      %570 = vmatpush.msra.mxu0 0.0
      %571 = vmatpush.msra.mxu0 0.0
      %572 = vmatpush.msra.mxu0 0.0
      %573 = vmatpush.msra.mxu0 %v407
      %574 = vmatpush.msra.mxu0 %v406
      %575 = vmatmul.f32.gmra.mxu0 %v557
      %v576 = vpop.f32.mrf.mxu0
      %v577 = vadd.f32 0.0, %v576
      %578 = vdwg.mxu0
      %v579 = vadd.f32 %v553, %v577
      %v580 = vmul.f32 %v579, 0.5
      %v581 = vtanh.pop %v580
      %v582 = vmul.f32 %v581, 0.5
      %v583 = vadd.f32 %v582, 0.5
      %v584 = vtanh.pop %v579
      %v585 = vmul.f32 %v583, %v551
      %587 = vrot.lane.b32.xlu0 %v584, 80
      %v588 = vpop.permute.xlu0 %587
      %v590 = vmul.f32 %v583, %v588
      %592 = vrot.lane.b32.xlu0 %v590, 16
      %v593 = vpop.permute.xlu0 %592
      %v595 = vadd.f32 %v585, %v593
      %v596 = vtanh.pop %v595
      %598 = vrot.lane.b32.xlu0 %v596, 16
      %v599 = vpop.permute.xlu0 %598
      %v601 = vmul.f32 %v583, %v599
      %s602 = sadd.s32 %s410, 2
      %v603 = vstv %s602
      %vm604 = vcmp.ge.s32.totalorder %v603, %v409
      %v605 = vsel %vm604, 1, 0
      %606 = vset.pattern.permute.xlu0 0
      %607 = vperm.xlu0 %606, %v605
      %v608 = vpop.permute.xlu0 %607
      %vm609 = vcmp.eq.s32.totalorder %v608, 1
      %v610 = vsel %vm609, %v601, 0.0
      %612 = vrot.lane.b32.xlu0 %v610, 96
      %v613 = vpop.permute.xlu0 %612
      %s615 = scalar_lea.vmem %s386, 8
      %616 = vst.msk [vmem:[%s615] sm:$0xff] %vm415, %v613
      %v617 = vsel %vm609, %v601, %v550
      %v618 = vsel %vm609, %v595, %v551
      %v619 = vld [vmem:[%s367] sm:$0xff]
      %621 = vrot.lane.b32.xlu0 %v617, 96
      %v622 = vpop.permute.xlu0 %621
      %v623 = vsel %vm415, %v622, 0
      %625 = vmatpush.msra.mxu0 0.0
      %626 = vmatpush.msra.mxu0 0.0
      %627 = vmatpush.msra.mxu0 0.0
      %628 = vmatpush.msra.mxu0 0.0
      %629 = vmatpush.msra.mxu0 0.0
      %630 = vmatpush.msra.mxu0 0.0
      %631 = vmatpush.msra.mxu0 0.0
      %632 = vmatpush.msra.mxu0 0.0
      %633 = vmatpush.msra.mxu0 0.0
      %634 = vmatpush.msra.mxu0 0.0
      %635 = vmatpush.msra.mxu0 0.0
      %636 = vmatpush.msra.mxu0 0.0
      %637 = vmatpush.msra.mxu0 0.0
      %638 = vmatpush.msra.mxu0 0.0
      %639 = vmatpush.msra.mxu0 %v407
      %640 = vmatpush.msra.mxu0 %v406
      %641 = vmatmul.f32.gmra.mxu0 %v623
      %v642 = vpop.f32.mrf.mxu0
      %v643 = vadd.f32 0.0, %v642
      %644 = vdwg.mxu0
      %v645 = vadd.f32 %v619, %v643
      %v646 = vmul.f32 %v645, 0.5
      %v647 = vtanh.pop %v646
      %v648 = vmul.f32 %v647, 0.5
      %v649 = vadd.f32 %v648, 0.5
      %v650 = vtanh.pop %v645
      %v651 = vmul.f32 %v649, %v618
      %653 = vrot.lane.b32.xlu0 %v650, 80
      %v654 = vpop.permute.xlu0 %653
      %v656 = vmul.f32 %v649, %v654
      %658 = vrot.lane.b32.xlu0 %v656, 16
      %v659 = vpop.permute.xlu0 %658
      %v661 = vadd.f32 %v651, %v659
      %v662 = vtanh.pop %v661
      %664 = vrot.lane.b32.xlu0 %v662, 16
      %v665 = vpop.permute.xlu0 %664
      %v667 = vmul.f32 %v649, %v665
      %s668 = sadd.s32 %s410, 3
      %v669 = vstv %s668
      %vm670 = vcmp.ge.s32.totalorder %v669, %v409
      %v671 = vsel %vm670, 1, 0
      %672 = vset.pattern.permute.xlu0 0
      %673 = vperm.xlu0 %672, %v671
      %v674 = vpop.permute.xlu0 %673
      %vm675 = vcmp.eq.s32.totalorder %v674, 1
      %v676 = vsel %vm675, %v667, 0.0
      %678 = vrot.lane.b32.xlu0 %v676, 96
      %v679 = vpop.permute.xlu0 %678
      %681 = vst.msk [vmem:[%s386] sm:$0xff] %vm415, %v679
      %v682 = vsel %vm675, %v667, %v617
      %v683 = vsel %vm675, %v661, %v618
      %685 = vrot.lane.b32.xlu0 %v682, 96
      %v686 = vpop.permute.xlu0 %685
      %688 = vst.msk [vmem:[#allocation2] sm:$0xff] %vm415, %v686
      %690 = vrot.lane.b32.xlu0 %v683, 112
      %v691 = vpop.permute.xlu0 %690
      %693 = vst.msk [vmem:[#allocation3] sm:$0xff] %vm415, %v691
      %p694 = scmp.eq.s32.totalorder %s24, 1
      // Predicated region
      $region45: #{_lambda_.4} parent=39 // pred_check
        %p695 = pneg %p694
      $region46: #{_lambda_.4} parent=39 // pred_check_branch
        %697 = sbr.rel (%p695) target = $region48
      $region47: #{_lambda_.4} parent=39 // pred_region
        %698 = vst.msk [vmem:[%s392] sm:$0xff] %vm415, %v686
        %699 = vst.msk [vmem:[%s396] sm:$0xff] %vm415, %v691
      $region48: #{_lambda_.4} parent=39 // pred_fallthru
        _
      %s700 = ssub.s32 1, %s24
      %s701 = smul.u32 4, %s700
      %p702 = scmp.lt.s32.totalorder %s701, 7
      %s703 = scalar_select %p702, %s701, 7
      %p704 = scmp.lt.s32.totalorder %s23, 0
      %s705 = scalar_select %p704, %s23, 0
      %s706 = sadd.s32 %s705, %s703
      %s707 = smul.addr %s706, 8
      %s708 = scalar_lea.vmem %s5, %s707
      %p709 = scmp.lt.s32.totalorder %s23, 0
      %s710 = scalar_select %p709, %s23, 0
      %s711 = smul.addr %s710, 8
      %s712 = scalar_lea.vmem %s6, %s711
      %p713 = scmp.lt.s32.totalorder %s23, 0
      %s714 = scalar_select %p713, %s23, 0
      %s715 = smul.addr %s714, 8
      %s716 = scalar_lea.vmem %s7, %s715
      // Predicated region
      $region49: #{_lambda_.4} parent=39 // pred_check
        %p717 = pneg %p182
      $region50: #{_lambda_.4} parent=39 // pred_check_branch
        %719 = sbr.rel (%p717) target = $region52
      $region51: #{_lambda_.4} parent=39 // pred_region
        %s720 = ssub.s32 1, %s24
        %s721 = smul.u32 4, %s720
      $region52: #{_lambda_.4} parent=39 // pred_fallthru
        _
      // Predicated region
      $region53: #{_lambda_.4} parent=39 // pred_check
        %p722 = pneg %p208
      $region54: #{_lambda_.4} parent=39 // pred_check_branch
        %724 = sbr.rel (%p722) target = $region56
      $region55: #{_lambda_.4} parent=39 // pred_region
        _
      $region56: #{_lambda_.4} parent=39 // pred_fallthru
        _
      // Predicated region
      $region57: #{_lambda_.4} parent=39 // pred_check
        %p725 = pneg %p234
      $region58: #{_lambda_.4} parent=39 // pred_check_branch
        %727 = sbr.rel (%p725) target = $region60
      $region59: #{_lambda_.4} parent=39 // pred_region
        _
      $region60: #{_lambda_.4} parent=39 // pred_fallthru
        _
      // Predicated region
      $region61: #{_lambda_.4} parent=39 // pred_check
        %p728 = pneg %p208
      $region62: #{_lambda_.4} parent=39 // pred_check_branch
        %730 = sbr.rel (%p728) target = $region64
      $region63: #{_lambda_.4} parent=39 // pred_region
        %p731 = scmp.lt.s32.totalorder %s23, 0
        %s732 = scalar_select %p731, %s23, 0
        %s733 = smul.addr %s732, 8
        %s734 = scalar_lea.vmem %s6, %s733
      $region64: #{_lambda_.4} parent=39 // pred_fallthru
        _
      // Predicated region
      $region65: #{_lambda_.4} parent=39 // pred_check
        %p735 = pneg %p234
      $region66: #{_lambda_.4} parent=39 // pred_check_branch
        %737 = sbr.rel (%p735) target = $region68
      $region67: #{_lambda_.4} parent=39 // pred_region
        %p738 = scmp.lt.s32.totalorder %s23, 0
        %s739 = scalar_select %p738, %s23, 0
        %s740 = smul.addr %s739, 8
        %s741 = scalar_lea.vmem %s7, %s740
      $region68: #{_lambda_.4} parent=39 // pred_fallthru
        _
    $region40: #{_lambda_.4} parent=5 // pred_fallthru
      _
    %p742 = scmp.le.s32.totalorder 2, %s14
    // Predicated region
    $region69: #{_lambda_.4} parent=5 // pred_check
      %p743 = pneg %p742
    $region70: #{_lambda_.4} parent=5 // pred_check_branch
      %745 = sbr.rel (%p743) target = $region72
    $region71: #{_lambda_.4} parent=5 // pred_region
      %s746 = ssub.s32 %s14, 2
      // Predicated region
      $region73: #{_lambda_.4} parent=71 // pred_check
        %p747 = pneg %p188
      $region74: #{_lambda_.4} parent=71 // pred_check_branch
        %749 = sbr.rel (%p747) target = $region76
      $region75: #{_lambda_.4} parent=71 // pred_region
        %s750 = ssub.s32 1, %s26
        %s751 = smul.u32 4, %s750
        %p752 = scmp.lt.s32.totalorder %s751, 7
        %s753 = scalar_select %p752, %s751, 7
        %p754 = scmp.lt.s32.totalorder %s25, 0
        %s755 = scalar_select %p754, %s25, 0
        %s756 = sadd.s32 %s755, %s753
        %s757 = smul.addr %s756, 8
        %s758 = scalar_lea.vmem %s5, %s757
      $region76: #{_lambda_.4} parent=71 // pred_fallthru
        _
    $region72: #{_lambda_.4} parent=5 // pred_fallthru
      _
  $region6: #{_lambda_.4} parent=0 // loop_footer
    %s18 = sadd.s32 1, %s14
  $region7: #{_lambda_.4} parent=0 // loop_footer_branch
    %13 = sbr.rel target = $region3
  $region8: #{_lambda_.4} parent=0 // loop_exit
    _

// kernel: _lambda_.5
$region0: #{_lambda_.5}
  #allocation0 [shape = 'u32[]', space=smem, size = 0x4, offset = 0x4, fixed_abs, tag = 'smem constant byte address 0x4 - core index']
  #allocation1 [shape = 'u32[72,128]{1,0:T(1,128)}', space=vmem, size = 0x9000, scoped, tag = 'internal scratch']
  #allocation2 [shape = 'f32[8,32]{1,0:T(8,128)}', space=vmem, size = 0x1000, scoped, tag = 'scratch operand']
  #allocation3 [shape = 'f32[8,32]{1,0:T(8,128)}', space=vmem, size = 0x1000, scoped, tag = 'scratch operand']
  %s0 = inlined_call_operand.vmem [shape: f32[6,8,128], index: 0, kind: input, shape index: {}]
  %s1 = inlined_call_operand.vmem [shape: f32[32,128], index: 1, kind: input, shape index: {}]
  %s2 = inlined_call_operand.vmem [shape: f32[8,32], index: 2, kind: input, shape index: {}]
  %s3 = inlined_call_operand.vmem [shape: f32[8,32], index: 3, kind: input, shape index: {}]
  %s4 = inlined_call_operand.vmem [shape: f32[6,8,32], index: 4, kind: output, shape index: {0}]
  %s5 = inlined_call_operand.vmem [shape: f32[8,32], index: 5, kind: output, shape index: {1}]
  %s6 = inlined_call_operand.vmem [shape: f32[8,32], index: 6, kind: output, shape index: {2}]
  %7 = xla_tuple %s4, %s5, %s6
  %s8 = sld [smem:[#allocation0]]
  $region73: #{_lambda_.5} parent=0
    _
  %s10 = ssub.s32 1, %s8
  %s11 = scalar_select 0, %s10, %s8
  loop: start=0, step=1, limit=4
  $region2: #{_lambda_.5} parent=0 // loop_pre_header
    _
  $region3: #{_lambda_.5} parent=0 // loop_header
    %s13 = sphi 0, %s17
    %p14 = scmp.ge.s32.totalorder %s13, 4
    %s20 = sphi 0, %s32
    %s21 = sphi 0, %s28
    %s22 = sphi 0, %s20
    %s23 = sphi 0, %s21
    %s24 = sphi 0, %s22
    %s25 = sphi 0, %s23
    %s37 = sphi 0, %s39
    %s40 = sphi 0, %s37
    %s41 = sphi 0, %s40
    %s57 = sphi 0, %s41
    %s61 = sphi 0, %s61
    %s63 = sphi 0, %s61
    %s64 = sphi 0, %s63
    %s78 = sphi 0, %s64
    %s84 = sphi 0, %s86
    %s87 = sphi 0, %s84
    %s88 = sphi 0, %s87
    %s104 = sphi 0, %s88
    %s110 = sphi 0, %s112
    %s113 = sphi 0, %s110
    %s114 = sphi 0, %s113
    %s130 = sphi 0, %s114
    %s138 = sphi 0, %s140
    %s141 = sphi 0, %s138
    %s142 = sphi 0, %s141
    %s158 = sphi 0, %s142
    %s164 = sphi 0, %s166
    %s167 = sphi 0, %s164
    %s168 = sphi 0, %s167
    %s184 = sphi 0, %s168
    %s190 = sphi 0, %s192
    %s193 = sphi 0, %s190
    %s194 = sphi 0, %s193
    %s210 = sphi 0, %s194
  $region4: #{_lambda_.5} parent=0 // loop_header_branch
    %16 = sbr.rel (%p14) target = $region8
  $region5: #{_lambda_.5} parent=0 // loop_body
    %s18 = ssub.s32 %s13, 1
    %s19 = ssub.s32 %s13, 2
    %s26 = sadd.s32 1, %s21
    %p27 = scmp.ge.s32.totalorder %s26, 2
    %s28 = scalar_select %p27, 0, %s26
    %s29 = sadd.s32 1, %s20
    %s30 = scalar_select %p27, %s29, %s20
    %p31 = scmp.ge.s32.totalorder %s30, 1
    %s32 = scalar_select %p31, 0, %s30
    %s33 = ssub.s32 %s21, %s28
    %s34 = ssub.s32 %s20, %s32
    %s35 = sor.u32 %s33, %s34
    %p36 = scmp.eq.s32.totalorder %s35, 0
    %s38 = sadd.s32 %s37, 1
    %s39 = scalar_select %p36, %s37, %s38
    %p42 = pneg %p36
    %p43 = scmp.eq.s32.totalorder %s13, 1
    %p44 = por %p42, %p43
    %p45 = scmp.ne.s32.totalorder %s37, %s40
    %p46 = scmp.eq.s32.totalorder %s13, 0
    %p47 = por %p45, %p46
    %p48 = scmp.ne.s32.totalorder %s37, %s40
    %p49 = scmp.eq.s32.totalorder %s18, 1
    %p50 = por %p48, %p49
    %p51 = scmp.ne.s32.totalorder %s40, %s41
    %p52 = scmp.eq.s32.totalorder %s18, 0
    %p53 = por %p51, %p52
    %p54 = scmp.ne.s32.totalorder %s40, %s41
    %p55 = scmp.eq.s32.totalorder %s19, 1
    %p56 = por %p54, %p55
    %p58 = scmp.ne.s32.totalorder %s41, %s57
    %p59 = scmp.eq.s32.totalorder %s19, 0
    %p60 = por %p58, %p59
    %s62 = sadd.s32 %s61, 1
    %p65 = scmp.eq.s32.totalorder %s13, 1
    %p66 = scmp.ne.s32.totalorder %s61, %s63
    %p67 = scmp.eq.s32.totalorder %s13, 0
    %p68 = por %p66, %p67
    %p69 = scmp.ne.s32.totalorder %s61, %s63
    %p70 = scmp.eq.s32.totalorder %s18, 1
    %p71 = por %p69, %p70
    %p72 = scmp.ne.s32.totalorder %s63, %s64
    %p73 = scmp.eq.s32.totalorder %s18, 0
    %p74 = por %p72, %p73
    %p75 = scmp.ne.s32.totalorder %s63, %s64
    %p76 = scmp.eq.s32.totalorder %s19, 1
    %p77 = por %p75, %p76
    %p79 = scmp.ne.s32.totalorder %s64, %s78
    %p80 = scmp.eq.s32.totalorder %s19, 0
    %p81 = por %p79, %p80
    %s82 = ssub.s32 %s20, %s32
    %p83 = scmp.eq.s32.totalorder %s82, 0
    %s85 = sadd.s32 %s84, 1
    %s86 = scalar_select %p83, %s84, %s85
    %p89 = pneg %p83
    %p90 = scmp.eq.s32.totalorder %s13, 1
    %p91 = por %p89, %p90
    %p92 = scmp.ne.s32.totalorder %s84, %s87
    %p93 = scmp.eq.s32.totalorder %s13, 0
    %p94 = por %p92, %p93
    %p95 = scmp.ne.s32.totalorder %s84, %s87
    %p96 = scmp.eq.s32.totalorder %s18, 1
    %p97 = por %p95, %p96
    %p98 = scmp.ne.s32.totalorder %s87, %s88
    %p99 = scmp.eq.s32.totalorder %s18, 0
    %p100 = por %p98, %p99
    %p101 = scmp.ne.s32.totalorder %s87, %s88
    %p102 = scmp.eq.s32.totalorder %s19, 1
    %p103 = por %p101, %p102
    %p105 = scmp.ne.s32.totalorder %s88, %s104
    %p106 = scmp.eq.s32.totalorder %s19, 0
    %p107 = por %p105, %p106
    %s108 = ssub.s32 %s20, %s32
    %p109 = scmp.eq.s32.totalorder %s108, 0
    %s111 = sadd.s32 %s110, 1
    %s112 = scalar_select %p109, %s110, %s111
    %p115 = pneg %p109
    %p116 = scmp.eq.s32.totalorder %s13, 1
    %p117 = por %p115, %p116
    %p118 = scmp.ne.s32.totalorder %s110, %s113
    %p119 = scmp.eq.s32.totalorder %s13, 0
    %p120 = por %p118, %p119
    %p121 = scmp.ne.s32.totalorder %s110, %s113
    %p122 = scmp.eq.s32.totalorder %s18, 1
    %p123 = por %p121, %p122
    %p124 = scmp.ne.s32.totalorder %s113, %s114
    %p125 = scmp.eq.s32.totalorder %s18, 0
    %p126 = por %p124, %p125
    %p127 = scmp.ne.s32.totalorder %s113, %s114
    %p128 = scmp.eq.s32.totalorder %s19, 1
    %p129 = por %p127, %p128
    %p131 = scmp.ne.s32.totalorder %s114, %s130
    %p132 = scmp.eq.s32.totalorder %s19, 0
    %p133 = por %p131, %p132
    %s134 = ssub.s32 %s21, %s28
    %s135 = ssub.s32 %s20, %s32
    %s136 = sor.u32 %s134, %s135
    %p137 = scmp.eq.s32.totalorder %s136, 0
    %s139 = sadd.s32 %s138, 1
    %s140 = scalar_select %p137, %s138, %s139
    %p143 = pneg %p137
    %p144 = scmp.eq.s32.totalorder %s13, 1
    %p145 = por %p143, %p144
    %p146 = scmp.ne.s32.totalorder %s138, %s141
    %p147 = scmp.eq.s32.totalorder %s13, 0
    %p148 = por %p146, %p147
    %p149 = scmp.ne.s32.totalorder %s138, %s141
    %p150 = scmp.eq.s32.totalorder %s18, 1
    %p151 = por %p149, %p150
    %p152 = scmp.ne.s32.totalorder %s141, %s142
    %p153 = scmp.eq.s32.totalorder %s18, 0
    %p154 = por %p152, %p153
    %p155 = scmp.ne.s32.totalorder %s141, %s142
    %p156 = scmp.eq.s32.totalorder %s19, 1
    %p157 = por %p155, %p156
    %p159 = scmp.ne.s32.totalorder %s142, %s158
    %p160 = scmp.eq.s32.totalorder %s19, 0
    %p161 = por %p159, %p160
    %s162 = ssub.s32 %s20, %s32
    %p163 = scmp.eq.s32.totalorder %s162, 0
    %s165 = sadd.s32 %s164, 1
    %s166 = scalar_select %p163, %s164, %s165
    %p169 = pneg %p163
    %p170 = scmp.eq.s32.totalorder %s13, 1
    %p171 = por %p169, %p170
    %p172 = scmp.ne.s32.totalorder %s164, %s167
    %p173 = scmp.eq.s32.totalorder %s13, 0
    %p174 = por %p172, %p173
    %p175 = scmp.ne.s32.totalorder %s164, %s167
    %p176 = scmp.eq.s32.totalorder %s18, 1
    %p177 = por %p175, %p176
    %p178 = scmp.ne.s32.totalorder %s167, %s168
    %p179 = scmp.eq.s32.totalorder %s18, 0
    %p180 = por %p178, %p179
    %p181 = scmp.ne.s32.totalorder %s167, %s168
    %p182 = scmp.eq.s32.totalorder %s19, 1
    %p183 = por %p181, %p182
    %p185 = scmp.ne.s32.totalorder %s168, %s184
    %p186 = scmp.eq.s32.totalorder %s19, 0
    %p187 = por %p185, %p186
    %s188 = ssub.s32 %s20, %s32
    %p189 = scmp.eq.s32.totalorder %s188, 0
    %s191 = sadd.s32 %s190, 1
    %s192 = scalar_select %p189, %s190, %s191
    %p195 = pneg %p189
    %p196 = scmp.eq.s32.totalorder %s13, 1
    %p197 = por %p195, %p196
    %p198 = scmp.ne.s32.totalorder %s190, %s193
    %p199 = scmp.eq.s32.totalorder %s13, 0
    %p200 = por %p198, %p199
    %p201 = scmp.ne.s32.totalorder %s190, %s193
    %p202 = scmp.eq.s32.totalorder %s18, 1
    %p203 = por %p201, %p202
    %p204 = scmp.ne.s32.totalorder %s193, %s194
    %p205 = scmp.eq.s32.totalorder %s18, 0
    %p206 = por %p204, %p205
    %p207 = scmp.ne.s32.totalorder %s193, %s194
    %p208 = scmp.eq.s32.totalorder %s19, 1
    %p209 = por %p207, %p208
    %p211 = scmp.ne.s32.totalorder %s194, %s210
    %p212 = scmp.eq.s32.totalorder %s19, 0
    %p213 = por %p211, %p212
    %p214 = scmp.le.s32.totalorder 1, %s13
    %p215 = scmp.lt.s32.totalorder %s13, 3
    %p216 = pnand %p214, %p215
    %p217 = pneg %p216
    // Predicated region
    $region9: #{_lambda_.5} parent=5 // pred_check
      _
    $region10: #{_lambda_.5} parent=5 // pred_check_branch
      %219 = sbr.rel (%p216) target = $region12
    $region11: #{_lambda_.5} parent=5 // pred_region
      %s220 = ssub.s32 %s13, 1
      // Predicated region
      $region13: #{_lambda_.5} parent=11 // pred_check
        %p221 = pneg %p74
      $region14: #{_lambda_.5} parent=11 // pred_check_branch
        %223 = sbr.rel (%p221) target = $region16
      $region15: #{_lambda_.5} parent=11 // pred_region
        _
      $region16: #{_lambda_.5} parent=11 // pred_fallthru
        _
      // Predicated region
      $region17: #{_lambda_.5} parent=11 // pred_check
        %p224 = pneg %p100
      $region18: #{_lambda_.5} parent=11 // pred_check_branch
        %226 = sbr.rel (%p224) target = $region20
      $region19: #{_lambda_.5} parent=11 // pred_region
        %p227 = scmp.lt.s32.totalorder %s22, 0
        %s228 = scalar_select %p227, %s22, 0
        %s229 = smul.addr %s228, 8
        %s230 = scalar_lea.vmem %s2, %s229
      $region20: #{_lambda_.5} parent=11 // pred_fallthru
        _
      // Predicated region
      $region21: #{_lambda_.5} parent=11 // pred_check
        %p231 = pneg %p126
      $region22: #{_lambda_.5} parent=11 // pred_check_branch
        %233 = sbr.rel (%p231) target = $region24
      $region23: #{_lambda_.5} parent=11 // pred_region
        %p234 = scmp.lt.s32.totalorder %s22, 0
        %s235 = scalar_select %p234, %s22, 0
        %s236 = smul.addr %s235, 8
        %s237 = scalar_lea.vmem %s3, %s236
      $region24: #{_lambda_.5} parent=11 // pred_fallthru
        _
    $region12: #{_lambda_.5} parent=5 // pred_fallthru
      _
    %p238 = scmp.lt.s32.totalorder %s13, 2
    // Predicated region
    $region25: #{_lambda_.5} parent=5 // pred_check
      %p239 = pneg %p238
    $region26: #{_lambda_.5} parent=5 // pred_check_branch
      %241 = sbr.rel (%p239) target = $region28
    $region27: #{_lambda_.5} parent=5 // pred_region
      // Predicated region
      $region29: #{_lambda_.5} parent=27 // pred_check
        %p242 = pneg %p47
      $region30: #{_lambda_.5} parent=27 // pred_check_branch
        %244 = sbr.rel (%p242) target = $region32
      $region31: #{_lambda_.5} parent=27 // pred_region
        %s245 = smul.u32 3, %s21
        %p246 = scmp.lt.s32.totalorder %s245, 5
        %s247 = scalar_select %p246, %s245, 5
        %p248 = scmp.lt.s32.totalorder %s20, 0
        %s249 = scalar_select %p248, %s20, 0
        %s250 = sadd.s32 %s249, %s247
        %s251 = smul.addr %s250, 8
        %s252 = scalar_lea.vmem %s0, %s251
        %s253 = smul.u32 3, %s21
      $region32: #{_lambda_.5} parent=27 // pred_fallthru
        _
    $region28: #{_lambda_.5} parent=5 // pred_fallthru
      _
    %p254 = scmp.le.s32.totalorder 1, %s13
    %p255 = scmp.lt.s32.totalorder %s13, 3
    %p256 = pnand %p254, %p255
    %p257 = pneg %p256
    // Predicated region
    $region33: #{_lambda_.5} parent=5 // pred_check
      _
    $region34: #{_lambda_.5} parent=5 // pred_check_branch
      %259 = sbr.rel (%p256) target = $region36
    $region35: #{_lambda_.5} parent=5 // pred_region
      %s260 = ssub.s32 %s13, 1
      %s261 = smul.u32 3, %s23
      %p262 = scmp.lt.s32.totalorder %s261, 5
      %s263 = scalar_select %p262, %s261, 5
      %p264 = scmp.lt.s32.totalorder %s22, 0
      %s265 = scalar_select %p264, %s22, 0
      %s266 = sadd.s32 %s265, %s263
      %s267 = smul.addr %s266, 8
      %s268 = scalar_lea.vmem %s0, %s267
      %p269 = pneg %p53
      %p270 = pneg %p50
      %p271 = pneg %p74
      %p272 = pneg %p71
      %p273 = scmp.lt.s32.totalorder %s22, 0
      %s274 = scalar_select %p273, %s22, 0
      %s275 = smul.addr %s274, 8
      %s276 = scalar_lea.vmem %s2, %s275
      %p277 = pneg %p100
      %p278 = pneg %p97
      %p279 = scmp.lt.s32.totalorder %s22, 0
      %s280 = scalar_select %p279, %s22, 0
      %s281 = smul.addr %s280, 8
      %s282 = scalar_lea.vmem %s3, %s281
      %p283 = pneg %p126
      %p284 = pneg %p123
      %p285 = pneg %p154
      %p286 = pneg %p151
      %s287 = smul.u32 3, %s23
      %p288 = scmp.lt.s32.totalorder %s287, 5
      %s289 = scalar_select %p288, %s287, 5
      %p290 = scmp.lt.s32.totalorder %s22, 0
      %s291 = scalar_select %p290, %s22, 0
      %s292 = sadd.s32 %s291, %s289
      %s293 = smul.addr %s292, 8
      %s294 = scalar_lea.vmem %s4, %s293
      %p295 = pneg %p180
      %p296 = pneg %p177
      %p297 = scmp.lt.s32.totalorder %s22, 0
      %s298 = scalar_select %p297, %s22, 0
      %s299 = smul.addr %s298, 8
      %s300 = scalar_lea.vmem %s5, %s299
      %p301 = pneg %p206
      %p302 = pneg %p203
      %p303 = scmp.lt.s32.totalorder %s22, 0
      %s304 = scalar_select %p303, %s22, 0
      %s305 = smul.addr %s304, 8
      %s306 = scalar_lea.vmem %s6, %s305
      %s307 = smul.u32 3, %s23
      %p308 = scmp.lt.s32.totalorder %s307, 5
      %s309 = scalar_select %p308, %s307, 5
      %p310 = scmp.lt.s32.totalorder %s22, 0
      %s311 = scalar_select %p310, %s22, 0
      %s312 = sadd.s32 %s311, %s309
      %s313 = smul.addr %s312, 8
      %s314 = scalar_lea.vmem %s0, %s313
      %s315 = smul.u32 3, %s23
      %p316 = scmp.lt.s32.totalorder %s22, 0
      %s317 = scalar_select %p316, %s22, 0
      %s318 = smul.addr %s317, 8
      %s319 = scalar_lea.vmem %s2, %s318
      %p320 = scmp.lt.s32.totalorder %s22, 0
      %s321 = scalar_select %p320, %s22, 0
      %s322 = smul.addr %s321, 8
      %s323 = scalar_lea.vmem %s3, %s322
      %s324 = smul.u32 3, %s23
      %p325 = scmp.lt.s32.totalorder %s324, 5
      %s326 = scalar_select %p325, %s324, 5
      %p327 = scmp.lt.s32.totalorder %s22, 0
      %s328 = scalar_select %p327, %s22, 0
      %s329 = sadd.s32 %s328, %s326
      %s330 = smul.addr %s329, 8
      %s331 = scalar_lea.vmem %s4, %s330
      %s332 = smul.u32 3, %s23
      %p333 = scmp.lt.s32.totalorder %s22, 0
      %s334 = scalar_select %p333, %s22, 0
      %s335 = smul.addr %s334, 8
      %s336 = scalar_lea.vmem %s5, %s335
      %p337 = scmp.lt.s32.totalorder %s22, 0
      %s338 = scalar_select %p337, %s22, 0
      %s339 = smul.addr %s338, 8
      %s340 = scalar_lea.vmem %s6, %s339
      %p341 = scmp.eq.s32.totalorder %s23, 0
      // Predicated region
      $region37: #{_lambda_.5} parent=35 // pred_check
        %p342 = pneg %p341
      $region38: #{_lambda_.5} parent=35 // pred_check_branch
        %344 = sbr.rel (%p342) target = $region40
      $region39: #{_lambda_.5} parent=35 // pred_region
        %v345 = vld [vmem:[%s319] sm:$0xff]
        %vm346 = vcmask 261120
        %347 = vst.msk [vmem:[#allocation2] sm:$0xff] %vm346, %v345
        %v348 = vld [vmem:[%s323] sm:$0xff]
        %349 = vst.msk [vmem:[#allocation3] sm:$0xff] %vm346, %v348
      $region40: #{_lambda_.5} parent=35 // pred_fallthru
        _
      %v350 = vld [vmem:[%s1] sm:$0xff]
      %v351 = vld [vmem:[%s1 + $0x8] sm:$0xff]
      %v352 = vld [vmem:[%s1 + $0x10] sm:$0xff]
      %v353 = vld [vmem:[%s1 + $0x18] sm:$0xff]
      %v354 = vld [vmem:[#allocation2] sm:$0xff]
      %v355 = vld [vmem:[#allocation3] sm:$0xff]
      %v356 = vld [vmem:[%s314] sm:$0xff]
      %vm357 = vcmask 261120
      %v359 = vsel %vm357, %v354, 0
      %361 = vmatpush.msra.mxu0 0.0
      %362 = vmatpush.msra.mxu0 0.0
      %363 = vmatpush.msra.mxu0 0.0
      %364 = vmatpush.msra.mxu0 0.0
      %365 = vmatpush.msra.mxu0 0.0
      %366 = vmatpush.msra.mxu0 0.0
      %367 = vmatpush.msra.mxu0 0.0
      %368 = vmatpush.msra.mxu0 0.0
      %369 = vmatpush.msra.mxu0 0.0
      %370 = vmatpush.msra.mxu0 0.0
      %371 = vmatpush.msra.mxu0 0.0
      %372 = vmatpush.msra.mxu0 0.0
      %373 = vmatpush.msra.mxu0 %v353
      %374 = vmatpush.msra.mxu0 %v352
      %375 = vmatpush.msra.mxu0 %v351
      %376 = vmatpush.msra.mxu0 %v350
      %377 = vmatmul.f32.gmra.mxu0 %v359
      %v378 = vpop.f32.mrf.mxu0
      %v379 = vadd.f32 0.0, %v378
      %380 = vdwg.mxu0
      %v381 = vadd.f32 %v356, %v379
      %v382 = vmul.f32 %v381, 0.5
      %v383 = vtanh.pop %v382
      %v384 = vmul.f32 %v383, 0.5
      %v385 = vadd.f32 %v384, 0.5
      %v386 = vtanh.pop %v381
      %388 = vrot.lane.b32.xlu0 %v355, 32
      %v389 = vpop.permute.xlu0 %388
      %v391 = vmul.f32 %v385, %v389
      %393 = vrot.lane.b32.xlu0 %v386, 32
      %v394 = vpop.permute.xlu0 %393
      %v396 = vmul.f32 %v385, %v394
      %398 = vrot.lane.b32.xlu0 %v396, 32
      %v399 = vpop.permute.xlu0 %398
      %v401 = vadd.f32 %v391, %v399
      %v402 = vtanh.pop %v401
      %404 = vrot.lane.b32.xlu0 %v402, 32
      %v405 = vpop.permute.xlu0 %404
      %v407 = vmul.f32 %v385, %v405
      %409 = vrot.lane.b32.xlu0 %v407, 64
      %v410 = vpop.permute.xlu0 %409
      %412 = vst.msk [vmem:[%s331] sm:$0xff] %vm357, %v410
      %s413 = scalar_lea.vmem %s314, 8
      %v414 = vld [vmem:[%s413] sm:$0xff]
      %v415 = vsel %vm357, %v410, 0
      %417 = vmatpush.msra.mxu0 0.0
      %418 = vmatpush.msra.mxu0 0.0
      %419 = vmatpush.msra.mxu0 0.0
      %420 = vmatpush.msra.mxu0 0.0
      %421 = vmatpush.msra.mxu0 0.0
      %422 = vmatpush.msra.mxu0 0.0
      %423 = vmatpush.msra.mxu0 0.0
      %424 = vmatpush.msra.mxu0 0.0
      %425 = vmatpush.msra.mxu0 0.0
      %426 = vmatpush.msra.mxu0 0.0
      %427 = vmatpush.msra.mxu0 0.0
      %428 = vmatpush.msra.mxu0 0.0
      %429 = vmatpush.msra.mxu0 %v353
      %430 = vmatpush.msra.mxu0 %v352
      %431 = vmatpush.msra.mxu0 %v351
      %432 = vmatpush.msra.mxu0 %v350
      %433 = vmatmul.f32.gmra.mxu0 %v415
      %v434 = vpop.f32.mrf.mxu0
      %v435 = vadd.f32 0.0, %v434
      %436 = vdwg.mxu0
      %v437 = vadd.f32 %v414, %v435
      %v438 = vmul.f32 %v437, 0.5
      %v439 = vtanh.pop %v438
      %v440 = vmul.f32 %v439, 0.5
      %v441 = vadd.f32 %v440, 0.5
      %v442 = vtanh.pop %v437
      %v443 = vmul.f32 %v441, %v401
      %445 = vrot.lane.b32.xlu0 %v442, 32
      %v446 = vpop.permute.xlu0 %445
      %v448 = vmul.f32 %v441, %v446
      %450 = vrot.lane.b32.xlu0 %v448, 32
      %v451 = vpop.permute.xlu0 %450
      %v453 = vadd.f32 %v443, %v451
      %v454 = vtanh.pop %v453
      %456 = vrot.lane.b32.xlu0 %v454, 32
      %v457 = vpop.permute.xlu0 %456
      %v459 = vmul.f32 %v441, %v457
      %461 = vrot.lane.b32.xlu0 %v459, 64
      %v462 = vpop.permute.xlu0 %461
      %s464 = scalar_lea.vmem %s331, 8
      %465 = vst.msk [vmem:[%s464] sm:$0xff] %vm357, %v462
      %s466 = scalar_lea.vmem %s314, 16
      %v467 = vld [vmem:[%s466] sm:$0xff]
      %v468 = vsel %vm357, %v462, 0
      %470 = vmatpush.msra.mxu0 0.0
      %471 = vmatpush.msra.mxu0 0.0
      %472 = vmatpush.msra.mxu0 0.0
      %473 = vmatpush.msra.mxu0 0.0
      %474 = vmatpush.msra.mxu0 0.0
      %475 = vmatpush.msra.mxu0 0.0
      %476 = vmatpush.msra.mxu0 0.0
      %477 = vmatpush.msra.mxu0 0.0
      %478 = vmatpush.msra.mxu0 0.0
      %479 = vmatpush.msra.mxu0 0.0
      %480 = vmatpush.msra.mxu0 0.0
      %481 = vmatpush.msra.mxu0 0.0
      %482 = vmatpush.msra.mxu0 %v353
      %483 = vmatpush.msra.mxu0 %v352
      %484 = vmatpush.msra.mxu0 %v351
      %485 = vmatpush.msra.mxu0 %v350
      %486 = vmatmul.f32.gmra.mxu0 %v468
      %v487 = vpop.f32.mrf.mxu0
      %v488 = vadd.f32 0.0, %v487
      %489 = vdwg.mxu0
      %v490 = vadd.f32 %v467, %v488
      %v491 = vmul.f32 %v490, 0.5
      %v492 = vtanh.pop %v491
      %v493 = vmul.f32 %v492, 0.5
      %v494 = vadd.f32 %v493, 0.5
      %v495 = vtanh.pop %v490
      %v496 = vmul.f32 %v494, %v453
      %498 = vrot.lane.b32.xlu0 %v495, 32
      %v499 = vpop.permute.xlu0 %498
      %v501 = vmul.f32 %v494, %v499
      %503 = vrot.lane.b32.xlu0 %v501, 32
      %v504 = vpop.permute.xlu0 %503
      %v506 = vadd.f32 %v496, %v504
      %v507 = vtanh.pop %v506
      %509 = vrot.lane.b32.xlu0 %v507, 32
      %v510 = vpop.permute.xlu0 %509
      %v512 = vmul.f32 %v494, %v510
      %514 = vrot.lane.b32.xlu0 %v512, 64
      %v515 = vpop.permute.xlu0 %514
      %s517 = scalar_lea.vmem %s331, 16
      %518 = vst.msk [vmem:[%s517] sm:$0xff] %vm357, %v515
      %519 = vst.msk [vmem:[#allocation2] sm:$0xff] %vm357, %v515
      %521 = vrot.lane.b32.xlu0 %v506, 96
      %v522 = vpop.permute.xlu0 %521
      %524 = vst.msk [vmem:[#allocation3] sm:$0xff] %vm357, %v522
      %p525 = scmp.eq.s32.totalorder %s23, 1
      // Predicated region
      $region41: #{_lambda_.5} parent=35 // pred_check
        %p526 = pneg %p525
      $region42: #{_lambda_.5} parent=35 // pred_check_branch
        %528 = sbr.rel (%p526) target = $region44
      $region43: #{_lambda_.5} parent=35 // pred_region
        %529 = vst.msk [vmem:[%s336] sm:$0xff] %vm357, %v515
        %530 = vst.msk [vmem:[%s340] sm:$0xff] %vm357, %v522
      $region44: #{_lambda_.5} parent=35 // pred_fallthru
        _
      %s531 = smul.u32 3, %s23
      %p532 = scmp.lt.s32.totalorder %s531, 5
      %s533 = scalar_select %p532, %s531, 5
      %p534 = scmp.lt.s32.totalorder %s22, 0
      %s535 = scalar_select %p534, %s22, 0
      %s536 = sadd.s32 %s535, %s533
      %s537 = smul.addr %s536, 8
      %s538 = scalar_lea.vmem %s4, %s537
      %p539 = scmp.lt.s32.totalorder %s22, 0
      %s540 = scalar_select %p539, %s22, 0
      %s541 = smul.addr %s540, 8
      %s542 = scalar_lea.vmem %s5, %s541
      %p543 = scmp.lt.s32.totalorder %s22, 0
      %s544 = scalar_select %p543, %s22, 0
      %s545 = smul.addr %s544, 8
      %s546 = scalar_lea.vmem %s6, %s545
      // Predicated region
      $region45: #{_lambda_.5} parent=35 // pred_check
        %p547 = pneg %p151
      $region46: #{_lambda_.5} parent=35 // pred_check_branch
        %549 = sbr.rel (%p547) target = $region48
      $region47: #{_lambda_.5} parent=35 // pred_region
        %s550 = smul.u32 3, %s23
      $region48: #{_lambda_.5} parent=35 // pred_fallthru
        _
      // Predicated region
      $region49: #{_lambda_.5} parent=35 // pred_check
        %p551 = pneg %p177
      $region50: #{_lambda_.5} parent=35 // pred_check_branch
        %553 = sbr.rel (%p551) target = $region52
      $region51: #{_lambda_.5} parent=35 // pred_region
        _
      $region52: #{_lambda_.5} parent=35 // pred_fallthru
        _
      // Predicated region
      $region53: #{_lambda_.5} parent=35 // pred_check
        %p554 = pneg %p203
      $region54: #{_lambda_.5} parent=35 // pred_check_branch
        %556 = sbr.rel (%p554) target = $region56
      $region55: #{_lambda_.5} parent=35 // pred_region
        _
      $region56: #{_lambda_.5} parent=35 // pred_fallthru
        _
      // Predicated region
      $region57: #{_lambda_.5} parent=35 // pred_check
        %p557 = pneg %p177
      $region58: #{_lambda_.5} parent=35 // pred_check_branch
        %559 = sbr.rel (%p557) target = $region60
      $region59: #{_lambda_.5} parent=35 // pred_region
        %p560 = scmp.lt.s32.totalorder %s22, 0
        %s561 = scalar_select %p560, %s22, 0
        %s562 = smul.addr %s561, 8
        %s563 = scalar_lea.vmem %s5, %s562
      $region60: #{_lambda_.5} parent=35 // pred_fallthru
        _
      // Predicated region
      $region61: #{_lambda_.5} parent=35 // pred_check
        %p564 = pneg %p203
      $region62: #{_lambda_.5} parent=35 // pred_check_branch
        %566 = sbr.rel (%p564) target = $region64
      $region63: #{_lambda_.5} parent=35 // pred_region
        %p567 = scmp.lt.s32.totalorder %s22, 0
        %s568 = scalar_select %p567, %s22, 0
        %s569 = smul.addr %s568, 8
        %s570 = scalar_lea.vmem %s6, %s569
      $region64: #{_lambda_.5} parent=35 // pred_fallthru
        _
    $region36: #{_lambda_.5} parent=5 // pred_fallthru
      _
    %p571 = scmp.le.s32.totalorder 2, %s13
    // Predicated region
    $region65: #{_lambda_.5} parent=5 // pred_check
      %p572 = pneg %p571
    $region66: #{_lambda_.5} parent=5 // pred_check_branch
      %574 = sbr.rel (%p572) target = $region68
    $region67: #{_lambda_.5} parent=5 // pred_region
      %s575 = ssub.s32 %s13, 2
      // Predicated region
      $region69: #{_lambda_.5} parent=67 // pred_check
        %p576 = pneg %p157
      $region70: #{_lambda_.5} parent=67 // pred_check_branch
        %578 = sbr.rel (%p576) target = $region72
      $region71: #{_lambda_.5} parent=67 // pred_region
        %s579 = smul.u32 3, %s25
        %p580 = scmp.lt.s32.totalorder %s579, 5
        %s581 = scalar_select %p580, %s579, 5
        %p582 = scmp.lt.s32.totalorder %s24, 0
        %s583 = scalar_select %p582, %s24, 0
        %s584 = sadd.s32 %s583, %s581
        %s585 = smul.addr %s584, 8
        %s586 = scalar_lea.vmem %s4, %s585
      $region72: #{_lambda_.5} parent=67 // pred_fallthru
        _
    $region68: #{_lambda_.5} parent=5 // pred_fallthru
      _
  $region6: #{_lambda_.5} parent=0 // loop_footer
    %s17 = sadd.s32 1, %s13
  $region7: #{_lambda_.5} parent=0 // loop_footer_branch
    %12 = sbr.rel target = $region3
  $region8: #{_lambda_.5} parent=0 // loop_exit
    _

</llo_original>
